<compile_context>
chip_gen: v7x
topology: tpu7x:2x2x1
jax: 0.10.0
libtpu: 0.0.40
codegen_flags: <defaults>
</compile_context>

<pallas_src>
import functools

import jax
import jax.numpy as jnp
from jax import lax
from jax.experimental import pallas as pl
from jax.experimental.pallas import tpu as pltpu


def _round_up(x, m):
    return ((x + m - 1) // m) * m


def _vmem_limit(need_bytes):
    # Raise the scoped-VMEM budget above v5e's 16 MiB default when needed,
    # stay under v7x's 64 MiB physical VMEM.
    return int(min(64 * 2**20, max(2 * need_bytes, 32 * 2**20)))


# ----------------------- Shared tiled matmul (+bias) kernel -------------------
def _matmul_bias_kernel(a_ref, b_ref, bias_ref, o_ref, acc_ref):
    k = pl.program_id(2)

    @pl.when(k == 0)
    def _():
        acc_ref[...] = jnp.zeros_like(acc_ref)

    acc_ref[...] += jnp.dot(a_ref[...], b_ref[...],
                            preferred_element_type=jnp.float32)

    @pl.when(k == pl.num_programs(2) - 1)
    def _():
        o_ref[...] = (acc_ref[...] + bias_ref[...]).astype(o_ref.dtype)


def matmul_bias(a, b, bias, *, out_dtype=jnp.float32, tm=256, tn=512, tk=512):
    """(M, K) @ (K, N) + bias(1, N); f32 accumulation, out_dtype output."""
    M, K = a.shape
    Kb, N = b.shape
    assert K == Kb
    tm = min(tm, _round_up(M, 8))
    tn = min(tn, _round_up(N, 128))
    tk = min(tk, _round_up(K, 128))
    Mp, Np, Kp = _round_up(M, tm), _round_up(N, tn), _round_up(K, tk)
    # Pads are only emitted when the operand is not already tile-aligned
    # (weights/activations are stored pre-padded, so these are usually no-ops).
    if (Mp, Kp) != (M, K):
        a = jnp.pad(a, ((0, Mp - M), (0, Kp - K)))
    if (Kp, Np) != (K, N):
        b = jnp.pad(b, ((0, Kp - K), (0, Np - N)))
    if Np != N:
        bias = jnp.pad(bias, ((0, 0), (0, Np - N)))

    out_isz = jax.dtypes.canonicalize_dtype(out_dtype).itemsize
    need = (2 * tm * tk * a.dtype.itemsize      # a tiles (double-buffered)
            + 2 * tk * tn * b.dtype.itemsize    # b tiles
            + 2 * tn * bias.dtype.itemsize      # bias tiles
            + 2 * tm * tn * out_isz             # out tiles
            + tm * tn * 4)                      # f32 accumulator scratch

    out = pl.pallas_call(
        _matmul_bias_kernel,
        out_shape=jax.ShapeDtypeStruct((Mp, Np), out_dtype),
        grid_spec=pltpu.PrefetchScalarGridSpec(
            num_scalar_prefetch=0,
            grid=(Mp // tm, Np // tn, Kp // tk),
            in_specs=[
                pl.BlockSpec((tm, tk), lambda i, j, k: (i, k)),
                pl.BlockSpec((tk, tn), lambda i, j, k: (k, j)),
                pl.BlockSpec((1, tn), lambda i, j, k: (0, j)),
            ],
            out_specs=pl.BlockSpec((tm, tn), lambda i, j, k: (i, j)),
            scratch_shapes=[pltpu.VMEM((tm, tn), jnp.float32)],
        ),
        compiler_params=pltpu.CompilerParams(
            dimension_semantics=("parallel", "parallel", "arbitrary"),
            vmem_limit_bytes=_vmem_limit(need)),
    )(a, b, bias)
    if (Mp, Np) != (M, N):
        out = out[:M, :N]
    return out


# -------------------------- LSTM recurrence kernel ----------------------------
# gx = x @ W_ih^T + (b_ih + b_hh) is precomputed (one big matmul).  This kernel
# only carries the serial h-path: per timestep  h @ W_hh^T + gx[t] -> gates.
def _lstm_recurrent_kernel(gx_ref, whh_hbm, h0_ref, c0_ref,
                           y_ref, hT_ref, cT_ref,
                           whh_scr, h_scr, c_scr, dma_sem,
                           *, Hp, TT, T_valid, Tp, unroll):
    tb = pl.program_id(1)

    @pl.when(tb == 0)
    def _():
        # Single-buffered, loop-invariant recurrent weight: async HBM -> VMEM,
        # overlapped with the h0/c0 scratch loads, waited before the first dot.
        cp = pltpu.make_async_copy(whh_hbm, whh_scr, dma_sem)
        cp.start()
        h_scr[...] = h0_ref[...]
        c_scr[...] = c0_ref[...]
        cp.wait()

    def step(i, carry):
        h, c = carry
        # bf16 x bf16 MXU matmul with f32 accumulation; state stays f32.
        hh = jnp.dot(h.astype(jnp.bfloat16), whh_scr[...],
                     preferred_element_type=jnp.float32)
        gates = gx_ref[i].astype(jnp.float32) + hh
        # Gate slabs are 128-lane aligned (H padded to Hp), PyTorch order i,f,g,o.
        i_g = jax.nn.sigmoid(gates[:, 0 * Hp:1 * Hp])
        f_g = jax.nn.sigmoid(gates[:, 1 * Hp:2 * Hp])
        g_g = jnp.tanh(gates[:, 2 * Hp:3 * Hp])
        o_g = jax.nn.sigmoid(gates[:, 3 * Hp:4 * Hp])
        c_new = f_g * c + i_g * g_g
        h_new = o_g * jnp.tanh(c_new)
        if Tp != T_valid:  # only possible when T was padded to a TT multiple
            keep = (tb * TT + i) < T_valid
            c_new = jnp.where(keep, c_new, c)
            h_new = jnp.where(keep, h_new, h)
        y_ref[i] = h_new.astype(y_ref.dtype)
        return h_new, c_new

    h, c = lax.fori_loop(0, TT, step, (h_scr[...], c_scr[...]), unroll=unroll)
    h_scr[...] = h
    c_scr[...] = c

    @pl.when(tb == pl.num_programs(1) - 1)
    def _():
        hT_ref[...] = h
        cT_ref[...] = c


def lstm_layer(x, w_ih_t, w_hh_t, bias, h0, c0, *, T_valid, TT, n_bshards):
    """x: (Tp, Bp, D_in) bf16; weights bf16, pre-transposed, gate-slab padded."""
    Tp, Bp, D_in = x.shape
    Hp4 = w_ih_t.shape[1]
    Hp = Hp4 // 4
    Bs = Bp // n_bshards

    # (1) Hoisted input projection: one large, fully-pipelined bf16 MXU matmul.
    gx = matmul_bias(x.reshape(Tp * Bp, D_in), w_ih_t, bias,
                     out_dtype=jnp.bfloat16, tm=256, tn=1024,
                     tk=min(1024, D_in))
    gx = gx.reshape(Tp, Bp, Hp4)

    # (2) Time-blocked sequential recurrence (leading axis = batch shards for
    #     megacore parallelism on v7x; size 1 on small batch / v5e / v6e).
    n_blocks = Tp // TT
    unroll = min(TT, 8)
    kernel = functools.partial(_lstm_recurrent_kernel,
                               Hp=Hp, TT=TT, T_valid=T_valid, Tp=Tp,
                               unroll=unroll)

    need = (Hp * Hp4 * 2                  # whh_scr (bf16, single-buffered)
            + 2 * TT * Bs * Hp4 * 2       # gx tiles (bf16, double-buffered)
            + 2 * TT * Bs * Hp * 2        # y tiles (bf16, double-buffered)
            + 8 * Bs * Hp * 4             # h0/c0 in tiles + hT/cT out tiles
            + 2 * Bs * Hp * 4)            # h/c carry scratch

    y, hT, cT = pl.pallas_call(
        kernel,
        out_shape=(jax.ShapeDtypeStruct((Tp, Bp, Hp), jnp.bfloat16),
                   jax.ShapeDtypeStruct((Bp, Hp), jnp.float32),
                   jax.ShapeDtypeStruct((Bp, Hp), jnp.float32)),
        grid_spec=pltpu.PrefetchScalarGridSpec(
            num_scalar_prefetch=0,
            grid=(n_bshards, n_blocks),
            in_specs=[
                pl.BlockSpec((TT, Bs, Hp4), lambda s, tb: (tb, s, 0)),  # gx block
                pl.BlockSpec(memory_space=pl.ANY),                      # W_hh^T (HBM)
                pl.BlockSpec((Bs, Hp), lambda s, tb: (s, 0)),           # h0 shard
                pl.BlockSpec((Bs, Hp), lambda s, tb: (s, 0)),           # c0 shard
            ],
            out_specs=[
                pl.BlockSpec((TT, Bs, Hp), lambda s, tb: (tb, s, 0)),   # y block
                pl.BlockSpec((Bs, Hp), lambda s, tb: (s, 0)),           # h_T (resident)
                pl.BlockSpec((Bs, Hp), lambda s, tb: (s, 0)),           # c_T (resident)
            ],
            scratch_shapes=[
                pltpu.VMEM((Hp, Hp4), jnp.bfloat16),   # single-buffered W_hh^T
                pltpu.VMEM((Bs, Hp), jnp.float32),     # h carry (f32)
                pltpu.VMEM((Bs, Hp), jnp.float32),     # c carry (f32)
                pltpu.SemaphoreType.DMA(()),           # W_hh DMA completion
            ],
        ),
        # Serial recurrence on the time axis ("arbitrary"); batch shards are
        # independent ("parallel") so v7x can split them across its two TCs.
        compiler_params=pltpu.CompilerParams(
            dimension_semantics=("parallel", "arbitrary"),
            vmem_limit_bytes=_vmem_limit(need)),
    )(gx, w_hh_t, h0, c0)
    return y, hT, cT


# ------------------------------- Parameters -----------------------------------
def _pad_gate_cols(w, H, Hp):
    """(rows, 4H) -> (rows, 4Hp): each gate gets its own 128-aligned slab."""
    rows = w.shape[0]
    w4 = w.reshape(rows, 4, H)
    w4 = jnp.pad(w4, ((0, 0), (0, 0), (0, Hp - H)))
    return w4.reshape(rows, 4 * Hp)


class MyModel01Params:
    """Deterministic init mirroring MyModel01.__init__/init_weights.

    Weights are stored pre-padded (lane-aligned) and, for MXU operands, in bf16
    so no per-forward pad/cast copies are needed.  Biases stay f32.
    """

    DEC_TN = 1024  # decoder vocab padded to a multiple of this tile width

    def __init__(self, key, ntoken, ninp, nhid, nlayers):
        self.ntoken, self.ninp, self.nhid, self.nlayers = ntoken, ninp, nhid, nlayers
        Hp = _round_up(nhid, 128)
        ninp_p = _round_up(ninp, 128)
        Vp = _round_up(ntoken, self.DEC_TN)
        self.nhid_p, self.ninp_p, self.ntoken_p = Hp, ninp_p, Vp

        keys = jax.random.split(key, 2 + 4 * nlayers)
        initrange = 0.1
        # Embedding: uniform(-0.1, 0.1); stored f32, padded feature columns.
        emb_w = jax.random.uniform(keys[0], (ntoken, ninp),
                                   minval=-initrange, maxval=initrange,
                                   dtype=jnp.float32)
        self.emb_w = jnp.pad(emb_w, ((0, 0), (0, ninp_p - ninp)))
        # Decoder: weight uniform(-0.1, 0.1) (transposed, H/V padded, bf16); bias 0.
        dec_w_t = jax.random.uniform(keys[1], (nhid, ntoken),
                                     minval=-initrange, maxval=initrange,
                                     dtype=jnp.float32)
        self.dec_w_t = jnp.pad(dec_w_t, ((0, Hp - nhid), (0, Vp - ntoken))
                               ).astype(jnp.bfloat16)
        self.dec_b = jnp.zeros((1, Vp), dtype=jnp.float32)
        # LSTM layers: PyTorch default uniform(-1/sqrt(H), 1/sqrt(H)).
        k = 1.0 / float(nhid) ** 0.5
        self.lstm = []
        for l in range(nlayers):
            d_in = ninp if l == 0 else nhid
            d_in_p = ninp_p if l == 0 else Hp   # deeper layers consume padded h
            kw = keys[2 + 4 * l: 2 + 4 * (l + 1)]
            w_ih_t = jax.random.uniform(kw[0], (d_in, 4 * nhid), minval=-k, maxval=k,
                                        dtype=jnp.float32)
            w_hh_t = jax.random.uniform(kw[1], (nhid, 4 * nhid), minval=-k, maxval=k,
                                        dtype=jnp.float32)
            b_ih = jax.random.uniform(kw[2], (4 * nhid,), minval=-k, maxval=k,
                                      dtype=jnp.float32)
            b_hh = jax.random.uniform(kw[3], (4 * nhid,), minval=-k, maxval=k,
                                      dtype=jnp.float32)
            w_ih_t_p = jnp.pad(_pad_gate_cols(w_ih_t, nhid, Hp),
                               ((0, d_in_p - d_in), (0, 0))).astype(jnp.bfloat16)
            w_hh_t_p = jnp.pad(_pad_gate_cols(w_hh_t, nhid, Hp),
                               ((0, Hp - nhid), (0, 0))).astype(jnp.bfloat16)
            b_p = _pad_gate_cols((b_ih + b_hh)[None, :], nhid, Hp)   # (1, 4Hp) f32
            self.lstm.append((w_ih_t_p, w_hh_t_p, b_p))

    def init_hidden(self, batch_size):
        z = jnp.zeros((self.nlayers, batch_size, self.nhid), dtype=jnp.float32)
        return [z, z]


# ------------------------------- Full forward ---------------------------------
def _pick_tt(T):
    for cand in (64, 32, 16, 8):
        if T % cand == 0:
            return cand
    return min(32, _round_up(T, 8))


@functools.partial(jax.jit, static_argnums=(0,))
def _forward_impl(ntoken, token_ids, h0_all, c0_all, emb_w, lstm_params,
                  dec_w_t, dec_b):
    T, B = token_ids.shape
    H = h0_all.shape[-1]
    Hp = dec_w_t.shape[0]
    Vp = dec_w_t.shape[1]
    Bp = _round_up(B, 8)                 # fill sublanes
    TT = _pick_tt(T)                     # timesteps per grid step
    Tp = _round_up(T, TT)
    n_bshards = 2 if (Bp % 16 == 0) else 1   # v7x: split batch across the 2 TCs

    # Embedding lookup (XLA glue); dropout -> identity (eval).
    x = jnp.take(emb_w, token_ids, axis=0)                    # (T, B, ninp_p) f32
    x = x.astype(jnp.bfloat16)                                 # MXU operand dtype
    if (Tp, Bp) != (T, B):
        x = jnp.pad(x, ((0, Tp - T), (0, Bp - B), (0, 0)))     # (Tp, Bp, ninp_p)

    h_finals, c_finals = [], []
    for l, (w_ih_t, w_hh_t, b) in enumerate(lstm_params):
        h0 = jnp.pad(h0_all[l], ((0, Bp - B), (0, Hp - H)))
        c0 = jnp.pad(c0_all[l], ((0, Bp - B), (0, Hp - H)))
        x, hT, cT = lstm_layer(x, w_ih_t, w_hh_t, b, h0, c0,
                               T_valid=T, TT=TT, n_bshards=n_bshards)
        h_finals.append(hT[:B, :H])
        c_finals.append(cT[:B, :H])
        # inter-layer dropout -> identity (eval)
    h_n = jnp.stack(h_finals, axis=0)                          # (nlayers, B, H)
    c_n = jnp.stack(c_finals, axis=0)

    # Decoder: feed the already-padded (Tp*Bp, Hp) bf16 output straight in
    # (no slice/re-pad round trip); stream the vocab-sized bf16 weight from HBM
    # with a wide lane-dense tn and a single K step.
    logits_p = matmul_bias(x.reshape(Tp * Bp, Hp), dec_w_t, dec_b,
                           out_dtype=jnp.float32, tm=256, tn=1024, tk=Hp)
    logits = logits_p.reshape(Tp, Bp, Vp)[:T, :B, :ntoken]     # (T, B, ntoken)
    return logits, (h_n, c_n)


def forward(params, token_ids, hidden):
    return _forward_impl(params.ntoken, token_ids, hidden[0], hidden[1],
                         params.emb_w, tuple(params.lstm),
                         params.dec_w_t, params.dec_b)


if __name__ == "__main__":
    # Small shapes consistent with the module (ntoken/ninp/nhid scaled down).
    NTOKEN, NINP, NHID, NLAYERS = 128, 32, 32, 2
    SEQ, BATCH = 8, 2

    key = jax.random.PRNGKey(0)
    pkey, ikey = jax.random.split(key)
    params = MyModel01Params(pkey, NTOKEN, NINP, NHID, NLAYERS)

    token_ids = jax.random.randint(ikey, (SEQ, BATCH), 0, NTOKEN, dtype=jnp.int32)
    hidden = params.init_hidden(BATCH)

    logits, (h_n, c_n) = forward(params, token_ids, hidden)
    jax.block_until_ready(logits)
    jax.block_until_ready(h_n)
    jax.block_until_ready(c_n)

    assert logits.shape == (SEQ, BATCH, NTOKEN)
    assert h_n.shape == (NLAYERS, BATCH, NHID)
    assert c_n.shape == (NLAYERS, BATCH, NHID)
    print("KERNEL_OK")
</pallas_src>

<mosaic_0001>
module attributes {stable_mosaic.version = 11 : i64} {
  func.func @_matmul_bias_kernel(%arg0: i32, %arg1: i32, %arg2: i32, %arg3: memref<64x128xbf16, #tpu.memory_space<vmem>>, %arg4: memref<128x512xbf16, #tpu.memory_space<vmem>>, %arg5: memref<1x512xf32, #tpu.memory_space<vmem>>, %arg6: memref<64x512xbf16, #tpu.memory_space<vmem>>, %arg7: memref<64x512xf32, #tpu.memory_space<vmem>>) attributes {dimension_semantics = [#tpu.dimension_semantics<parallel>, #tpu.dimension_semantics<parallel>, #tpu.dimension_semantics<arbitrary>], iteration_bounds = array<i64: 1, 1, 1>, scalar_prefetch = 0 : i64, scratch_operands = 1 : i64, tpu.core_type = #tpu.core_type<tc>, window_params = [{transform_indices = @transform_0, window_bounds = array<i64: 64, 128>}, {transform_indices = @transform_1, window_bounds = array<i64: 128, 512>}, {transform_indices = @transform_2, window_bounds = array<i64: 1, 512>}, {transform_indices = @transform_3, window_bounds = array<i64: 64, 512>}]} {
    %c0_i32 = arith.constant 0 : i32
    %0 = arith.cmpi eq, %arg2, %c0_i32 : i32
    %1 = arith.extui %0 : i1 to i32
    %c0_i32_0 = arith.constant 0 : i32
    %2 = arith.cmpi ne, %1, %c0_i32_0 : i32
    scf.if %2 {
      %cst_10 = arith.constant 0.000000e+00 : f32
      %12 = vector.broadcast %cst_10 : f32 to vector<64x512xf32>
      %c0_11 = arith.constant 0 : index
      %c0_12 = arith.constant 0 : index
      %13 = vector.load %arg7[%c0_11, %c0_12] : memref<64x512xf32, #tpu.memory_space<vmem>>, vector<64x512xf32>
      tpu.vector_store %arg7[%c0_11, %c0_12], %12 {strides = array<i32>} : memref<64x512xf32, #tpu.memory_space<vmem>>, vector<64x512xf32>,
    } else {
    }
    %c0 = arith.constant 0 : index
    %c0_1 = arith.constant 0 : index
    %3 = vector.load %arg7[%c0, %c0_1] : memref<64x512xf32, #tpu.memory_space<vmem>>, vector<64x512xf32>
    %c0_2 = arith.constant 0 : index
    %c0_3 = arith.constant 0 : index
    %4 = vector.load %arg3[%c0_2, %c0_3] : memref<64x128xbf16, #tpu.memory_space<vmem>>, vector<64x128xbf16>
    %c0_4 = arith.constant 0 : index
    %c0_5 = arith.constant 0 : index
    %5 = vector.load %arg4[%c0_4, %c0_5] : memref<128x512xbf16, #tpu.memory_space<vmem>>, vector<128x512xbf16>
    %cst = arith.constant dense<0.000000e+00> : vector<64x512xf32>
    %6 = tpu.matmul %4, %5, %cst {dimension_numbers = #tpu.dot_dimension_numbers<[1], [0], [0], [1], [0, 0, 1, 1], [], []>} : vector<64x128xbf16>, vector<128x512xbf16>, vector<64x512xf32> -> vector<64x512xf32>
    %7 = arith.addf %3, %6 : vector<64x512xf32>
    %c0_6 = arith.constant 0 : index
    %c0_7 = arith.constant 0 : index
    %8 = vector.load %arg7[%c0_6, %c0_7] : memref<64x512xf32, #tpu.memory_space<vmem>>, vector<64x512xf32>
    tpu.vector_store %arg7[%c0_6, %c0_7], %7 {strides = array<i32>} : memref<64x512xf32, #tpu.memory_space<vmem>>, vector<64x512xf32>,
    %c0_i32_8 = arith.constant 0 : i32
    %9 = arith.cmpi eq, %arg2, %c0_i32_8 : i32
    %10 = arith.extui %9 : i1 to i32
    %c0_i32_9 = arith.constant 0 : i32
    %11 = arith.cmpi ne, %10, %c0_i32_9 : i32
    scf.if %11 {
      %c0_10 = arith.constant 0 : index
      %c0_11 = arith.constant 0 : index
      %12 = vector.load %arg7[%c0_10, %c0_11] : memref<64x512xf32, #tpu.memory_space<vmem>>, vector<64x512xf32>
      %c0_12 = arith.constant 0 : index
      %c0_13 = arith.constant 0 : index
      %13 = vector.load %arg5[%c0_12, %c0_13] : memref<1x512xf32, #tpu.memory_space<vmem>>, vector<1x512xf32>
      %14 = vector.broadcast %13 : vector<1x512xf32> to vector<64x512xf32>
      %15 = arith.addf %12, %14 : vector<64x512xf32>
      %16 = arith.truncf %15 : vector<64x512xf32> to vector<64x512xbf16>
      %c0_14 = arith.constant 0 : index
      %c0_15 = arith.constant 0 : index
      %17 = vector.load %arg6[%c0_14, %c0_15] : memref<64x512xbf16, #tpu.memory_space<vmem>>, vector<64x512xbf16>
      tpu.vector_store %arg6[%c0_14, %c0_15], %16 {strides = array<i32>} : memref<64x512xbf16, #tpu.memory_space<vmem>>, vector<64x512xbf16>,
    } else {
    }
    return
  }
  func.func @transform_0(%arg0: i32, %arg1: i32, %arg2: i32) -> (i32, i32) {
    %c0_i32 = arith.constant 0 : i32
    return %arg0, %arg2 : i32, i32
  }
  func.func @transform_1(%arg0: i32, %arg1: i32, %arg2: i32) -> (i32, i32) {
    %c0_i32 = arith.constant 0 : i32
    return %arg2, %arg1 : i32, i32
  }
  func.func @transform_2(%arg0: i32, %arg1: i32, %arg2: i32) -> (i32, i32) {
    %c0_i32 = arith.constant 0 : i32
    %c0_i32_0 = arith.constant 0 : i32
    return %c0_i32, %arg1 : i32, i32
  }
  func.func @transform_3(%arg0: i32, %arg1: i32, %arg2: i32) -> (i32, i32) {
    %c0_i32 = arith.constant 0 : i32
    return %arg0, %arg1 : i32, i32
  }
}

module attributes {stable_mosaic.version = 11 : i64} {
  func.func @_matmul_bias_kernel(%arg0: i32, %arg1: i32, %arg2: i32, %arg3: memref<64x128xbf16, #tpu.memory_space<vmem>>, %arg4: memref<128x1024xbf16, #tpu.memory_space<vmem>>, %arg5: memref<1x1024xf32, #tpu.memory_space<vmem>>, %arg6: memref<64x1024xf32, #tpu.memory_space<vmem>>, %arg7: memref<64x1024xf32, #tpu.memory_space<vmem>>) attributes {dimension_semantics = [#tpu.dimension_semantics<parallel>, #tpu.dimension_semantics<parallel>, #tpu.dimension_semantics<arbitrary>], iteration_bounds = array<i64: 1, 1, 1>, scalar_prefetch = 0 : i64, scratch_operands = 1 : i64, tpu.core_type = #tpu.core_type<tc>, window_params = [{transform_indices = @transform_0, window_bounds = array<i64: 64, 128>}, {transform_indices = @transform_1, window_bounds = array<i64: 128, 1024>}, {transform_indices = @transform_2, window_bounds = array<i64: 1, 1024>}, {transform_indices = @transform_3, window_bounds = array<i64: 64, 1024>}]} {
    %c0_i32 = arith.constant 0 : i32
    %0 = arith.cmpi eq, %arg2, %c0_i32 : i32
    %1 = arith.extui %0 : i1 to i32
    %c0_i32_0 = arith.constant 0 : i32
    %2 = arith.cmpi ne, %1, %c0_i32_0 : i32
    scf.if %2 {
      %cst_10 = arith.constant 0.000000e+00 : f32
      %12 = vector.broadcast %cst_10 : f32 to vector<64x1024xf32>
      %c0_11 = arith.constant 0 : index
      %c0_12 = arith.constant 0 : index
      %13 = vector.load %arg7[%c0_11, %c0_12] : memref<64x1024xf32, #tpu.memory_space<vmem>>, vector<64x1024xf32>
      tpu.vector_store %arg7[%c0_11, %c0_12], %12 {strides = array<i32>} : memref<64x1024xf32, #tpu.memory_space<vmem>>, vector<64x1024xf32>,
    } else {
    }
    %c0 = arith.constant 0 : index
    %c0_1 = arith.constant 0 : index
    %3 = vector.load %arg7[%c0, %c0_1] : memref<64x1024xf32, #tpu.memory_space<vmem>>, vector<64x1024xf32>
    %c0_2 = arith.constant 0 : index
    %c0_3 = arith.constant 0 : index
    %4 = vector.load %arg3[%c0_2, %c0_3] : memref<64x128xbf16, #tpu.memory_space<vmem>>, vector<64x128xbf16>
    %c0_4 = arith.constant 0 : index
    %c0_5 = arith.constant 0 : index
    %5 = vector.load %arg4[%c0_4, %c0_5] : memref<128x1024xbf16, #tpu.memory_space<vmem>>, vector<128x1024xbf16>
    %cst = arith.constant dense<0.000000e+00> : vector<64x1024xf32>
    %6 = tpu.matmul %4, %5, %cst {dimension_numbers = #tpu.dot_dimension_numbers<[1], [0], [0], [1], [0, 0, 1, 1], [], []>} : vector<64x128xbf16>, vector<128x1024xbf16>, vector<64x1024xf32> -> vector<64x1024xf32>
    %7 = arith.addf %3, %6 : vector<64x1024xf32>
    %c0_6 = arith.constant 0 : index
    %c0_7 = arith.constant 0 : index
    %8 = vector.load %arg7[%c0_6, %c0_7] : memref<64x1024xf32, #tpu.memory_space<vmem>>, vector<64x1024xf32>
    tpu.vector_store %arg7[%c0_6, %c0_7], %7 {strides = array<i32>} : memref<64x1024xf32, #tpu.memory_space<vmem>>, vector<64x1024xf32>,
    %c0_i32_8 = arith.constant 0 : i32
    %9 = arith.cmpi eq, %arg2, %c0_i32_8 : i32
    %10 = arith.extui %9 : i1 to i32
    %c0_i32_9 = arith.constant 0 : i32
    %11 = arith.cmpi ne, %10, %c0_i32_9 : i32
    scf.if %11 {
      %c0_10 = arith.constant 0 : index
      %c0_11 = arith.constant 0 : index
      %12 = vector.load %arg7[%c0_10, %c0_11] : memref<64x1024xf32, #tpu.memory_space<vmem>>, vector<64x1024xf32>
      %c0_12 = arith.constant 0 : index
      %c0_13 = arith.constant 0 : index
      %13 = vector.load %arg5[%c0_12, %c0_13] : memref<1x1024xf32, #tpu.memory_space<vmem>>, vector<1x1024xf32>
      %14 = vector.broadcast %13 : vector<1x1024xf32> to vector<64x1024xf32>
      %15 = arith.addf %12, %14 : vector<64x1024xf32>
      %c0_14 = arith.constant 0 : index
      %c0_15 = arith.constant 0 : index
      %16 = vector.load %arg6[%c0_14, %c0_15] : memref<64x1024xf32, #tpu.memory_space<vmem>>, vector<64x1024xf32>
      tpu.vector_store %arg6[%c0_14, %c0_15], %15 {strides = array<i32>} : memref<64x1024xf32, #tpu.memory_space<vmem>>, vector<64x1024xf32>,
    } else {
    }
    return
  }
  func.func @transform_0(%arg0: i32, %arg1: i32, %arg2: i32) -> (i32, i32) {
    %c0_i32 = arith.constant 0 : i32
    return %arg0, %arg2 : i32, i32
  }
  func.func @transform_1(%arg0: i32, %arg1: i32, %arg2: i32) -> (i32, i32) {
    %c0_i32 = arith.constant 0 : i32
    return %arg2, %arg1 : i32, i32
  }
  func.func @transform_2(%arg0: i32, %arg1: i32, %arg2: i32) -> (i32, i32) {
    %c0_i32 = arith.constant 0 : i32
    %c0_i32_0 = arith.constant 0 : i32
    return %c0_i32, %arg1 : i32, i32
  }
  func.func @transform_3(%arg0: i32, %arg1: i32, %arg2: i32) -> (i32, i32) {
    %c0_i32 = arith.constant 0 : i32
    return %arg0, %arg1 : i32, i32
  }
}

module attributes {stable_mosaic.version = 11 : i64} {
  func.func @_lstm_recurrent_kernel(%arg0: i32, %arg1: i32, %arg2: memref<8x8x512xbf16, #tpu.memory_space<vmem>>, %arg3: memref<128x512xbf16, #tpu.memory_space<any>>, %arg4: memref<8x128xf32, #tpu.memory_space<vmem>>, %arg5: memref<8x128xf32, #tpu.memory_space<vmem>>, %arg6: memref<8x8x128xbf16, #tpu.memory_space<vmem>>, %arg7: memref<8x128xf32, #tpu.memory_space<vmem>>, %arg8: memref<8x128xf32, #tpu.memory_space<vmem>>, %arg9: memref<128x512xbf16, #tpu.memory_space<vmem>>, %arg10: memref<8x128xf32, #tpu.memory_space<vmem>>, %arg11: memref<8x128xf32, #tpu.memory_space<vmem>>, %arg12: memref<!tpu.dma_semaphore, #tpu.memory_space<semaphore_mem>>) attributes {dimension_semantics = [#tpu.dimension_semantics<parallel>, #tpu.dimension_semantics<arbitrary>], iteration_bounds = array<i64: 1, 1>, scalar_prefetch = 0 : i64, scratch_operands = 4 : i64, tpu.core_type = #tpu.core_type<tc>, window_params = [{transform_indices = @transform_0, window_bounds = array<i64: 8, 8, 512>}, {}, {transform_indices = @transform_2, window_bounds = array<i64: 8, 128>}, {transform_indices = @transform_3, window_bounds = array<i64: 8, 128>}, {transform_indices = @transform_4, window_bounds = array<i64: 8, 8, 128>}, {transform_indices = @transform_5, window_bounds = array<i64: 8, 128>}, {transform_indices = @transform_6, window_bounds = array<i64: 8, 128>}]} {
    %c0_i32 = arith.constant 0 : i32
    %0 = arith.cmpi eq, %arg1, %c0_i32 : i32
    %1 = arith.extui %0 : i1 to i32
    %c0_i32_0 = arith.constant 0 : i32
    %2 = arith.cmpi ne, %1, %c0_i32_0 : i32
    scf.if %2 {
      tpu.enqueue_dma source(%arg3 : memref<128x512xbf16, #tpu.memory_space<any>>) target(%arg9 : memref<128x512xbf16, #tpu.memory_space<vmem>>) target_semaphore(%arg12 : memref<!tpu.dma_semaphore, #tpu.memory_space<semaphore_mem>>)
      %c0_90 = arith.constant 0 : index
      %c0_91 = arith.constant 0 : index
      %314 = vector.load %arg4[%c0_90, %c0_91] : memref<8x128xf32, #tpu.memory_space<vmem>>, vector<8x128xf32>
      %c0_92 = arith.constant 0 : index
      %c0_93 = arith.constant 0 : index
      %315 = vector.load %arg10[%c0_92, %c0_93] : memref<8x128xf32, #tpu.memory_space<vmem>>, vector<8x128xf32>
      tpu.vector_store %arg10[%c0_92, %c0_93], %314 {strides = array<i32>} : memref<8x128xf32, #tpu.memory_space<vmem>>, vector<8x128xf32>,
      %c0_94 = arith.constant 0 : index
      %c0_95 = arith.constant 0 : index
      %316 = vector.load %arg5[%c0_94, %c0_95] : memref<8x128xf32, #tpu.memory_space<vmem>>, vector<8x128xf32>
      %c0_96 = arith.constant 0 : index
      %c0_97 = arith.constant 0 : index
      %317 = vector.load %arg11[%c0_96, %c0_97] : memref<8x128xf32, #tpu.memory_space<vmem>>, vector<8x128xf32>
      tpu.vector_store %arg11[%c0_96, %c0_97], %316 {strides = array<i32>} : memref<8x128xf32, #tpu.memory_space<vmem>>, vector<8x128xf32>,
      tpu.wait_dma2 semaphore(%arg12 : memref<!tpu.dma_semaphore, #tpu.memory_space<semaphore_mem>>) src(%arg3 : memref<128x512xbf16, #tpu.memory_space<any>>) dst(%arg9 : memref<128x512xbf16, #tpu.memory_space<vmem>>)
    } else {
    }
    %c0 = arith.constant 0 : index
    %c0_1 = arith.constant 0 : index
    %3 = vector.load %arg10[%c0, %c0_1] : memref<8x128xf32, #tpu.memory_space<vmem>>, vector<8x128xf32>
    %c0_2 = arith.constant 0 : index
    %c0_3 = arith.constant 0 : index
    %4 = vector.load %arg11[%c0_2, %c0_3] : memref<8x128xf32, #tpu.memory_space<vmem>>, vector<8x128xf32>
    %c0_i32_4 = arith.constant 0 : i32
    %5 = arith.truncf %3 : vector<8x128xf32> to vector<8x128xbf16>
    %c0_5 = arith.constant 0 : index
    %c0_6 = arith.constant 0 : index
    %6 = vector.load %arg9[%c0_5, %c0_6] : memref<128x512xbf16, #tpu.memory_space<vmem>>, vector<128x512xbf16>
    %cst = arith.constant dense<0.000000e+00> : vector<8x512xf32>
    %7 = tpu.matmul %5, %6, %cst {dimension_numbers = #tpu.dot_dimension_numbers<[1], [0], [0], [1], [0, 0, 1, 1], [], []>} : vector<8x128xbf16>, vector<128x512xbf16>, vector<8x512xf32> -> vector<8x512xf32>
    %8 = arith.index_cast %c0_i32_4 : i32 to index
    %c0_7 = arith.constant 0 : index
    %c0_8 = arith.constant 0 : index
    %9 = vector.load %arg2[%8, %c0_7, %c0_8] : memref<8x8x512xbf16, #tpu.memory_space<vmem>>, vector<1x8x512xbf16>
    %10 = vector.shape_cast %9 : vector<1x8x512xbf16> to vector<8x512xbf16>
    %11 = arith.extf %10 : vector<8x512xbf16> to vector<8x512xf32>
    %12 = arith.addf %11, %7 : vector<8x512xf32>
    %13 = vector.extract_strided_slice %12 {offsets = [0, 0], sizes = [8, 128], strides = [1, 1]} : vector<8x512xf32> to vector<8x128xf32>
    %14 = arith.negf %13 : vector<8x128xf32>
    %15 = math.exp %14 : vector<8x128xf32>
    %cst_9 = arith.constant 1.000000e+00 : f32
    %16 = vector.broadcast %cst_9 : f32 to vector<8x128xf32>
    %17 = arith.addf %16, %15 : vector<8x128xf32>
    %18 = arith.divf %16, %17 : vector<8x128xf32>
    %19 = vector.extract_strided_slice %12 {offsets = [0, 128], sizes = [8, 128], strides = [1, 1]} : vector<8x512xf32> to vector<8x128xf32>
    %20 = arith.negf %19 : vector<8x128xf32>
    %21 = math.exp %20 : vector<8x128xf32>
    %cst_10 = arith.constant 1.000000e+00 : f32
    %22 = vector.broadcast %cst_10 : f32 to vector<8x128xf32>
    %23 = arith.addf %22, %21 : vector<8x128xf32>
    %24 = arith.divf %22, %23 : vector<8x128xf32>
    %25 = vector.extract_strided_slice %12 {offsets = [0, 256], sizes = [8, 128], strides = [1, 1]} : vector<8x512xf32> to vector<8x128xf32>
    %26 = math.tanh %25 : vector<8x128xf32>
    %27 = vector.extract_strided_slice %12 {offsets = [0, 384], sizes = [8, 128], strides = [1, 1]} : vector<8x512xf32> to vector<8x128xf32>
    %28 = arith.negf %27 : vector<8x128xf32>
    %29 = math.exp %28 : vector<8x128xf32>
    %cst_11 = arith.constant 1.000000e+00 : f32
    %30 = vector.broadcast %cst_11 : f32 to vector<8x128xf32>
    %31 = arith.addf %30, %29 : vector<8x128xf32>
    %32 = arith.divf %30, %31 : vector<8x128xf32>
    %33 = arith.mulf %24, %4 : vector<8x128xf32>
    %34 = arith.mulf %18, %26 : vector<8x128xf32>
    %35 = arith.addf %33, %34 : vector<8x128xf32>
    %36 = math.tanh %35 : vector<8x128xf32>
    %37 = arith.mulf %32, %36 : vector<8x128xf32>
    %38 = arith.truncf %37 : vector<8x128xf32> to vector<8x128xbf16>
    %39 = arith.index_cast %c0_i32_4 : i32 to index
    %c0_12 = arith.constant 0 : index
    %c0_13 = arith.constant 0 : index
    %40 = vector.load %arg6[%39, %c0_12, %c0_13] : memref<8x8x128xbf16, #tpu.memory_space<vmem>>, vector<1x8x128xbf16>
    %41 = vector.shape_cast %40 : vector<1x8x128xbf16> to vector<8x128xbf16>
    %42 = vector.shape_cast %38 : vector<8x128xbf16> to vector<1x8x128xbf16>
    tpu.vector_store %arg6[%39, %c0_12, %c0_13], %42 {strides = array<i32>} : memref<8x8x128xbf16, #tpu.memory_space<vmem>>, vector<1x8x128xbf16>,
    %c1_i32 = arith.constant 1 : i32
    %43 = arith.truncf %37 : vector<8x128xf32> to vector<8x128xbf16>
    %c0_14 = arith.constant 0 : index
    %c0_15 = arith.constant 0 : index
    %44 = vector.load %arg9[%c0_14, %c0_15] : memref<128x512xbf16, #tpu.memory_space<vmem>>, vector<128x512xbf16>
    %cst_16 = arith.constant dense<0.000000e+00> : vector<8x512xf32>
    %45 = tpu.matmul %43, %44, %cst_16 {dimension_numbers = #tpu.dot_dimension_numbers<[1], [0], [0], [1], [0, 0, 1, 1], [], []>} : vector<8x128xbf16>, vector<128x512xbf16>, vector<8x512xf32> -> vector<8x512xf32>
    %46 = arith.index_cast %c1_i32 : i32 to index
    %c0_17 = arith.constant 0 : index
    %c0_18 = arith.constant 0 : index
    %47 = vector.load %arg2[%46, %c0_17, %c0_18] : memref<8x8x512xbf16, #tpu.memory_space<vmem>>, vector<1x8x512xbf16>
    %48 = vector.shape_cast %47 : vector<1x8x512xbf16> to vector<8x512xbf16>
    %49 = arith.extf %48 : vector<8x512xbf16> to vector<8x512xf32>
    %50 = arith.addf %49, %45 : vector<8x512xf32>
    %51 = vector.extract_strided_slice %50 {offsets = [0, 0], sizes = [8, 128], strides = [1, 1]} : vector<8x512xf32> to vector<8x128xf32>
    %52 = arith.negf %51 : vector<8x128xf32>
    %53 = math.exp %52 : vector<8x128xf32>
    %cst_19 = arith.constant 1.000000e+00 : f32
    %54 = vector.broadcast %cst_19 : f32 to vector<8x128xf32>
    %55 = arith.addf %54, %53 : vector<8x128xf32>
    %56 = arith.divf %54, %55 : vector<8x128xf32>
    %57 = vector.extract_strided_slice %50 {offsets = [0, 128], sizes = [8, 128], strides = [1, 1]} : vector<8x512xf32> to vector<8x128xf32>
    %58 = arith.negf %57 : vector<8x128xf32>
    %59 = math.exp %58 : vector<8x128xf32>
    %cst_20 = arith.constant 1.000000e+00 : f32
    %60 = vector.broadcast %cst_20 : f32 to vector<8x128xf32>
    %61 = arith.addf %60, %59 : vector<8x128xf32>
    %62 = arith.divf %60, %61 : vector<8x128xf32>
    %63 = vector.extract_strided_slice %50 {offsets = [0, 256], sizes = [8, 128], strides = [1, 1]} : vector<8x512xf32> to vector<8x128xf32>
    %64 = math.tanh %63 : vector<8x128xf32>
    %65 = vector.extract_strided_slice %50 {offsets = [0, 384], sizes = [8, 128], strides = [1, 1]} : vector<8x512xf32> to vector<8x128xf32>
    %66 = arith.negf %65 : vector<8x128xf32>
    %67 = math.exp %66 : vector<8x128xf32>
    %cst_21 = arith.constant 1.000000e+00 : f32
    %68 = vector.broadcast %cst_21 : f32 to vector<8x128xf32>
    %69 = arith.addf %68, %67 : vector<8x128xf32>
    %70 = arith.divf %68, %69 : vector<8x128xf32>
    %71 = arith.mulf %62, %35 : vector<8x128xf32>
    %72 = arith.mulf %56, %64 : vector<8x128xf32>
    %73 = arith.addf %71, %72 : vector<8x128xf32>
    %74 = math.tanh %73 : vector<8x128xf32>
    %75 = arith.mulf %70, %74 : vector<8x128xf32>
    %76 = arith.truncf %75 : vector<8x128xf32> to vector<8x128xbf16>
    %77 = arith.index_cast %c1_i32 : i32 to index
    %c0_22 = arith.constant 0 : index
    %c0_23 = arith.constant 0 : index
    %78 = vector.load %arg6[%77, %c0_22, %c0_23] : memref<8x8x128xbf16, #tpu.memory_space<vmem>>, vector<1x8x128xbf16>
    %79 = vector.shape_cast %78 : vector<1x8x128xbf16> to vector<8x128xbf16>
    %80 = vector.shape_cast %76 : vector<8x128xbf16> to vector<1x8x128xbf16>
    tpu.vector_store %arg6[%77, %c0_22, %c0_23], %80 {strides = array<i32>} : memref<8x8x128xbf16, #tpu.memory_space<vmem>>, vector<1x8x128xbf16>,
    %c2_i32 = arith.constant 2 : i32
    %81 = arith.truncf %75 : vector<8x128xf32> to vector<8x128xbf16>
    %c0_24 = arith.constant 0 : index
    %c0_25 = arith.constant 0 : index
    %82 = vector.load %arg9[%c0_24, %c0_25] : memref<128x512xbf16, #tpu.memory_space<vmem>>, vector<128x512xbf16>
    %cst_26 = arith.constant dense<0.000000e+00> : vector<8x512xf32>
    %83 = tpu.matmul %81, %82, %cst_26 {dimension_numbers = #tpu.dot_dimension_numbers<[1], [0], [0], [1], [0, 0, 1, 1], [], []>} : vector<8x128xbf16>, vector<128x512xbf16>, vector<8x512xf32> -> vector<8x512xf32>
    %84 = arith.index_cast %c2_i32 : i32 to index
    %c0_27 = arith.constant 0 : index
    %c0_28 = arith.constant 0 : index
    %85 = vector.load %arg2[%84, %c0_27, %c0_28] : memref<8x8x512xbf16, #tpu.memory_space<vmem>>, vector<1x8x512xbf16>
    %86 = vector.shape_cast %85 : vector<1x8x512xbf16> to vector<8x512xbf16>
    %87 = arith.extf %86 : vector<8x512xbf16> to vector<8x512xf32>
    %88 = arith.addf %87, %83 : vector<8x512xf32>
    %89 = vector.extract_strided_slice %88 {offsets = [0, 0], sizes = [8, 128], strides = [1, 1]} : vector<8x512xf32> to vector<8x128xf32>
    %90 = arith.negf %89 : vector<8x128xf32>
    %91 = math.exp %90 : vector<8x128xf32>
    %cst_29 = arith.constant 1.000000e+00 : f32
    %92 = vector.broadcast %cst_29 : f32 to vector<8x128xf32>
    %93 = arith.addf %92, %91 : vector<8x128xf32>
    %94 = arith.divf %92, %93 : vector<8x128xf32>
    %95 = vector.extract_strided_slice %88 {offsets = [0, 128], sizes = [8, 128], strides = [1, 1]} : vector<8x512xf32> to vector<8x128xf32>
    %96 = arith.negf %95 : vector<8x128xf32>
    %97 = math.exp %96 : vector<8x128xf32>
    %cst_30 = arith.constant 1.000000e+00 : f32
    %98 = vector.broadcast %cst_30 : f32 to vector<8x128xf32>
    %99 = arith.addf %98, %97 : vector<8x128xf32>
    %100 = arith.divf %98, %99 : vector<8x128xf32>
    %101 = vector.extract_strided_slice %88 {offsets = [0, 256], sizes = [8, 128], strides = [1, 1]} : vector<8x512xf32> to vector<8x128xf32>
    %102 = math.tanh %101 : vector<8x128xf32>
    %103 = vector.extract_strided_slice %88 {offsets = [0, 384], sizes = [8, 128], strides = [1, 1]} : vector<8x512xf32> to vector<8x128xf32>
    %104 = arith.negf %103 : vector<8x128xf32>
    %105 = math.exp %104 : vector<8x128xf32>
    %cst_31 = arith.constant 1.000000e+00 : f32
    %106 = vector.broadcast %cst_31 : f32 to vector<8x128xf32>
    %107 = arith.addf %106, %105 : vector<8x128xf32>
    %108 = arith.divf %106, %107 : vector<8x128xf32>
    %109 = arith.mulf %100, %73 : vector<8x128xf32>
    %110 = arith.mulf %94, %102 : vector<8x128xf32>
    %111 = arith.addf %109, %110 : vector<8x128xf32>
    %112 = math.tanh %111 : vector<8x128xf32>
    %113 = arith.mulf %108, %112 : vector<8x128xf32>
    %114 = arith.truncf %113 : vector<8x128xf32> to vector<8x128xbf16>
    %115 = arith.index_cast %c2_i32 : i32 to index
    %c0_32 = arith.constant 0 : index
    %c0_33 = arith.constant 0 : index
    %116 = vector.load %arg6[%115, %c0_32, %c0_33] : memref<8x8x128xbf16, #tpu.memory_space<vmem>>, vector<1x8x128xbf16>
    %117 = vector.shape_cast %116 : vector<1x8x128xbf16> to vector<8x128xbf16>
    %118 = vector.shape_cast %114 : vector<8x128xbf16> to vector<1x8x128xbf16>
    tpu.vector_store %arg6[%115, %c0_32, %c0_33], %118 {strides = array<i32>} : memref<8x8x128xbf16, #tpu.memory_space<vmem>>, vector<1x8x128xbf16>,
    %c3_i32 = arith.constant 3 : i32
    %119 = arith.truncf %113 : vector<8x128xf32> to vector<8x128xbf16>
    %c0_34 = arith.constant 0 : index
    %c0_35 = arith.constant 0 : index
    %120 = vector.load %arg9[%c0_34, %c0_35] : memref<128x512xbf16, #tpu.memory_space<vmem>>, vector<128x512xbf16>
    %cst_36 = arith.constant dense<0.000000e+00> : vector<8x512xf32>
    %121 = tpu.matmul %119, %120, %cst_36 {dimension_numbers = #tpu.dot_dimension_numbers<[1], [0], [0], [1], [0, 0, 1, 1], [], []>} : vector<8x128xbf16>, vector<128x512xbf16>, vector<8x512xf32> -> vector<8x512xf32>
    %122 = arith.index_cast %c3_i32 : i32 to index
    %c0_37 = arith.constant 0 : index
    %c0_38 = arith.constant 0 : index
    %123 = vector.load %arg2[%122, %c0_37, %c0_38] : memref<8x8x512xbf16, #tpu.memory_space<vmem>>, vector<1x8x512xbf16>
    %124 = vector.shape_cast %123 : vector<1x8x512xbf16> to vector<8x512xbf16>
    %125 = arith.extf %124 : vector<8x512xbf16> to vector<8x512xf32>
    %126 = arith.addf %125, %121 : vector<8x512xf32>
    %127 = vector.extract_strided_slice %126 {offsets = [0, 0], sizes = [8, 128], strides = [1, 1]} : vector<8x512xf32> to vector<8x128xf32>
    %128 = arith.negf %127 : vector<8x128xf32>
    %129 = math.exp %128 : vector<8x128xf32>
    %cst_39 = arith.constant 1.000000e+00 : f32
    %130 = vector.broadcast %cst_39 : f32 to vector<8x128xf32>
    %131 = arith.addf %130, %129 : vector<8x128xf32>
    %132 = arith.divf %130, %131 : vector<8x128xf32>
    %133 = vector.extract_strided_slice %126 {offsets = [0, 128], sizes = [8, 128], strides = [1, 1]} : vector<8x512xf32> to vector<8x128xf32>
    %134 = arith.negf %133 : vector<8x128xf32>
    %135 = math.exp %134 : vector<8x128xf32>
    %cst_40 = arith.constant 1.000000e+00 : f32
    %136 = vector.broadcast %cst_40 : f32 to vector<8x128xf32>
    %137 = arith.addf %136, %135 : vector<8x128xf32>
    %138 = arith.divf %136, %137 : vector<8x128xf32>
    %139 = vector.extract_strided_slice %126 {offsets = [0, 256], sizes = [8, 128], strides = [1, 1]} : vector<8x512xf32> to vector<8x128xf32>
    %140 = math.tanh %139 : vector<8x128xf32>
    %141 = vector.extract_strided_slice %126 {offsets = [0, 384], sizes = [8, 128], strides = [1, 1]} : vector<8x512xf32> to vector<8x128xf32>
    %142 = arith.negf %141 : vector<8x128xf32>
    %143 = math.exp %142 : vector<8x128xf32>
    %cst_41 = arith.constant 1.000000e+00 : f32
    %144 = vector.broadcast %cst_41 : f32 to vector<8x128xf32>
    %145 = arith.addf %144, %143 : vector<8x128xf32>
    %146 = arith.divf %144, %145 : vector<8x128xf32>
    %147 = arith.mulf %138, %111 : vector<8x128xf32>
    %148 = arith.mulf %132, %140 : vector<8x128xf32>
    %149 = arith.addf %147, %148 : vector<8x128xf32>
    %150 = math.tanh %149 : vector<8x128xf32>
    %151 = arith.mulf %146, %150 : vector<8x128xf32>
    %152 = arith.truncf %151 : vector<8x128xf32> to vector<8x128xbf16>
    %153 = arith.index_cast %c3_i32 : i32 to index
    %c0_42 = arith.constant 0 : index
    %c0_43 = arith.constant 0 : index
    %154 = vector.load %arg6[%153, %c0_42, %c0_43] : memref<8x8x128xbf16, #tpu.memory_space<vmem>>, vector<1x8x128xbf16>
    %155 = vector.shape_cast %154 : vector<1x8x128xbf16> to vector<8x128xbf16>
    %156 = vector.shape_cast %152 : vector<8x128xbf16> to vector<1x8x128xbf16>
    tpu.vector_store %arg6[%153, %c0_42, %c0_43], %156 {strides = array<i32>} : memref<8x8x128xbf16, #tpu.memory_space<vmem>>, vector<1x8x128xbf16>,
    %c4_i32 = arith.constant 4 : i32
    %157 = arith.truncf %151 : vector<8x128xf32> to vector<8x128xbf16>
    %c0_44 = arith.constant 0 : index
    %c0_45 = arith.constant 0 : index
    %158 = vector.load %arg9[%c0_44, %c0_45] : memref<128x512xbf16, #tpu.memory_space<vmem>>, vector<128x512xbf16>
    %cst_46 = arith.constant dense<0.000000e+00> : vector<8x512xf32>
    %159 = tpu.matmul %157, %158, %cst_46 {dimension_numbers = #tpu.dot_dimension_numbers<[1], [0], [0], [1], [0, 0, 1, 1], [], []>} : vector<8x128xbf16>, vector<128x512xbf16>, vector<8x512xf32> -> vector<8x512xf32>
    %160 = arith.index_cast %c4_i32 : i32 to index
    %c0_47 = arith.constant 0 : index
    %c0_48 = arith.constant 0 : index
    %161 = vector.load %arg2[%160, %c0_47, %c0_48] : memref<8x8x512xbf16, #tpu.memory_space<vmem>>, vector<1x8x512xbf16>
    %162 = vector.shape_cast %161 : vector<1x8x512xbf16> to vector<8x512xbf16>
    %163 = arith.extf %162 : vector<8x512xbf16> to vector<8x512xf32>
    %164 = arith.addf %163, %159 : vector<8x512xf32>
    %165 = vector.extract_strided_slice %164 {offsets = [0, 0], sizes = [8, 128], strides = [1, 1]} : vector<8x512xf32> to vector<8x128xf32>
    %166 = arith.negf %165 : vector<8x128xf32>
    %167 = math.exp %166 : vector<8x128xf32>
    %cst_49 = arith.constant 1.000000e+00 : f32
    %168 = vector.broadcast %cst_49 : f32 to vector<8x128xf32>
    %169 = arith.addf %168, %167 : vector<8x128xf32>
    %170 = arith.divf %168, %169 : vector<8x128xf32>
    %171 = vector.extract_strided_slice %164 {offsets = [0, 128], sizes = [8, 128], strides = [1, 1]} : vector<8x512xf32> to vector<8x128xf32>
    %172 = arith.negf %171 : vector<8x128xf32>
    %173 = math.exp %172 : vector<8x128xf32>
    %cst_50 = arith.constant 1.000000e+00 : f32
    %174 = vector.broadcast %cst_50 : f32 to vector<8x128xf32>
    %175 = arith.addf %174, %173 : vector<8x128xf32>
    %176 = arith.divf %174, %175 : vector<8x128xf32>
    %177 = vector.extract_strided_slice %164 {offsets = [0, 256], sizes = [8, 128], strides = [1, 1]} : vector<8x512xf32> to vector<8x128xf32>
    %178 = math.tanh %177 : vector<8x128xf32>
    %179 = vector.extract_strided_slice %164 {offsets = [0, 384], sizes = [8, 128], strides = [1, 1]} : vector<8x512xf32> to vector<8x128xf32>
    %180 = arith.negf %179 : vector<8x128xf32>
    %181 = math.exp %180 : vector<8x128xf32>
    %cst_51 = arith.constant 1.000000e+00 : f32
    %182 = vector.broadcast %cst_51 : f32 to vector<8x128xf32>
    %183 = arith.addf %182, %181 : vector<8x128xf32>
    %184 = arith.divf %182, %183 : vector<8x128xf32>
    %185 = arith.mulf %176, %149 : vector<8x128xf32>
    %186 = arith.mulf %170, %178 : vector<8x128xf32>
    %187 = arith.addf %185, %186 : vector<8x128xf32>
    %188 = math.tanh %187 : vector<8x128xf32>
    %189 = arith.mulf %184, %188 : vector<8x128xf32>
    %190 = arith.truncf %189 : vector<8x128xf32> to vector<8x128xbf16>
    %191 = arith.index_cast %c4_i32 : i32 to index
    %c0_52 = arith.constant 0 : index
    %c0_53 = arith.constant 0 : index
    %192 = vector.load %arg6[%191, %c0_52, %c0_53] : memref<8x8x128xbf16, #tpu.memory_space<vmem>>, vector<1x8x128xbf16>
    %193 = vector.shape_cast %192 : vector<1x8x128xbf16> to vector<8x128xbf16>
    %194 = vector.shape_cast %190 : vector<8x128xbf16> to vector<1x8x128xbf16>
    tpu.vector_store %arg6[%191, %c0_52, %c0_53], %194 {strides = array<i32>} : memref<8x8x128xbf16, #tpu.memory_space<vmem>>, vector<1x8x128xbf16>,
    %c5_i32 = arith.constant 5 : i32
    %195 = arith.truncf %189 : vector<8x128xf32> to vector<8x128xbf16>
    %c0_54 = arith.constant 0 : index
    %c0_55 = arith.constant 0 : index
    %196 = vector.load %arg9[%c0_54, %c0_55] : memref<128x512xbf16, #tpu.memory_space<vmem>>, vector<128x512xbf16>
    %cst_56 = arith.constant dense<0.000000e+00> : vector<8x512xf32>
    %197 = tpu.matmul %195, %196, %cst_56 {dimension_numbers = #tpu.dot_dimension_numbers<[1], [0], [0], [1], [0, 0, 1, 1], [], []>} : vector<8x128xbf16>, vector<128x512xbf16>, vector<8x512xf32> -> vector<8x512xf32>
    %198 = arith.index_cast %c5_i32 : i32 to index
    %c0_57 = arith.constant 0 : index
    %c0_58 = arith.constant 0 : index
    %199 = vector.load %arg2[%198, %c0_57, %c0_58] : memref<8x8x512xbf16, #tpu.memory_space<vmem>>, vector<1x8x512xbf16>
    %200 = vector.shape_cast %199 : vector<1x8x512xbf16> to vector<8x512xbf16>
    %201 = arith.extf %200 : vector<8x512xbf16> to vector<8x512xf32>
    %202 = arith.addf %201, %197 : vector<8x512xf32>
    %203 = vector.extract_strided_slice %202 {offsets = [0, 0], sizes = [8, 128], strides = [1, 1]} : vector<8x512xf32> to vector<8x128xf32>
    %204 = arith.negf %203 : vector<8x128xf32>
    %205 = math.exp %204 : vector<8x128xf32>
    %cst_59 = arith.constant 1.000000e+00 : f32
    %206 = vector.broadcast %cst_59 : f32 to vector<8x128xf32>
    %207 = arith.addf %206, %205 : vector<8x128xf32>
    %208 = arith.divf %206, %207 : vector<8x128xf32>
    %209 = vector.extract_strided_slice %202 {offsets = [0, 128], sizes = [8, 128], strides = [1, 1]} : vector<8x512xf32> to vector<8x128xf32>
    %210 = arith.negf %209 : vector<8x128xf32>
    %211 = math.exp %210 : vector<8x128xf32>
    %cst_60 = arith.constant 1.000000e+00 : f32
    %212 = vector.broadcast %cst_60 : f32 to vector<8x128xf32>
    %213 = arith.addf %212, %211 : vector<8x128xf32>
    %214 = arith.divf %212, %213 : vector<8x128xf32>
    %215 = vector.extract_strided_slice %202 {offsets = [0, 256], sizes = [8, 128], strides = [1, 1]} : vector<8x512xf32> to vector<8x128xf32>
    %216 = math.tanh %215 : vector<8x128xf32>
    %217 = vector.extract_strided_slice %202 {offsets = [0, 384], sizes = [8, 128], strides = [1, 1]} : vector<8x512xf32> to vector<8x128xf32>
    %218 = arith.negf %217 : vector<8x128xf32>
    %219 = math.exp %218 : vector<8x128xf32>
    %cst_61 = arith.constant 1.000000e+00 : f32
    %220 = vector.broadcast %cst_61 : f32 to vector<8x128xf32>
    %221 = arith.addf %220, %219 : vector<8x128xf32>
    %222 = arith.divf %220, %221 : vector<8x128xf32>
    %223 = arith.mulf %214, %187 : vector<8x128xf32>
    %224 = arith.mulf %208, %216 : vector<8x128xf32>
    %225 = arith.addf %223, %224 : vector<8x128xf32>
    %226 = math.tanh %225 : vector<8x128xf32>
    %227 = arith.mulf %222, %226 : vector<8x128xf32>
    %228 = arith.truncf %227 : vector<8x128xf32> to vector<8x128xbf16>
    %229 = arith.index_cast %c5_i32 : i32 to index
    %c0_62 = arith.constant 0 : index
    %c0_63 = arith.constant 0 : index
    %230 = vector.load %arg6[%229, %c0_62, %c0_63] : memref<8x8x128xbf16, #tpu.memory_space<vmem>>, vector<1x8x128xbf16>
    %231 = vector.shape_cast %230 : vector<1x8x128xbf16> to vector<8x128xbf16>
    %232 = vector.shape_cast %228 : vector<8x128xbf16> to vector<1x8x128xbf16>
    tpu.vector_store %arg6[%229, %c0_62, %c0_63], %232 {strides = array<i32>} : memref<8x8x128xbf16, #tpu.memory_space<vmem>>, vector<1x8x128xbf16>,
    %c6_i32 = arith.constant 6 : i32
    %233 = arith.truncf %227 : vector<8x128xf32> to vector<8x128xbf16>
    %c0_64 = arith.constant 0 : index
    %c0_65 = arith.constant 0 : index
    %234 = vector.load %arg9[%c0_64, %c0_65] : memref<128x512xbf16, #tpu.memory_space<vmem>>, vector<128x512xbf16>
    %cst_66 = arith.constant dense<0.000000e+00> : vector<8x512xf32>
    %235 = tpu.matmul %233, %234, %cst_66 {dimension_numbers = #tpu.dot_dimension_numbers<[1], [0], [0], [1], [0, 0, 1, 1], [], []>} : vector<8x128xbf16>, vector<128x512xbf16>, vector<8x512xf32> -> vector<8x512xf32>
    %236 = arith.index_cast %c6_i32 : i32 to index
    %c0_67 = arith.constant 0 : index
    %c0_68 = arith.constant 0 : index
    %237 = vector.load %arg2[%236, %c0_67, %c0_68] : memref<8x8x512xbf16, #tpu.memory_space<vmem>>, vector<1x8x512xbf16>
    %238 = vector.shape_cast %237 : vector<1x8x512xbf16> to vector<8x512xbf16>
    %239 = arith.extf %238 : vector<8x512xbf16> to vector<8x512xf32>
    %240 = arith.addf %239, %235 : vector<8x512xf32>
    %241 = vector.extract_strided_slice %240 {offsets = [0, 0], sizes = [8, 128], strides = [1, 1]} : vector<8x512xf32> to vector<8x128xf32>
    %242 = arith.negf %241 : vector<8x128xf32>
    %243 = math.exp %242 : vector<8x128xf32>
    %cst_69 = arith.constant 1.000000e+00 : f32
    %244 = vector.broadcast %cst_69 : f32 to vector<8x128xf32>
    %245 = arith.addf %244, %243 : vector<8x128xf32>
    %246 = arith.divf %244, %245 : vector<8x128xf32>
    %247 = vector.extract_strided_slice %240 {offsets = [0, 128], sizes = [8, 128], strides = [1, 1]} : vector<8x512xf32> to vector<8x128xf32>
    %248 = arith.negf %247 : vector<8x128xf32>
    %249 = math.exp %248 : vector<8x128xf32>
    %cst_70 = arith.constant 1.000000e+00 : f32
    %250 = vector.broadcast %cst_70 : f32 to vector<8x128xf32>
    %251 = arith.addf %250, %249 : vector<8x128xf32>
    %252 = arith.divf %250, %251 : vector<8x128xf32>
    %253 = vector.extract_strided_slice %240 {offsets = [0, 256], sizes = [8, 128], strides = [1, 1]} : vector<8x512xf32> to vector<8x128xf32>
    %254 = math.tanh %253 : vector<8x128xf32>
    %255 = vector.extract_strided_slice %240 {offsets = [0, 384], sizes = [8, 128], strides = [1, 1]} : vector<8x512xf32> to vector<8x128xf32>
    %256 = arith.negf %255 : vector<8x128xf32>
    %257 = math.exp %256 : vector<8x128xf32>
    %cst_71 = arith.constant 1.000000e+00 : f32
    %258 = vector.broadcast %cst_71 : f32 to vector<8x128xf32>
    %259 = arith.addf %258, %257 : vector<8x128xf32>
    %260 = arith.divf %258, %259 : vector<8x128xf32>
    %261 = arith.mulf %252, %225 : vector<8x128xf32>
    %262 = arith.mulf %246, %254 : vector<8x128xf32>
    %263 = arith.addf %261, %262 : vector<8x128xf32>
    %264 = math.tanh %263 : vector<8x128xf32>
    %265 = arith.mulf %260, %264 : vector<8x128xf32>
    %266 = arith.truncf %265 : vector<8x128xf32> to vector<8x128xbf16>
    %267 = arith.index_cast %c6_i32 : i32 to index
    %c0_72 = arith.constant 0 : index
    %c0_73 = arith.constant 0 : index
    %268 = vector.load %arg6[%267, %c0_72, %c0_73] : memref<8x8x128xbf16, #tpu.memory_space<vmem>>, vector<1x8x128xbf16>
    %269 = vector.shape_cast %268 : vector<1x8x128xbf16> to vector<8x128xbf16>
    %270 = vector.shape_cast %266 : vector<8x128xbf16> to vector<1x8x128xbf16>
    tpu.vector_store %arg6[%267, %c0_72, %c0_73], %270 {strides = array<i32>} : memref<8x8x128xbf16, #tpu.memory_space<vmem>>, vector<1x8x128xbf16>,
    %c7_i32 = arith.constant 7 : i32
    %271 = arith.truncf %265 : vector<8x128xf32> to vector<8x128xbf16>
    %c0_74 = arith.constant 0 : index
    %c0_75 = arith.constant 0 : index
    %272 = vector.load %arg9[%c0_74, %c0_75] : memref<128x512xbf16, #tpu.memory_space<vmem>>, vector<128x512xbf16>
    %cst_76 = arith.constant dense<0.000000e+00> : vector<8x512xf32>
    %273 = tpu.matmul %271, %272, %cst_76 {dimension_numbers = #tpu.dot_dimension_numbers<[1], [0], [0], [1], [0, 0, 1, 1], [], []>} : vector<8x128xbf16>, vector<128x512xbf16>, vector<8x512xf32> -> vector<8x512xf32>
    %274 = arith.index_cast %c7_i32 : i32 to index
    %c0_77 = arith.constant 0 : index
    %c0_78 = arith.constant 0 : index
    %275 = vector.load %arg2[%274, %c0_77, %c0_78] : memref<8x8x512xbf16, #tpu.memory_space<vmem>>, vector<1x8x512xbf16>
    %276 = vector.shape_cast %275 : vector<1x8x512xbf16> to vector<8x512xbf16>
    %277 = arith.extf %276 : vector<8x512xbf16> to vector<8x512xf32>
    %278 = arith.addf %277, %273 : vector<8x512xf32>
    %279 = vector.extract_strided_slice %278 {offsets = [0, 0], sizes = [8, 128], strides = [1, 1]} : vector<8x512xf32> to vector<8x128xf32>
    %280 = arith.negf %279 : vector<8x128xf32>
    %281 = math.exp %280 : vector<8x128xf32>
    %cst_79 = arith.constant 1.000000e+00 : f32
    %282 = vector.broadcast %cst_79 : f32 to vector<8x128xf32>
    %283 = arith.addf %282, %281 : vector<8x128xf32>
    %284 = arith.divf %282, %283 : vector<8x128xf32>
    %285 = vector.extract_strided_slice %278 {offsets = [0, 128], sizes = [8, 128], strides = [1, 1]} : vector<8x512xf32> to vector<8x128xf32>
    %286 = arith.negf %285 : vector<8x128xf32>
    %287 = math.exp %286 : vector<8x128xf32>
    %cst_80 = arith.constant 1.000000e+00 : f32
    %288 = vector.broadcast %cst_80 : f32 to vector<8x128xf32>
    %289 = arith.addf %288, %287 : vector<8x128xf32>
    %290 = arith.divf %288, %289 : vector<8x128xf32>
    %291 = vector.extract_strided_slice %278 {offsets = [0, 256], sizes = [8, 128], strides = [1, 1]} : vector<8x512xf32> to vector<8x128xf32>
    %292 = math.tanh %291 : vector<8x128xf32>
    %293 = vector.extract_strided_slice %278 {offsets = [0, 384], sizes = [8, 128], strides = [1, 1]} : vector<8x512xf32> to vector<8x128xf32>
    %294 = arith.negf %293 : vector<8x128xf32>
    %295 = math.exp %294 : vector<8x128xf32>
    %cst_81 = arith.constant 1.000000e+00 : f32
    %296 = vector.broadcast %cst_81 : f32 to vector<8x128xf32>
    %297 = arith.addf %296, %295 : vector<8x128xf32>
    %298 = arith.divf %296, %297 : vector<8x128xf32>
    %299 = arith.mulf %290, %263 : vector<8x128xf32>
    %300 = arith.mulf %284, %292 : vector<8x128xf32>
    %301 = arith.addf %299, %300 : vector<8x128xf32>
    %302 = math.tanh %301 : vector<8x128xf32>
    %303 = arith.mulf %298, %302 : vector<8x128xf32>
    %304 = arith.truncf %303 : vector<8x128xf32> to vector<8x128xbf16>
    %305 = arith.index_cast %c7_i32 : i32 to index
    %c0_82 = arith.constant 0 : index
    %c0_83 = arith.constant 0 : index
    %306 = vector.load %arg6[%305, %c0_82, %c0_83] : memref<8x8x128xbf16, #tpu.memory_space<vmem>>, vector<1x8x128xbf16>
    %307 = vector.shape_cast %306 : vector<1x8x128xbf16> to vector<8x128xbf16>
    %308 = vector.shape_cast %304 : vector<8x128xbf16> to vector<1x8x128xbf16>
    tpu.vector_store %arg6[%305, %c0_82, %c0_83], %308 {strides = array<i32>} : memref<8x8x128xbf16, #tpu.memory_space<vmem>>, vector<1x8x128xbf16>,
    %c8_i32 = arith.constant 8 : i32
    %c0_84 = arith.constant 0 : index
    %c0_85 = arith.constant 0 : index
    %309 = vector.load %arg10[%c0_84, %c0_85] : memref<8x128xf32, #tpu.memory_space<vmem>>, vector<8x128xf32>
    tpu.vector_store %arg10[%c0_84, %c0_85], %303 {strides = array<i32>} : memref<8x128xf32, #tpu.memory_space<vmem>>, vector<8x128xf32>,
    %c0_86 = arith.constant 0 : index
    %c0_87 = arith.constant 0 : index
    %310 = vector.load %arg11[%c0_86, %c0_87] : memref<8x128xf32, #tpu.memory_space<vmem>>, vector<8x128xf32>
    tpu.vector_store %arg11[%c0_86, %c0_87], %301 {strides = array<i32>} : memref<8x128xf32, #tpu.memory_space<vmem>>, vector<8x128xf32>,
    %c0_i32_88 = arith.constant 0 : i32
    %311 = arith.cmpi eq, %arg1, %c0_i32_88 : i32
    %312 = arith.extui %311 : i1 to i32
    %c0_i32_89 = arith.constant 0 : i32
    %313 = arith.cmpi ne, %312, %c0_i32_89 : i32
    scf.if %313 {
      %c0_90 = arith.constant 0 : index
      %c0_91 = arith.constant 0 : index
      %314 = vector.load %arg7[%c0_90, %c0_91] : memref<8x128xf32, #tpu.memory_space<vmem>>, vector<8x128xf32>
      tpu.vector_store %arg7[%c0_90, %c0_91], %303 {strides = array<i32>} : memref<8x128xf32, #tpu.memory_space<vmem>>, vector<8x128xf32>,
      %c0_92 = arith.constant 0 : index
      %c0_93 = arith.constant 0 : index
      %315 = vector.load %arg8[%c0_92, %c0_93] : memref<8x128xf32, #tpu.memory_space<vmem>>, vector<8x128xf32>
      tpu.vector_store %arg8[%c0_92, %c0_93], %301 {strides = array<i32>} : memref<8x128xf32, #tpu.memory_space<vmem>>, vector<8x128xf32>,
    } else {
    }
    return
  }
  func.func @transform_0(%arg0: i32, %arg1: i32) -> (i32, i32, i32) {
    %c0_i32 = arith.constant 0 : i32
    %c0_i32_0 = arith.constant 0 : i32
    return %arg1, %arg0, %c0_i32 : i32, i32, i32
  }
  func.func @transform_2(%arg0: i32, %arg1: i32) -> (i32, i32) {
    %c0_i32 = arith.constant 0 : i32
    %c0_i32_0 = arith.constant 0 : i32
    return %arg0, %c0_i32 : i32, i32
  }
  func.func @transform_3(%arg0: i32, %arg1: i32) -> (i32, i32) {
    %c0_i32 = arith.constant 0 : i32
    %c0_i32_0 = arith.constant 0 : i32
    return %arg0, %c0_i32 : i32, i32
  }
  func.func @transform_4(%arg0: i32, %arg1: i32) -> (i32, i32, i32) {
    %c0_i32 = arith.constant 0 : i32
    %c0_i32_0 = arith.constant 0 : i32
    return %arg1, %arg0, %c0_i32 : i32, i32, i32
  }
  func.func @transform_5(%arg0: i32, %arg1: i32) -> (i32, i32) {
    %c0_i32 = arith.constant 0 : i32
    %c0_i32_0 = arith.constant 0 : i32
    return %arg0, %c0_i32 : i32, i32
  }
  func.func @transform_6(%arg0: i32, %arg1: i32) -> (i32, i32) {
    %c0_i32 = arith.constant 0 : i32
    %c0_i32_0 = arith.constant 0 : i32
    return %arg0, %c0_i32 : i32, i32
  }
}

</mosaic_0001>

<llo_original>
// kernel: _forward_impl.5
$region0: #{_forward_impl.5}
  #allocation0 [shape = 'u32[]', space=smem, size = 0x4, offset = 0x4, fixed_abs, tag = 'smem constant byte address 0x4 - core index']
  #allocation1 [shape = 'u32[144,128]{1,0:T(1,128)}', space=vmem, size = 0x12000, scoped, tag = 'internal scratch']
  #allocation2 [shape = 'f32[64,512]{1,0:T(8,128)}', space=vmem, size = 0x20000, scoped, tag = 'scratch operand']
  %s0 = inlined_call_operand.vmem [shape: bf16[64,128], index: 0, kind: input, shape index: {}]
  %s1 = inlined_call_operand.vmem [shape: bf16[128,512], index: 1, kind: input, shape index: {}]
  %s2 = inlined_call_operand.vmem [shape: f32[1,512], index: 2, kind: input, shape index: {}]
  %s3 = inlined_call_operand.vmem [shape: bf16[64,512], index: 3, kind: output, shape index: {}]
  %s4 = sld [smem:[#allocation0]]
  $region30: #{_forward_impl.5} parent=0
    _
  %s6 = ssub.s32 1, %s4
  %s7 = scalar_select 0, %s6, %s4
  // Predicated region
  $region2: #{_forward_impl.5} parent=0 // pred_check
    _
  $region3: #{_forward_impl.5} parent=0 // pred_check_branch
    %9 = sbr.rel (0) target = $region5
  $region4: #{_forward_impl.5} parent=0 // pred_region
    _
  $region5: #{_forward_impl.5} parent=0 // pred_fallthru
    _
  // Predicated region
  $region6: #{_forward_impl.5} parent=0 // pred_check
    _
  $region7: #{_forward_impl.5} parent=0 // pred_check_branch
    %11 = sbr.rel (0) target = $region9
  $region8: #{_forward_impl.5} parent=0 // pred_region
    _
  $region9: #{_forward_impl.5} parent=0 // pred_fallthru
    _
  // Predicated region
  $region10: #{_forward_impl.5} parent=0 // pred_check
    _
  $region11: #{_forward_impl.5} parent=0 // pred_check_branch
    %13 = sbr.rel (0) target = $region13
  $region12: #{_forward_impl.5} parent=0 // pred_region
    _
  $region13: #{_forward_impl.5} parent=0 // pred_fallthru
    _
  %p15 = scmp.eq.s32.totalorder 0, 0
  // Predicated region
  $region14: #{_forward_impl.5} parent=0 // pred_check
    %p16 = pneg %p15
  $region15: #{_forward_impl.5} parent=0 // pred_check_branch
    %18 = sbr.rel (%p16) target = $region17
  $region16: #{_forward_impl.5} parent=0 // pred_region
    %19 = vst [vmem:[#allocation2] sm:$0xff] 0.0
    %20 = vst [vmem:[#allocation2 + $0x8] sm:$0xff] 0.0
    %21 = vst [vmem:[#allocation2 + $0x10] sm:$0xff] 0.0
    %22 = vst [vmem:[#allocation2 + $0x18] sm:$0xff] 0.0
    %23 = vst [vmem:[#allocation2 + $0x20] sm:$0xff] 0.0
    %24 = vst [vmem:[#allocation2 + $0x28] sm:$0xff] 0.0
    %25 = vst [vmem:[#allocation2 + $0x30] sm:$0xff] 0.0
    %26 = vst [vmem:[#allocation2 + $0x38] sm:$0xff] 0.0
    %27 = vst [vmem:[#allocation2 + $0x40] sm:$0xff] 0.0
    %28 = vst [vmem:[#allocation2 + $0x48] sm:$0xff] 0.0
    %29 = vst [vmem:[#allocation2 + $0x50] sm:$0xff] 0.0
    %30 = vst [vmem:[#allocation2 + $0x58] sm:$0xff] 0.0
    %31 = vst [vmem:[#allocation2 + $0x60] sm:$0xff] 0.0
    %32 = vst [vmem:[#allocation2 + $0x68] sm:$0xff] 0.0
    %33 = vst [vmem:[#allocation2 + $0x70] sm:$0xff] 0.0
    %34 = vst [vmem:[#allocation2 + $0x78] sm:$0xff] 0.0
    %35 = vst [vmem:[#allocation2 + $0x80] sm:$0xff] 0.0
    %36 = vst [vmem:[#allocation2 + $0x88] sm:$0xff] 0.0
    %37 = vst [vmem:[#allocation2 + $0x90] sm:$0xff] 0.0
    %38 = vst [vmem:[#allocation2 + $0x98] sm:$0xff] 0.0
    %39 = vst [vmem:[#allocation2 + $0xa0] sm:$0xff] 0.0
    %40 = vst [vmem:[#allocation2 + $0xa8] sm:$0xff] 0.0
    %41 = vst [vmem:[#allocation2 + $0xb0] sm:$0xff] 0.0
    %42 = vst [vmem:[#allocation2 + $0xb8] sm:$0xff] 0.0
    %43 = vst [vmem:[#allocation2 + $0xc0] sm:$0xff] 0.0
    %44 = vst [vmem:[#allocation2 + $0xc8] sm:$0xff] 0.0
    %45 = vst [vmem:[#allocation2 + $0xd0] sm:$0xff] 0.0
    %46 = vst [vmem:[#allocation2 + $0xd8] sm:$0xff] 0.0
    %47 = vst [vmem:[#allocation2 + $0xe0] sm:$0xff] 0.0
    %48 = vst [vmem:[#allocation2 + $0xe8] sm:$0xff] 0.0
    %49 = vst [vmem:[#allocation2 + $0xf0] sm:$0xff] 0.0
    %50 = vst [vmem:[#allocation2 + $0xf8] sm:$0xff] 0.0
  $region17: #{_forward_impl.5} parent=0 // pred_fallthru
    _
  %v51 = vld [vmem:[#allocation2] sm:$0xff]
  %v52 = vld [vmem:[#allocation2 + $0x8] sm:$0xff]
  %v53 = vld [vmem:[#allocation2 + $0x10] sm:$0xff]
  %v54 = vld [vmem:[#allocation2 + $0x18] sm:$0xff]
  %v55 = vld [vmem:[#allocation2 + $0x20] sm:$0xff]
  %v56 = vld [vmem:[#allocation2 + $0x28] sm:$0xff]
  %v57 = vld [vmem:[#allocation2 + $0x30] sm:$0xff]
  %v58 = vld [vmem:[#allocation2 + $0x38] sm:$0xff]
  %v59 = vld [vmem:[#allocation2 + $0x40] sm:$0xff]
  %v60 = vld [vmem:[#allocation2 + $0x48] sm:$0xff]
  %v61 = vld [vmem:[#allocation2 + $0x50] sm:$0xff]
  %v62 = vld [vmem:[#allocation2 + $0x58] sm:$0xff]
  %v63 = vld [vmem:[#allocation2 + $0x60] sm:$0xff]
  %v64 = vld [vmem:[#allocation2 + $0x68] sm:$0xff]
  %v65 = vld [vmem:[#allocation2 + $0x70] sm:$0xff]
  %v66 = vld [vmem:[#allocation2 + $0x78] sm:$0xff]
  %v67 = vld [vmem:[#allocation2 + $0x80] sm:$0xff]
  %v68 = vld [vmem:[#allocation2 + $0x88] sm:$0xff]
  %v69 = vld [vmem:[#allocation2 + $0x90] sm:$0xff]
  %v70 = vld [vmem:[#allocation2 + $0x98] sm:$0xff]
  %v71 = vld [vmem:[#allocation2 + $0xa0] sm:$0xff]
  %v72 = vld [vmem:[#allocation2 + $0xa8] sm:$0xff]
  %v73 = vld [vmem:[#allocation2 + $0xb0] sm:$0xff]
  %v74 = vld [vmem:[#allocation2 + $0xb8] sm:$0xff]
  %v75 = vld [vmem:[#allocation2 + $0xc0] sm:$0xff]
  %v76 = vld [vmem:[#allocation2 + $0xc8] sm:$0xff]
  %v77 = vld [vmem:[#allocation2 + $0xd0] sm:$0xff]
  %v78 = vld [vmem:[#allocation2 + $0xd8] sm:$0xff]
  %v79 = vld [vmem:[#allocation2 + $0xe0] sm:$0xff]
  %v80 = vld [vmem:[#allocation2 + $0xe8] sm:$0xff]
  %v81 = vld [vmem:[#allocation2 + $0xf0] sm:$0xff]
  %v82 = vld [vmem:[#allocation2 + $0xf8] sm:$0xff]
  %v83 = vld [vmem:[%s0] sm:$0xf]
  %v84 = vld [vmem:[%s0 + $0x4] sm:$0xf]
  %v85 = vld [vmem:[%s0 + $0x8] sm:$0xf]
  %v86 = vld [vmem:[%s0 + $0xc] sm:$0xf]
  %v87 = vld [vmem:[%s0 + $0x10] sm:$0xf]
  %v88 = vld [vmem:[%s0 + $0x14] sm:$0xf]
  %v89 = vld [vmem:[%s0 + $0x18] sm:$0xf]
  %v90 = vld [vmem:[%s0 + $0x1c] sm:$0xf]
  %v91 = vld [vmem:[%s1] sm:$0xff]
  %v92 = vld [vmem:[%s1 + $0x8] sm:$0xff]
  %v93 = vld [vmem:[%s1 + $0x10] sm:$0xff]
  %v94 = vld [vmem:[%s1 + $0x18] sm:$0xff]
  %v95 = vld [vmem:[%s1 + $0x20] sm:$0xff]
  %v96 = vld [vmem:[%s1 + $0x28] sm:$0xff]
  %v97 = vld [vmem:[%s1 + $0x30] sm:$0xff]
  %v98 = vld [vmem:[%s1 + $0x38] sm:$0xff]
  %v99 = vld [vmem:[%s1 + $0x40] sm:$0xff]
  %v100 = vld [vmem:[%s1 + $0x48] sm:$0xff]
  %v101 = vld [vmem:[%s1 + $0x50] sm:$0xff]
  %v102 = vld [vmem:[%s1 + $0x58] sm:$0xff]
  %v103 = vld [vmem:[%s1 + $0x60] sm:$0xff]
  %v104 = vld [vmem:[%s1 + $0x68] sm:$0xff]
  %v105 = vld [vmem:[%s1 + $0x70] sm:$0xff]
  %v106 = vld [vmem:[%s1 + $0x78] sm:$0xff]
  %v107 = vld [vmem:[%s1 + $0x80] sm:$0xff]
  %v108 = vld [vmem:[%s1 + $0x88] sm:$0xff]
  %v109 = vld [vmem:[%s1 + $0x90] sm:$0xff]
  %v110 = vld [vmem:[%s1 + $0x98] sm:$0xff]
  %v111 = vld [vmem:[%s1 + $0xa0] sm:$0xff]
  %v112 = vld [vmem:[%s1 + $0xa8] sm:$0xff]
  %v113 = vld [vmem:[%s1 + $0xb0] sm:$0xff]
  %v114 = vld [vmem:[%s1 + $0xb8] sm:$0xff]
  %v115 = vld [vmem:[%s1 + $0xc0] sm:$0xff]
  %v116 = vld [vmem:[%s1 + $0xc8] sm:$0xff]
  %v117 = vld [vmem:[%s1 + $0xd0] sm:$0xff]
  %v118 = vld [vmem:[%s1 + $0xd8] sm:$0xff]
  %v119 = vld [vmem:[%s1 + $0xe0] sm:$0xff]
  %v120 = vld [vmem:[%s1 + $0xe8] sm:$0xff]
  %v121 = vld [vmem:[%s1 + $0xf0] sm:$0xff]
  %v122 = vld [vmem:[%s1 + $0xf8] sm:$0xff]
  %v131 = vunpack.c.l.b16 %v83
  %v132 = vunpack.c.l.b16 %v84
  %v133 = vunpack.c.l.b16 %v85
  %v134 = vunpack.c.l.b16 %v86
  %v135 = vunpack.c.l.b16 %v87
  %v136 = vunpack.c.l.b16 %v88
  %v137 = vunpack.c.l.b16 %v89
  %v138 = vunpack.c.l.b16 %v90
  %v139 = vpack.c.b16 %v132, %v131
  %v140 = vpack.c.b16 %v134, %v133
  %v141 = vpack.c.b16 %v136, %v135
  %v142 = vpack.c.b16 %v138, %v137
  %v179 = vunpack.c.l.b16 %v91
  %v180 = vunpack.c.h.b16 %v91
  %v181 = vunpack.c.l.b16 %v92
  %v182 = vunpack.c.h.b16 %v92
  %v183 = vunpack.c.l.b16 %v93
  %v184 = vunpack.c.h.b16 %v93
  %v185 = vunpack.c.l.b16 %v94
  %v186 = vunpack.c.h.b16 %v94
  %v187 = vunpack.c.l.b16 %v95
  %v188 = vunpack.c.h.b16 %v95
  %v189 = vunpack.c.l.b16 %v96
  %v190 = vunpack.c.h.b16 %v96
  %v191 = vunpack.c.l.b16 %v97
  %v192 = vunpack.c.h.b16 %v97
  %v193 = vunpack.c.l.b16 %v98
  %v194 = vunpack.c.h.b16 %v98
  %v195 = vunpack.c.l.b16 %v99
  %v196 = vunpack.c.h.b16 %v99
  %v197 = vunpack.c.l.b16 %v100
  %v198 = vunpack.c.h.b16 %v100
  %v199 = vunpack.c.l.b16 %v101
  %v200 = vunpack.c.h.b16 %v101
  %v201 = vunpack.c.l.b16 %v102
  %v202 = vunpack.c.h.b16 %v102
  %v203 = vunpack.c.l.b16 %v103
  %v204 = vunpack.c.h.b16 %v103
  %v205 = vunpack.c.l.b16 %v104
  %v206 = vunpack.c.h.b16 %v104
  %v207 = vunpack.c.l.b16 %v105
  %v208 = vunpack.c.h.b16 %v105
  %v209 = vunpack.c.l.b16 %v106
  %v210 = vunpack.c.h.b16 %v106
  %v211 = vunpack.c.l.b16 %v107
  %v212 = vunpack.c.h.b16 %v107
  %v213 = vunpack.c.l.b16 %v108
  %v214 = vunpack.c.h.b16 %v108
  %v215 = vunpack.c.l.b16 %v109
  %v216 = vunpack.c.h.b16 %v109
  %v217 = vunpack.c.l.b16 %v110
  %v218 = vunpack.c.h.b16 %v110
  %v219 = vunpack.c.l.b16 %v111
  %v220 = vunpack.c.h.b16 %v111
  %v221 = vunpack.c.l.b16 %v112
  %v222 = vunpack.c.h.b16 %v112
  %v223 = vunpack.c.l.b16 %v113
  %v224 = vunpack.c.h.b16 %v113
  %v225 = vunpack.c.l.b16 %v114
  %v226 = vunpack.c.h.b16 %v114
  %v227 = vunpack.c.l.b16 %v115
  %v228 = vunpack.c.h.b16 %v115
  %v229 = vunpack.c.l.b16 %v116
  %v230 = vunpack.c.h.b16 %v116
  %v231 = vunpack.c.l.b16 %v117
  %v232 = vunpack.c.h.b16 %v117
  %v233 = vunpack.c.l.b16 %v118
  %v234 = vunpack.c.h.b16 %v118
  %v235 = vunpack.c.l.b16 %v119
  %v236 = vunpack.c.h.b16 %v119
  %v237 = vunpack.c.l.b16 %v120
  %v238 = vunpack.c.h.b16 %v120
  %v239 = vunpack.c.l.b16 %v121
  %v240 = vunpack.c.h.b16 %v121
  %v241 = vunpack.c.l.b16 %v122
  %v242 = vunpack.c.h.b16 %v122
  %v243 = vpack.c.b16 %v183, %v179
  %v244 = vpack.c.b16 %v184, %v180
  %v245 = vpack.c.b16 %v185, %v181
  %v246 = vpack.c.b16 %v186, %v182
  %v247 = vpack.c.b16 %v191, %v187
  %v248 = vpack.c.b16 %v192, %v188
  %v249 = vpack.c.b16 %v193, %v189
  %v250 = vpack.c.b16 %v194, %v190
  %v251 = vpack.c.b16 %v199, %v195
  %v252 = vpack.c.b16 %v200, %v196
  %v253 = vpack.c.b16 %v201, %v197
  %v254 = vpack.c.b16 %v202, %v198
  %v255 = vpack.c.b16 %v207, %v203
  %v256 = vpack.c.b16 %v208, %v204
  %v257 = vpack.c.b16 %v209, %v205
  %v258 = vpack.c.b16 %v210, %v206
  %v259 = vpack.c.b16 %v215, %v211
  %v260 = vpack.c.b16 %v216, %v212
  %v261 = vpack.c.b16 %v217, %v213
  %v262 = vpack.c.b16 %v218, %v214
  %v263 = vpack.c.b16 %v223, %v219
  %v264 = vpack.c.b16 %v224, %v220
  %v265 = vpack.c.b16 %v225, %v221
  %v266 = vpack.c.b16 %v226, %v222
  %v267 = vpack.c.b16 %v231, %v227
  %v268 = vpack.c.b16 %v232, %v228
  %v269 = vpack.c.b16 %v233, %v229
  %v270 = vpack.c.b16 %v234, %v230
  %v271 = vpack.c.b16 %v239, %v235
  %v272 = vpack.c.b16 %v240, %v236
  %v273 = vpack.c.b16 %v241, %v237
  %v274 = vpack.c.b16 %v242, %v238
  %307 = vmatprep.subr.bf16.mxu0 %v244
  %308 = vmatpush1.bf16.msra.mxu0 %v243
  %309 = vmatprep.subr.bf16.mxu0 %v248
  %310 = vmatpush1.bf16.msra.mxu0 %v247
  %311 = vmatprep.subr.bf16.mxu0 %v252
  %312 = vmatpush1.bf16.msra.mxu0 %v251
  %313 = vmatprep.subr.bf16.mxu0 %v256
  %314 = vmatpush1.bf16.msra.mxu0 %v255
  %315 = vmatprep.subr.bf16.mxu0 %v260
  %316 = vmatpush1.bf16.msra.mxu0 %v259
  %317 = vmatprep.subr.bf16.mxu0 %v264
  %318 = vmatpush1.bf16.msra.mxu0 %v263
  %319 = vmatprep.subr.bf16.mxu0 %v268
  %320 = vmatpush1.bf16.msra.mxu0 %v267
  %321 = vmatprep.subr.bf16.mxu0 %v272
  %322 = vmatpush1.bf16.msra.mxu0 %v271
  %323 = vmatprep.subr.bf16.mxu0 0
  %324 = vmatpush1.bf16.msra.mxu0 0
  %325 = vmatprep.subr.bf16.mxu0 0
  %326 = vmatpush1.bf16.msra.mxu0 0
  %327 = vmatprep.subr.bf16.mxu0 0
  %328 = vmatpush1.bf16.msra.mxu0 0
  %329 = vmatprep.subr.bf16.mxu0 0
  %330 = vmatpush1.bf16.msra.mxu0 0
  %331 = vmatprep.subr.bf16.mxu0 0
  %332 = vmatpush1.bf16.msra.mxu0 0
  %333 = vmatprep.subr.bf16.mxu0 0
  %334 = vmatpush1.bf16.msra.mxu0 0
  %335 = vmatprep.subr.bf16.mxu0 0
  %336 = vmatpush1.bf16.msra.mxu0 0
  %337 = vmatprep.subr.bf16.mxu0 0
  %338 = vmatpush1.bf16.msra.mxu0 0
  %339 = vmatprep.mubr.bf16.mxu0 0
  %340 = vmatmul.mubr.bf16.gmra.mrb[0].mxu0 %v139
  %v341 = vpop.f32.mrb[0].mxu0
  %v342 = vadd.f32 0.0, %v341
  %v343 = vpop.f32.mrb[0].mxu0
  %v344 = vadd.f32 0.0, %v343
  %v345 = vpop.f32.mrb[0].mxu0
  %v346 = vadd.f32 0.0, %v345
  %v347 = vpop.f32.mrb[0].mxu0
  %v348 = vadd.f32 0.0, %v347
  %349 = vmatprep.mubr.bf16.mxu0 0
  %350 = vmatmul.mubr.bf16.gmra.mrb[0].mxu0 %v140
  %v351 = vpop.f32.mrb[0].mxu0
  %v352 = vadd.f32 0.0, %v351
  %v353 = vpop.f32.mrb[0].mxu0
  %v354 = vadd.f32 0.0, %v353
  %v355 = vpop.f32.mrb[0].mxu0
  %v356 = vadd.f32 0.0, %v355
  %v357 = vpop.f32.mrb[0].mxu0
  %v358 = vadd.f32 0.0, %v357
  %359 = vmatprep.mubr.bf16.mxu0 0
  %360 = vmatmul.mubr.bf16.gmra.mrb[0].mxu0 %v141
  %v361 = vpop.f32.mrb[0].mxu0
  %v362 = vadd.f32 0.0, %v361
  %v363 = vpop.f32.mrb[0].mxu0
  %v364 = vadd.f32 0.0, %v363
  %v365 = vpop.f32.mrb[0].mxu0
  %v366 = vadd.f32 0.0, %v365
  %v367 = vpop.f32.mrb[0].mxu0
  %v368 = vadd.f32 0.0, %v367
  %369 = vmatprep.mubr.bf16.mxu0 0
  %370 = vmatmul.mubr.bf16.gmra.mrb[0].mxu0 %v142
  %v371 = vpop.f32.mrb[0].mxu0
  %v372 = vadd.f32 0.0, %v371
  %v373 = vpop.f32.mrb[0].mxu0
  %v374 = vadd.f32 0.0, %v373
  %v375 = vpop.f32.mrb[0].mxu0
  %v376 = vadd.f32 0.0, %v375
  %v377 = vpop.f32.mrb[0].mxu0
  %v378 = vadd.f32 0.0, %v377
  %379 = vdwg.mxu0
  %380 = vmatprep.subr.bf16.mxu0 %v246
  %381 = vmatpush1.bf16.msra.mxu0 %v245
  %382 = vmatprep.subr.bf16.mxu0 %v250
  %383 = vmatpush1.bf16.msra.mxu0 %v249
  %384 = vmatprep.subr.bf16.mxu0 %v254
  %385 = vmatpush1.bf16.msra.mxu0 %v253
  %386 = vmatprep.subr.bf16.mxu0 %v258
  %387 = vmatpush1.bf16.msra.mxu0 %v257
  %388 = vmatprep.subr.bf16.mxu0 %v262
  %389 = vmatpush1.bf16.msra.mxu0 %v261
  %390 = vmatprep.subr.bf16.mxu0 %v266
  %391 = vmatpush1.bf16.msra.mxu0 %v265
  %392 = vmatprep.subr.bf16.mxu0 %v270
  %393 = vmatpush1.bf16.msra.mxu0 %v269
  %394 = vmatprep.subr.bf16.mxu0 %v274
  %395 = vmatpush1.bf16.msra.mxu0 %v273
  %396 = vmatprep.subr.bf16.mxu0 0
  %397 = vmatpush1.bf16.msra.mxu0 0
  %398 = vmatprep.subr.bf16.mxu0 0
  %399 = vmatpush1.bf16.msra.mxu0 0
  %400 = vmatprep.subr.bf16.mxu0 0
  %401 = vmatpush1.bf16.msra.mxu0 0
  %402 = vmatprep.subr.bf16.mxu0 0
  %403 = vmatpush1.bf16.msra.mxu0 0
  %404 = vmatprep.subr.bf16.mxu0 0
  %405 = vmatpush1.bf16.msra.mxu0 0
  %406 = vmatprep.subr.bf16.mxu0 0
  %407 = vmatpush1.bf16.msra.mxu0 0
  %408 = vmatprep.subr.bf16.mxu0 0
  %409 = vmatpush1.bf16.msra.mxu0 0
  %410 = vmatprep.subr.bf16.mxu0 0
  %411 = vmatpush1.bf16.msra.mxu0 0
  %412 = vmatprep.mubr.bf16.mxu0 0
  %413 = vmatmul.mubr.bf16.gmra.mrb[0].mxu0 %v139
  %v414 = vpop.f32.mrb[0].mxu0
  %v415 = vadd.f32 0.0, %v414
  %v416 = vpop.f32.mrb[0].mxu0
  %v417 = vadd.f32 0.0, %v416
  %v418 = vpop.f32.mrb[0].mxu0
  %v419 = vadd.f32 0.0, %v418
  %v420 = vpop.f32.mrb[0].mxu0
  %v421 = vadd.f32 0.0, %v420
  %422 = vmatprep.mubr.bf16.mxu0 0
  %423 = vmatmul.mubr.bf16.gmra.mrb[0].mxu0 %v140
  %v424 = vpop.f32.mrb[0].mxu0
  %v425 = vadd.f32 0.0, %v424
  %v426 = vpop.f32.mrb[0].mxu0
  %v427 = vadd.f32 0.0, %v426
  %v428 = vpop.f32.mrb[0].mxu0
  %v429 = vadd.f32 0.0, %v428
  %v430 = vpop.f32.mrb[0].mxu0
  %v431 = vadd.f32 0.0, %v430
  %432 = vmatprep.mubr.bf16.mxu0 0
  %433 = vmatmul.mubr.bf16.gmra.mrb[0].mxu0 %v141
  %v434 = vpop.f32.mrb[0].mxu0
  %v435 = vadd.f32 0.0, %v434
  %v436 = vpop.f32.mrb[0].mxu0
  %v437 = vadd.f32 0.0, %v436
  %v438 = vpop.f32.mrb[0].mxu0
  %v439 = vadd.f32 0.0, %v438
  %v440 = vpop.f32.mrb[0].mxu0
  %v441 = vadd.f32 0.0, %v440
  %442 = vmatprep.mubr.bf16.mxu0 0
  %443 = vmatmul.mubr.bf16.gmra.mrb[0].mxu0 %v142
  %v444 = vpop.f32.mrb[0].mxu0
  %v445 = vadd.f32 0.0, %v444
  %v446 = vpop.f32.mrb[0].mxu0
  %v447 = vadd.f32 0.0, %v446
  %v448 = vpop.f32.mrb[0].mxu0
  %v449 = vadd.f32 0.0, %v448
  %v450 = vpop.f32.mrb[0].mxu0
  %v451 = vadd.f32 0.0, %v450
  %452 = vdwg.mxu0
  %v453 = vadd.f32 %v51, %v342
  %v454 = vadd.f32 %v52, %v344
  %v455 = vadd.f32 %v53, %v415
  %v456 = vadd.f32 %v54, %v417
  %v457 = vadd.f32 %v55, %v346
  %v458 = vadd.f32 %v56, %v348
  %v459 = vadd.f32 %v57, %v419
  %v460 = vadd.f32 %v58, %v421
  %v461 = vadd.f32 %v59, %v352
  %v462 = vadd.f32 %v60, %v354
  %v463 = vadd.f32 %v61, %v425
  %v464 = vadd.f32 %v62, %v427
  %v465 = vadd.f32 %v63, %v356
  %v466 = vadd.f32 %v64, %v358
  %v467 = vadd.f32 %v65, %v429
  %v468 = vadd.f32 %v66, %v431
  %v469 = vadd.f32 %v67, %v362
  %v470 = vadd.f32 %v68, %v364
  %v471 = vadd.f32 %v69, %v435
  %v472 = vadd.f32 %v70, %v437
  %v473 = vadd.f32 %v71, %v366
  %v474 = vadd.f32 %v72, %v368
  %v475 = vadd.f32 %v73, %v439
  %v476 = vadd.f32 %v74, %v441
  %v477 = vadd.f32 %v75, %v372
  %v478 = vadd.f32 %v76, %v374
  %v479 = vadd.f32 %v77, %v445
  %v480 = vadd.f32 %v78, %v447
  %v481 = vadd.f32 %v79, %v376
  %v482 = vadd.f32 %v80, %v378
  %v483 = vadd.f32 %v81, %v449
  %v484 = vadd.f32 %v82, %v451
  %485 = vst [vmem:[#allocation2] sm:$0xff] %v453
  %486 = vst [vmem:[#allocation2 + $0x8] sm:$0xff] %v454
  %487 = vst [vmem:[#allocation2 + $0x10] sm:$0xff] %v455
  %488 = vst [vmem:[#allocation2 + $0x18] sm:$0xff] %v456
  %489 = vst [vmem:[#allocation2 + $0x20] sm:$0xff] %v457
  %490 = vst [vmem:[#allocation2 + $0x28] sm:$0xff] %v458
  %491 = vst [vmem:[#allocation2 + $0x30] sm:$0xff] %v459
  %492 = vst [vmem:[#allocation2 + $0x38] sm:$0xff] %v460
  %493 = vst [vmem:[#allocation2 + $0x40] sm:$0xff] %v461
  %494 = vst [vmem:[#allocation2 + $0x48] sm:$0xff] %v462
  %495 = vst [vmem:[#allocation2 + $0x50] sm:$0xff] %v463
  %496 = vst [vmem:[#allocation2 + $0x58] sm:$0xff] %v464
  %497 = vst [vmem:[#allocation2 + $0x60] sm:$0xff] %v465
  %498 = vst [vmem:[#allocation2 + $0x68] sm:$0xff] %v466
  %499 = vst [vmem:[#allocation2 + $0x70] sm:$0xff] %v467
  %500 = vst [vmem:[#allocation2 + $0x78] sm:$0xff] %v468
  %501 = vst [vmem:[#allocation2 + $0x80] sm:$0xff] %v469
  %502 = vst [vmem:[#allocation2 + $0x88] sm:$0xff] %v470
  %503 = vst [vmem:[#allocation2 + $0x90] sm:$0xff] %v471
  %504 = vst [vmem:[#allocation2 + $0x98] sm:$0xff] %v472
  %505 = vst [vmem:[#allocation2 + $0xa0] sm:$0xff] %v473
  %506 = vst [vmem:[#allocation2 + $0xa8] sm:$0xff] %v474
  %507 = vst [vmem:[#allocation2 + $0xb0] sm:$0xff] %v475
  %508 = vst [vmem:[#allocation2 + $0xb8] sm:$0xff] %v476
  %509 = vst [vmem:[#allocation2 + $0xc0] sm:$0xff] %v477
  %510 = vst [vmem:[#allocation2 + $0xc8] sm:$0xff] %v478
  %511 = vst [vmem:[#allocation2 + $0xd0] sm:$0xff] %v479
  %512 = vst [vmem:[#allocation2 + $0xd8] sm:$0xff] %v480
  %513 = vst [vmem:[#allocation2 + $0xe0] sm:$0xff] %v481
  %514 = vst [vmem:[#allocation2 + $0xe8] sm:$0xff] %v482
  %515 = vst [vmem:[#allocation2 + $0xf0] sm:$0xff] %v483
  %516 = vst [vmem:[#allocation2 + $0xf8] sm:$0xff] %v484
  // Predicated region
  $region18: #{_forward_impl.5} parent=0 // pred_check
    %p517 = pneg %p15
  $region19: #{_forward_impl.5} parent=0 // pred_check_branch
    %519 = sbr.rel (%p517) target = $region21
  $region20: #{_forward_impl.5} parent=0 // pred_region
    %v520 = vld [vmem:[#allocation2] sm:$0xff]
    %v521 = vld [vmem:[#allocation2 + $0x8] sm:$0xff]
    %v522 = vld [vmem:[#allocation2 + $0x10] sm:$0xff]
    %v523 = vld [vmem:[#allocation2 + $0x18] sm:$0xff]
    %v524 = vld [vmem:[#allocation2 + $0x20] sm:$0xff]
    %v525 = vld [vmem:[#allocation2 + $0x28] sm:$0xff]
    %v526 = vld [vmem:[#allocation2 + $0x30] sm:$0xff]
    %v527 = vld [vmem:[#allocation2 + $0x38] sm:$0xff]
    %v528 = vld [vmem:[#allocation2 + $0x40] sm:$0xff]
    %v529 = vld [vmem:[#allocation2 + $0x48] sm:$0xff]
    %v530 = vld [vmem:[#allocation2 + $0x50] sm:$0xff]
    %v531 = vld [vmem:[#allocation2 + $0x58] sm:$0xff]
    %v532 = vld [vmem:[#allocation2 + $0x60] sm:$0xff]
    %v533 = vld [vmem:[#allocation2 + $0x68] sm:$0xff]
    %v534 = vld [vmem:[#allocation2 + $0x70] sm:$0xff]
    %v535 = vld [vmem:[#allocation2 + $0x78] sm:$0xff]
    %v536 = vld [vmem:[#allocation2 + $0x80] sm:$0xff]
    %v537 = vld [vmem:[#allocation2 + $0x88] sm:$0xff]
    %v538 = vld [vmem:[#allocation2 + $0x90] sm:$0xff]
    %v539 = vld [vmem:[#allocation2 + $0x98] sm:$0xff]
    %v540 = vld [vmem:[#allocation2 + $0xa0] sm:$0xff]
    %v541 = vld [vmem:[#allocation2 + $0xa8] sm:$0xff]
    %v542 = vld [vmem:[#allocation2 + $0xb0] sm:$0xff]
    %v543 = vld [vmem:[#allocation2 + $0xb8] sm:$0xff]
    %v544 = vld [vmem:[#allocation2 + $0xc0] sm:$0xff]
    %v545 = vld [vmem:[#allocation2 + $0xc8] sm:$0xff]
    %v546 = vld [vmem:[#allocation2 + $0xd0] sm:$0xff]
    %v547 = vld [vmem:[#allocation2 + $0xd8] sm:$0xff]
    %v548 = vld [vmem:[#allocation2 + $0xe0] sm:$0xff]
    %v549 = vld [vmem:[#allocation2 + $0xe8] sm:$0xff]
    %v550 = vld [vmem:[#allocation2 + $0xf0] sm:$0xff]
    %v551 = vld [vmem:[#allocation2 + $0xf8] sm:$0xff]
    %v552 = vld [vmem:[%s2] sm:$0xf]
    %v554 = vlaneseq
    %v555 = vshrl.u32 %v554, 7
    %v556 = vsub.s32 0, %v555
    %v557 = vrot.slane %v552, %v556
    %v558 = vlaneseq
    %v559 = vshrl.u32 %v558, 7
    %v560 = vsub.s32 1, %v559
    %v561 = vrot.slane %v552, %v560
    %v562 = vlaneseq
    %v563 = vshrl.u32 %v562, 7
    %v564 = vsub.s32 2, %v563
    %v565 = vrot.slane %v552, %v564
    %v566 = vlaneseq
    %v567 = vshrl.u32 %v566, 7
    %v568 = vsub.s32 3, %v567
    %v569 = vrot.slane %v552, %v568
    %v574 = vadd.f32 %v520, %v557
    %v575 = vadd.f32 %v521, %v561
    %v576 = vadd.f32 %v522, %v565
    %v577 = vadd.f32 %v523, %v569
    %v578 = vadd.f32 %v524, %v557
    %v579 = vadd.f32 %v525, %v561
    %v580 = vadd.f32 %v526, %v565
    %v581 = vadd.f32 %v527, %v569
    %v582 = vadd.f32 %v528, %v557
    %v583 = vadd.f32 %v529, %v561
    %v584 = vadd.f32 %v530, %v565
    %v585 = vadd.f32 %v531, %v569
    %v586 = vadd.f32 %v532, %v557
    %v587 = vadd.f32 %v533, %v561
    %v588 = vadd.f32 %v534, %v565
    %v589 = vadd.f32 %v535, %v569
    %v590 = vadd.f32 %v536, %v557
    %v591 = vadd.f32 %v537, %v561
    %v592 = vadd.f32 %v538, %v565
    %v593 = vadd.f32 %v539, %v569
    %v594 = vadd.f32 %v540, %v557
    %v595 = vadd.f32 %v541, %v561
    %v596 = vadd.f32 %v542, %v565
    %v597 = vadd.f32 %v543, %v569
    %v598 = vadd.f32 %v544, %v557
    %v599 = vadd.f32 %v545, %v561
    %v600 = vadd.f32 %v546, %v565
    %v601 = vadd.f32 %v547, %v569
    %v602 = vadd.f32 %v548, %v557
    %v603 = vadd.f32 %v549, %v561
    %v604 = vadd.f32 %v550, %v565
    %v605 = vadd.f32 %v551, %v569
    %v606 = vpack.c.bf16 %v578, %v574
    %v607 = vpack.c.bf16 %v579, %v575
    %v608 = vpack.c.bf16 %v580, %v576
    %v609 = vpack.c.bf16 %v581, %v577
    %v610 = vpack.c.bf16 %v586, %v582
    %v611 = vpack.c.bf16 %v587, %v583
    %v612 = vpack.c.bf16 %v588, %v584
    %v613 = vpack.c.bf16 %v589, %v585
    %v614 = vpack.c.bf16 %v594, %v590
    %v615 = vpack.c.bf16 %v595, %v591
    %v616 = vpack.c.bf16 %v596, %v592
    %v617 = vpack.c.bf16 %v597, %v593
    %v618 = vpack.c.bf16 %v602, %v598
    %v619 = vpack.c.bf16 %v603, %v599
    %v620 = vpack.c.bf16 %v604, %v600
    %v621 = vpack.c.bf16 %v605, %v601
    %v638 = vunpack.c.l.b16 %v606
    %v639 = vunpack.c.l.b16 %v607
    %v640 = vunpack.c.l.b16 %v608
    %v641 = vunpack.c.l.b16 %v609
    %v642 = vunpack.c.h.b16 %v606
    %v643 = vunpack.c.h.b16 %v607
    %v644 = vunpack.c.h.b16 %v608
    %v645 = vunpack.c.h.b16 %v609
    %v646 = vunpack.c.l.b16 %v610
    %v647 = vunpack.c.l.b16 %v611
    %v648 = vunpack.c.l.b16 %v612
    %v649 = vunpack.c.l.b16 %v613
    %v650 = vunpack.c.h.b16 %v610
    %v651 = vunpack.c.h.b16 %v611
    %v652 = vunpack.c.h.b16 %v612
    %v653 = vunpack.c.h.b16 %v613
    %v654 = vunpack.c.l.b16 %v614
    %v655 = vunpack.c.l.b16 %v615
    %v656 = vunpack.c.l.b16 %v616
    %v657 = vunpack.c.l.b16 %v617
    %v658 = vunpack.c.h.b16 %v614
    %v659 = vunpack.c.h.b16 %v615
    %v660 = vunpack.c.h.b16 %v616
    %v661 = vunpack.c.h.b16 %v617
    %v662 = vunpack.c.l.b16 %v618
    %v663 = vunpack.c.l.b16 %v619
    %v664 = vunpack.c.l.b16 %v620
    %v665 = vunpack.c.l.b16 %v621
    %v666 = vunpack.c.h.b16 %v618
    %v667 = vunpack.c.h.b16 %v619
    %v668 = vunpack.c.h.b16 %v620
    %v669 = vunpack.c.h.b16 %v621
    %v670 = vpack.c.b16 %v639, %v638
    %v671 = vpack.c.b16 %v641, %v640
    %v672 = vpack.c.b16 %v643, %v642
    %v673 = vpack.c.b16 %v645, %v644
    %v674 = vpack.c.b16 %v647, %v646
    %v675 = vpack.c.b16 %v649, %v648
    %v676 = vpack.c.b16 %v651, %v650
    %v677 = vpack.c.b16 %v653, %v652
    %v678 = vpack.c.b16 %v655, %v654
    %v679 = vpack.c.b16 %v657, %v656
    %v680 = vpack.c.b16 %v659, %v658
    %v681 = vpack.c.b16 %v661, %v660
    %v682 = vpack.c.b16 %v663, %v662
    %v683 = vpack.c.b16 %v665, %v664
    %v684 = vpack.c.b16 %v667, %v666
    %v685 = vpack.c.b16 %v669, %v668
    %702 = vst [vmem:[%s3] sm:$0xff] %v670
    %703 = vst [vmem:[%s3 + $0x8] sm:$0xff] %v671
    %704 = vst [vmem:[%s3 + $0x10] sm:$0xff] %v672
    %705 = vst [vmem:[%s3 + $0x18] sm:$0xff] %v673
    %706 = vst [vmem:[%s3 + $0x20] sm:$0xff] %v674
    %707 = vst [vmem:[%s3 + $0x28] sm:$0xff] %v675
    %708 = vst [vmem:[%s3 + $0x30] sm:$0xff] %v676
    %709 = vst [vmem:[%s3 + $0x38] sm:$0xff] %v677
    %710 = vst [vmem:[%s3 + $0x40] sm:$0xff] %v678
    %711 = vst [vmem:[%s3 + $0x48] sm:$0xff] %v679
    %712 = vst [vmem:[%s3 + $0x50] sm:$0xff] %v680
    %713 = vst [vmem:[%s3 + $0x58] sm:$0xff] %v681
    %714 = vst [vmem:[%s3 + $0x60] sm:$0xff] %v682
    %715 = vst [vmem:[%s3 + $0x68] sm:$0xff] %v683
    %716 = vst [vmem:[%s3 + $0x70] sm:$0xff] %v684
    %717 = vst [vmem:[%s3 + $0x78] sm:$0xff] %v685
  $region21: #{_forward_impl.5} parent=0 // pred_fallthru
    _
  // Predicated region
  $region22: #{_forward_impl.5} parent=0 // pred_check
    _
  $region23: #{_forward_impl.5} parent=0 // pred_check_branch
    %719 = sbr.rel (0) target = $region25
  $region24: #{_forward_impl.5} parent=0 // pred_region
    _
  $region25: #{_forward_impl.5} parent=0 // pred_fallthru
    _
  // Predicated region
  $region26: #{_forward_impl.5} parent=0 // pred_check
    _
  $region27: #{_forward_impl.5} parent=0 // pred_check_branch
    %721 = sbr.rel (0) target = $region29
  $region28: #{_forward_impl.5} parent=0 // pred_region
    _
  $region29: #{_forward_impl.5} parent=0 // pred_fallthru
    _

// kernel: _forward_impl.9
$region0: #{_forward_impl.9}
  #allocation0 [shape = 'u32[]', space=smem, size = 0x4, offset = 0x4, fixed_abs, tag = 'smem constant byte address 0x4 - core index']
  #allocation1 [shape = 'u32[144,128]{1,0:T(1,128)}', space=vmem, size = 0x12000, scoped, tag = 'internal scratch']
  #allocation2 [shape = 'f32[64,1024]{1,0:T(8,128)}', space=vmem, size = 0x40000, scoped, tag = 'scratch operand']
  %s0 = inlined_call_operand.vmem [shape: bf16[64,128], index: 0, kind: input, shape index: {}]
  %s1 = inlined_call_operand.vmem [shape: bf16[128,1024], index: 1, kind: input, shape index: {}]
  %s2 = inlined_call_operand.vmem [shape: f32[1,1024], index: 2, kind: input, shape index: {}]
  %s3 = inlined_call_operand.vmem [shape: f32[64,1024], index: 3, kind: output, shape index: {}]
  %s4 = sld [smem:[#allocation0]]
  $region30: #{_forward_impl.9} parent=0
    _
  %s6 = ssub.s32 1, %s4
  %s7 = scalar_select 0, %s6, %s4
  // Predicated region
  $region2: #{_forward_impl.9} parent=0 // pred_check
    _
  $region3: #{_forward_impl.9} parent=0 // pred_check_branch
    %9 = sbr.rel (0) target = $region5
  $region4: #{_forward_impl.9} parent=0 // pred_region
    _
  $region5: #{_forward_impl.9} parent=0 // pred_fallthru
    _
  // Predicated region
  $region6: #{_forward_impl.9} parent=0 // pred_check
    _
  $region7: #{_forward_impl.9} parent=0 // pred_check_branch
    %11 = sbr.rel (0) target = $region9
  $region8: #{_forward_impl.9} parent=0 // pred_region
    _
  $region9: #{_forward_impl.9} parent=0 // pred_fallthru
    _
  // Predicated region
  $region10: #{_forward_impl.9} parent=0 // pred_check
    _
  $region11: #{_forward_impl.9} parent=0 // pred_check_branch
    %13 = sbr.rel (0) target = $region13
  $region12: #{_forward_impl.9} parent=0 // pred_region
    _
  $region13: #{_forward_impl.9} parent=0 // pred_fallthru
    _
  %p15 = scmp.eq.s32.totalorder 0, 0
  // Predicated region
  $region14: #{_forward_impl.9} parent=0 // pred_check
    %p16 = pneg %p15
  $region15: #{_forward_impl.9} parent=0 // pred_check_branch
    %18 = sbr.rel (%p16) target = $region17
  $region16: #{_forward_impl.9} parent=0 // pred_region
    %19 = vst [vmem:[#allocation2] sm:$0xff] 0.0
    %20 = vst [vmem:[#allocation2 + $0x8] sm:$0xff] 0.0
    %21 = vst [vmem:[#allocation2 + $0x10] sm:$0xff] 0.0
    %22 = vst [vmem:[#allocation2 + $0x18] sm:$0xff] 0.0
    %23 = vst [vmem:[#allocation2 + $0x20] sm:$0xff] 0.0
    %24 = vst [vmem:[#allocation2 + $0x28] sm:$0xff] 0.0
    %25 = vst [vmem:[#allocation2 + $0x30] sm:$0xff] 0.0
    %26 = vst [vmem:[#allocation2 + $0x38] sm:$0xff] 0.0
    %27 = vst [vmem:[#allocation2 + $0x40] sm:$0xff] 0.0
    %28 = vst [vmem:[#allocation2 + $0x48] sm:$0xff] 0.0
    %29 = vst [vmem:[#allocation2 + $0x50] sm:$0xff] 0.0
    %30 = vst [vmem:[#allocation2 + $0x58] sm:$0xff] 0.0
    %31 = vst [vmem:[#allocation2 + $0x60] sm:$0xff] 0.0
    %32 = vst [vmem:[#allocation2 + $0x68] sm:$0xff] 0.0
    %33 = vst [vmem:[#allocation2 + $0x70] sm:$0xff] 0.0
    %34 = vst [vmem:[#allocation2 + $0x78] sm:$0xff] 0.0
    %35 = vst [vmem:[#allocation2 + $0x80] sm:$0xff] 0.0
    %36 = vst [vmem:[#allocation2 + $0x88] sm:$0xff] 0.0
    %37 = vst [vmem:[#allocation2 + $0x90] sm:$0xff] 0.0
    %38 = vst [vmem:[#allocation2 + $0x98] sm:$0xff] 0.0
    %39 = vst [vmem:[#allocation2 + $0xa0] sm:$0xff] 0.0
    %40 = vst [vmem:[#allocation2 + $0xa8] sm:$0xff] 0.0
    %41 = vst [vmem:[#allocation2 + $0xb0] sm:$0xff] 0.0
    %42 = vst [vmem:[#allocation2 + $0xb8] sm:$0xff] 0.0
    %43 = vst [vmem:[#allocation2 + $0xc0] sm:$0xff] 0.0
    %44 = vst [vmem:[#allocation2 + $0xc8] sm:$0xff] 0.0
    %45 = vst [vmem:[#allocation2 + $0xd0] sm:$0xff] 0.0
    %46 = vst [vmem:[#allocation2 + $0xd8] sm:$0xff] 0.0
    %47 = vst [vmem:[#allocation2 + $0xe0] sm:$0xff] 0.0
    %48 = vst [vmem:[#allocation2 + $0xe8] sm:$0xff] 0.0
    %49 = vst [vmem:[#allocation2 + $0xf0] sm:$0xff] 0.0
    %50 = vst [vmem:[#allocation2 + $0xf8] sm:$0xff] 0.0
    %51 = vst [vmem:[#allocation2 + $0x100] sm:$0xff] 0.0
    %52 = vst [vmem:[#allocation2 + $0x108] sm:$0xff] 0.0
    %53 = vst [vmem:[#allocation2 + $0x110] sm:$0xff] 0.0
    %54 = vst [vmem:[#allocation2 + $0x118] sm:$0xff] 0.0
    %55 = vst [vmem:[#allocation2 + $0x120] sm:$0xff] 0.0
    %56 = vst [vmem:[#allocation2 + $0x128] sm:$0xff] 0.0
    %57 = vst [vmem:[#allocation2 + $0x130] sm:$0xff] 0.0
    %58 = vst [vmem:[#allocation2 + $0x138] sm:$0xff] 0.0
    %59 = vst [vmem:[#allocation2 + $0x140] sm:$0xff] 0.0
    %60 = vst [vmem:[#allocation2 + $0x148] sm:$0xff] 0.0
    %61 = vst [vmem:[#allocation2 + $0x150] sm:$0xff] 0.0
    %62 = vst [vmem:[#allocation2 + $0x158] sm:$0xff] 0.0
    %63 = vst [vmem:[#allocation2 + $0x160] sm:$0xff] 0.0
    %64 = vst [vmem:[#allocation2 + $0x168] sm:$0xff] 0.0
    %65 = vst [vmem:[#allocation2 + $0x170] sm:$0xff] 0.0
    %66 = vst [vmem:[#allocation2 + $0x178] sm:$0xff] 0.0
    %67 = vst [vmem:[#allocation2 + $0x180] sm:$0xff] 0.0
    %68 = vst [vmem:[#allocation2 + $0x188] sm:$0xff] 0.0
    %69 = vst [vmem:[#allocation2 + $0x190] sm:$0xff] 0.0
    %70 = vst [vmem:[#allocation2 + $0x198] sm:$0xff] 0.0
    %71 = vst [vmem:[#allocation2 + $0x1a0] sm:$0xff] 0.0
    %72 = vst [vmem:[#allocation2 + $0x1a8] sm:$0xff] 0.0
    %73 = vst [vmem:[#allocation2 + $0x1b0] sm:$0xff] 0.0
    %74 = vst [vmem:[#allocation2 + $0x1b8] sm:$0xff] 0.0
    %75 = vst [vmem:[#allocation2 + $0x1c0] sm:$0xff] 0.0
    %76 = vst [vmem:[#allocation2 + $0x1c8] sm:$0xff] 0.0
    %77 = vst [vmem:[#allocation2 + $0x1d0] sm:$0xff] 0.0
    %78 = vst [vmem:[#allocation2 + $0x1d8] sm:$0xff] 0.0
    %79 = vst [vmem:[#allocation2 + $0x1e0] sm:$0xff] 0.0
    %80 = vst [vmem:[#allocation2 + $0x1e8] sm:$0xff] 0.0
    %81 = vst [vmem:[#allocation2 + $0x1f0] sm:$0xff] 0.0
    %82 = vst [vmem:[#allocation2 + $0x1f8] sm:$0xff] 0.0
  $region17: #{_forward_impl.9} parent=0 // pred_fallthru
    _
  %v83 = vld [vmem:[#allocation2] sm:$0xff]
  %v84 = vld [vmem:[#allocation2 + $0x8] sm:$0xff]
  %v85 = vld [vmem:[#allocation2 + $0x10] sm:$0xff]
  %v86 = vld [vmem:[#allocation2 + $0x18] sm:$0xff]
  %v87 = vld [vmem:[#allocation2 + $0x20] sm:$0xff]
  %v88 = vld [vmem:[#allocation2 + $0x28] sm:$0xff]
  %v89 = vld [vmem:[#allocation2 + $0x30] sm:$0xff]
  %v90 = vld [vmem:[#allocation2 + $0x38] sm:$0xff]
  %v91 = vld [vmem:[#allocation2 + $0x40] sm:$0xff]
  %v92 = vld [vmem:[#allocation2 + $0x48] sm:$0xff]
  %v93 = vld [vmem:[#allocation2 + $0x50] sm:$0xff]
  %v94 = vld [vmem:[#allocation2 + $0x58] sm:$0xff]
  %v95 = vld [vmem:[#allocation2 + $0x60] sm:$0xff]
  %v96 = vld [vmem:[#allocation2 + $0x68] sm:$0xff]
  %v97 = vld [vmem:[#allocation2 + $0x70] sm:$0xff]
  %v98 = vld [vmem:[#allocation2 + $0x78] sm:$0xff]
  %v99 = vld [vmem:[#allocation2 + $0x80] sm:$0xff]
  %v100 = vld [vmem:[#allocation2 + $0x88] sm:$0xff]
  %v101 = vld [vmem:[#allocation2 + $0x90] sm:$0xff]
  %v102 = vld [vmem:[#allocation2 + $0x98] sm:$0xff]
  %v103 = vld [vmem:[#allocation2 + $0xa0] sm:$0xff]
  %v104 = vld [vmem:[#allocation2 + $0xa8] sm:$0xff]
  %v105 = vld [vmem:[#allocation2 + $0xb0] sm:$0xff]
  %v106 = vld [vmem:[#allocation2 + $0xb8] sm:$0xff]
  %v107 = vld [vmem:[#allocation2 + $0xc0] sm:$0xff]
  %v108 = vld [vmem:[#allocation2 + $0xc8] sm:$0xff]
  %v109 = vld [vmem:[#allocation2 + $0xd0] sm:$0xff]
  %v110 = vld [vmem:[#allocation2 + $0xd8] sm:$0xff]
  %v111 = vld [vmem:[#allocation2 + $0xe0] sm:$0xff]
  %v112 = vld [vmem:[#allocation2 + $0xe8] sm:$0xff]
  %v113 = vld [vmem:[#allocation2 + $0xf0] sm:$0xff]
  %v114 = vld [vmem:[#allocation2 + $0xf8] sm:$0xff]
  %v115 = vld [vmem:[#allocation2 + $0x100] sm:$0xff]
  %v116 = vld [vmem:[#allocation2 + $0x108] sm:$0xff]
  %v117 = vld [vmem:[#allocation2 + $0x110] sm:$0xff]
  %v118 = vld [vmem:[#allocation2 + $0x118] sm:$0xff]
  %v119 = vld [vmem:[#allocation2 + $0x120] sm:$0xff]
  %v120 = vld [vmem:[#allocation2 + $0x128] sm:$0xff]
  %v121 = vld [vmem:[#allocation2 + $0x130] sm:$0xff]
  %v122 = vld [vmem:[#allocation2 + $0x138] sm:$0xff]
  %v123 = vld [vmem:[#allocation2 + $0x140] sm:$0xff]
  %v124 = vld [vmem:[#allocation2 + $0x148] sm:$0xff]
  %v125 = vld [vmem:[#allocation2 + $0x150] sm:$0xff]
  %v126 = vld [vmem:[#allocation2 + $0x158] sm:$0xff]
  %v127 = vld [vmem:[#allocation2 + $0x160] sm:$0xff]
  %v128 = vld [vmem:[#allocation2 + $0x168] sm:$0xff]
  %v129 = vld [vmem:[#allocation2 + $0x170] sm:$0xff]
  %v130 = vld [vmem:[#allocation2 + $0x178] sm:$0xff]
  %v131 = vld [vmem:[#allocation2 + $0x180] sm:$0xff]
  %v132 = vld [vmem:[#allocation2 + $0x188] sm:$0xff]
  %v133 = vld [vmem:[#allocation2 + $0x190] sm:$0xff]
  %v134 = vld [vmem:[#allocation2 + $0x198] sm:$0xff]
  %v135 = vld [vmem:[#allocation2 + $0x1a0] sm:$0xff]
  %v136 = vld [vmem:[#allocation2 + $0x1a8] sm:$0xff]
  %v137 = vld [vmem:[#allocation2 + $0x1b0] sm:$0xff]
  %v138 = vld [vmem:[#allocation2 + $0x1b8] sm:$0xff]
  %v139 = vld [vmem:[#allocation2 + $0x1c0] sm:$0xff]
  %v140 = vld [vmem:[#allocation2 + $0x1c8] sm:$0xff]
  %v141 = vld [vmem:[#allocation2 + $0x1d0] sm:$0xff]
  %v142 = vld [vmem:[#allocation2 + $0x1d8] sm:$0xff]
  %v143 = vld [vmem:[#allocation2 + $0x1e0] sm:$0xff]
  %v144 = vld [vmem:[#allocation2 + $0x1e8] sm:$0xff]
  %v145 = vld [vmem:[#allocation2 + $0x1f0] sm:$0xff]
  %v146 = vld [vmem:[#allocation2 + $0x1f8] sm:$0xff]
  %v147 = vld [vmem:[%s0] sm:$0xf]
  %v148 = vld [vmem:[%s0 + $0x4] sm:$0xf]
  %v149 = vld [vmem:[%s0 + $0x8] sm:$0xf]
  %v150 = vld [vmem:[%s0 + $0xc] sm:$0xf]
  %v151 = vld [vmem:[%s0 + $0x10] sm:$0xf]
  %v152 = vld [vmem:[%s0 + $0x14] sm:$0xf]
  %v153 = vld [vmem:[%s0 + $0x18] sm:$0xf]
  %v154 = vld [vmem:[%s0 + $0x1c] sm:$0xf]
  %v155 = vld [vmem:[%s1] sm:$0xff]
  %v156 = vld [vmem:[%s1 + $0x8] sm:$0xff]
  %v157 = vld [vmem:[%s1 + $0x10] sm:$0xff]
  %v158 = vld [vmem:[%s1 + $0x18] sm:$0xff]
  %v159 = vld [vmem:[%s1 + $0x20] sm:$0xff]
  %v160 = vld [vmem:[%s1 + $0x28] sm:$0xff]
  %v161 = vld [vmem:[%s1 + $0x30] sm:$0xff]
  %v162 = vld [vmem:[%s1 + $0x38] sm:$0xff]
  %v163 = vld [vmem:[%s1 + $0x40] sm:$0xff]
  %v164 = vld [vmem:[%s1 + $0x48] sm:$0xff]
  %v165 = vld [vmem:[%s1 + $0x50] sm:$0xff]
  %v166 = vld [vmem:[%s1 + $0x58] sm:$0xff]
  %v167 = vld [vmem:[%s1 + $0x60] sm:$0xff]
  %v168 = vld [vmem:[%s1 + $0x68] sm:$0xff]
  %v169 = vld [vmem:[%s1 + $0x70] sm:$0xff]
  %v170 = vld [vmem:[%s1 + $0x78] sm:$0xff]
  %v171 = vld [vmem:[%s1 + $0x80] sm:$0xff]
  %v172 = vld [vmem:[%s1 + $0x88] sm:$0xff]
  %v173 = vld [vmem:[%s1 + $0x90] sm:$0xff]
  %v174 = vld [vmem:[%s1 + $0x98] sm:$0xff]
  %v175 = vld [vmem:[%s1 + $0xa0] sm:$0xff]
  %v176 = vld [vmem:[%s1 + $0xa8] sm:$0xff]
  %v177 = vld [vmem:[%s1 + $0xb0] sm:$0xff]
  %v178 = vld [vmem:[%s1 + $0xb8] sm:$0xff]
  %v179 = vld [vmem:[%s1 + $0xc0] sm:$0xff]
  %v180 = vld [vmem:[%s1 + $0xc8] sm:$0xff]
  %v181 = vld [vmem:[%s1 + $0xd0] sm:$0xff]
  %v182 = vld [vmem:[%s1 + $0xd8] sm:$0xff]
  %v183 = vld [vmem:[%s1 + $0xe0] sm:$0xff]
  %v184 = vld [vmem:[%s1 + $0xe8] sm:$0xff]
  %v185 = vld [vmem:[%s1 + $0xf0] sm:$0xff]
  %v186 = vld [vmem:[%s1 + $0xf8] sm:$0xff]
  %v187 = vld [vmem:[%s1 + $0x100] sm:$0xff]
  %v188 = vld [vmem:[%s1 + $0x108] sm:$0xff]
  %v189 = vld [vmem:[%s1 + $0x110] sm:$0xff]
  %v190 = vld [vmem:[%s1 + $0x118] sm:$0xff]
  %v191 = vld [vmem:[%s1 + $0x120] sm:$0xff]
  %v192 = vld [vmem:[%s1 + $0x128] sm:$0xff]
  %v193 = vld [vmem:[%s1 + $0x130] sm:$0xff]
  %v194 = vld [vmem:[%s1 + $0x138] sm:$0xff]
  %v195 = vld [vmem:[%s1 + $0x140] sm:$0xff]
  %v196 = vld [vmem:[%s1 + $0x148] sm:$0xff]
  %v197 = vld [vmem:[%s1 + $0x150] sm:$0xff]
  %v198 = vld [vmem:[%s1 + $0x158] sm:$0xff]
  %v199 = vld [vmem:[%s1 + $0x160] sm:$0xff]
  %v200 = vld [vmem:[%s1 + $0x168] sm:$0xff]
  %v201 = vld [vmem:[%s1 + $0x170] sm:$0xff]
  %v202 = vld [vmem:[%s1 + $0x178] sm:$0xff]
  %v203 = vld [vmem:[%s1 + $0x180] sm:$0xff]
  %v204 = vld [vmem:[%s1 + $0x188] sm:$0xff]
  %v205 = vld [vmem:[%s1 + $0x190] sm:$0xff]
  %v206 = vld [vmem:[%s1 + $0x198] sm:$0xff]
  %v207 = vld [vmem:[%s1 + $0x1a0] sm:$0xff]
  %v208 = vld [vmem:[%s1 + $0x1a8] sm:$0xff]
  %v209 = vld [vmem:[%s1 + $0x1b0] sm:$0xff]
  %v210 = vld [vmem:[%s1 + $0x1b8] sm:$0xff]
  %v211 = vld [vmem:[%s1 + $0x1c0] sm:$0xff]
  %v212 = vld [vmem:[%s1 + $0x1c8] sm:$0xff]
  %v213 = vld [vmem:[%s1 + $0x1d0] sm:$0xff]
  %v214 = vld [vmem:[%s1 + $0x1d8] sm:$0xff]
  %v215 = vld [vmem:[%s1 + $0x1e0] sm:$0xff]
  %v216 = vld [vmem:[%s1 + $0x1e8] sm:$0xff]
  %v217 = vld [vmem:[%s1 + $0x1f0] sm:$0xff]
  %v218 = vld [vmem:[%s1 + $0x1f8] sm:$0xff]
  %v227 = vunpack.c.l.b16 %v147
  %v228 = vunpack.c.l.b16 %v148
  %v229 = vunpack.c.l.b16 %v149
  %v230 = vunpack.c.l.b16 %v150
  %v231 = vunpack.c.l.b16 %v151
  %v232 = vunpack.c.l.b16 %v152
  %v233 = vunpack.c.l.b16 %v153
  %v234 = vunpack.c.l.b16 %v154
  %v235 = vpack.c.b16 %v228, %v227
  %v236 = vpack.c.b16 %v230, %v229
  %v237 = vpack.c.b16 %v232, %v231
  %v238 = vpack.c.b16 %v234, %v233
  %v307 = vunpack.c.l.b16 %v155
  %v308 = vunpack.c.h.b16 %v155
  %v309 = vunpack.c.l.b16 %v156
  %v310 = vunpack.c.h.b16 %v156
  %v311 = vunpack.c.l.b16 %v157
  %v312 = vunpack.c.h.b16 %v157
  %v313 = vunpack.c.l.b16 %v158
  %v314 = vunpack.c.h.b16 %v158
  %v315 = vunpack.c.l.b16 %v159
  %v316 = vunpack.c.h.b16 %v159
  %v317 = vunpack.c.l.b16 %v160
  %v318 = vunpack.c.h.b16 %v160
  %v319 = vunpack.c.l.b16 %v161
  %v320 = vunpack.c.h.b16 %v161
  %v321 = vunpack.c.l.b16 %v162
  %v322 = vunpack.c.h.b16 %v162
  %v323 = vunpack.c.l.b16 %v163
  %v324 = vunpack.c.h.b16 %v163
  %v325 = vunpack.c.l.b16 %v164
  %v326 = vunpack.c.h.b16 %v164
  %v327 = vunpack.c.l.b16 %v165
  %v328 = vunpack.c.h.b16 %v165
  %v329 = vunpack.c.l.b16 %v166
  %v330 = vunpack.c.h.b16 %v166
  %v331 = vunpack.c.l.b16 %v167
  %v332 = vunpack.c.h.b16 %v167
  %v333 = vunpack.c.l.b16 %v168
  %v334 = vunpack.c.h.b16 %v168
  %v335 = vunpack.c.l.b16 %v169
  %v336 = vunpack.c.h.b16 %v169
  %v337 = vunpack.c.l.b16 %v170
  %v338 = vunpack.c.h.b16 %v170
  %v339 = vunpack.c.l.b16 %v171
  %v340 = vunpack.c.h.b16 %v171
  %v341 = vunpack.c.l.b16 %v172
  %v342 = vunpack.c.h.b16 %v172
  %v343 = vunpack.c.l.b16 %v173
  %v344 = vunpack.c.h.b16 %v173
  %v345 = vunpack.c.l.b16 %v174
  %v346 = vunpack.c.h.b16 %v174
  %v347 = vunpack.c.l.b16 %v175
  %v348 = vunpack.c.h.b16 %v175
  %v349 = vunpack.c.l.b16 %v176
  %v350 = vunpack.c.h.b16 %v176
  %v351 = vunpack.c.l.b16 %v177
  %v352 = vunpack.c.h.b16 %v177
  %v353 = vunpack.c.l.b16 %v178
  %v354 = vunpack.c.h.b16 %v178
  %v355 = vunpack.c.l.b16 %v179
  %v356 = vunpack.c.h.b16 %v179
  %v357 = vunpack.c.l.b16 %v180
  %v358 = vunpack.c.h.b16 %v180
  %v359 = vunpack.c.l.b16 %v181
  %v360 = vunpack.c.h.b16 %v181
  %v361 = vunpack.c.l.b16 %v182
  %v362 = vunpack.c.h.b16 %v182
  %v363 = vunpack.c.l.b16 %v183
  %v364 = vunpack.c.h.b16 %v183
  %v365 = vunpack.c.l.b16 %v184
  %v366 = vunpack.c.h.b16 %v184
  %v367 = vunpack.c.l.b16 %v185
  %v368 = vunpack.c.h.b16 %v185
  %v369 = vunpack.c.l.b16 %v186
  %v370 = vunpack.c.h.b16 %v186
  %v371 = vunpack.c.l.b16 %v187
  %v372 = vunpack.c.h.b16 %v187
  %v373 = vunpack.c.l.b16 %v188
  %v374 = vunpack.c.h.b16 %v188
  %v375 = vunpack.c.l.b16 %v189
  %v376 = vunpack.c.h.b16 %v189
  %v377 = vunpack.c.l.b16 %v190
  %v378 = vunpack.c.h.b16 %v190
  %v379 = vunpack.c.l.b16 %v191
  %v380 = vunpack.c.h.b16 %v191
  %v381 = vunpack.c.l.b16 %v192
  %v382 = vunpack.c.h.b16 %v192
  %v383 = vunpack.c.l.b16 %v193
  %v384 = vunpack.c.h.b16 %v193
  %v385 = vunpack.c.l.b16 %v194
  %v386 = vunpack.c.h.b16 %v194
  %v387 = vunpack.c.l.b16 %v195
  %v388 = vunpack.c.h.b16 %v195
  %v389 = vunpack.c.l.b16 %v196
  %v390 = vunpack.c.h.b16 %v196
  %v391 = vunpack.c.l.b16 %v197
  %v392 = vunpack.c.h.b16 %v197
  %v393 = vunpack.c.l.b16 %v198
  %v394 = vunpack.c.h.b16 %v198
  %v395 = vunpack.c.l.b16 %v199
  %v396 = vunpack.c.h.b16 %v199
  %v397 = vunpack.c.l.b16 %v200
  %v398 = vunpack.c.h.b16 %v200
  %v399 = vunpack.c.l.b16 %v201
  %v400 = vunpack.c.h.b16 %v201
  %v401 = vunpack.c.l.b16 %v202
  %v402 = vunpack.c.h.b16 %v202
  %v403 = vunpack.c.l.b16 %v203
  %v404 = vunpack.c.h.b16 %v203
  %v405 = vunpack.c.l.b16 %v204
  %v406 = vunpack.c.h.b16 %v204
  %v407 = vunpack.c.l.b16 %v205
  %v408 = vunpack.c.h.b16 %v205
  %v409 = vunpack.c.l.b16 %v206
  %v410 = vunpack.c.h.b16 %v206
  %v411 = vunpack.c.l.b16 %v207
  %v412 = vunpack.c.h.b16 %v207
  %v413 = vunpack.c.l.b16 %v208
  %v414 = vunpack.c.h.b16 %v208
  %v415 = vunpack.c.l.b16 %v209
  %v416 = vunpack.c.h.b16 %v209
  %v417 = vunpack.c.l.b16 %v210
  %v418 = vunpack.c.h.b16 %v210
  %v419 = vunpack.c.l.b16 %v211
  %v420 = vunpack.c.h.b16 %v211
  %v421 = vunpack.c.l.b16 %v212
  %v422 = vunpack.c.h.b16 %v212
  %v423 = vunpack.c.l.b16 %v213
  %v424 = vunpack.c.h.b16 %v213
  %v425 = vunpack.c.l.b16 %v214
  %v426 = vunpack.c.h.b16 %v214
  %v427 = vunpack.c.l.b16 %v215
  %v428 = vunpack.c.h.b16 %v215
  %v429 = vunpack.c.l.b16 %v216
  %v430 = vunpack.c.h.b16 %v216
  %v431 = vunpack.c.l.b16 %v217
  %v432 = vunpack.c.h.b16 %v217
  %v433 = vunpack.c.l.b16 %v218
  %v434 = vunpack.c.h.b16 %v218
  %v435 = vpack.c.b16 %v315, %v307
  %v436 = vpack.c.b16 %v316, %v308
  %v437 = vpack.c.b16 %v317, %v309
  %v438 = vpack.c.b16 %v318, %v310
  %v439 = vpack.c.b16 %v319, %v311
  %v440 = vpack.c.b16 %v320, %v312
  %v441 = vpack.c.b16 %v321, %v313
  %v442 = vpack.c.b16 %v322, %v314
  %v443 = vpack.c.b16 %v331, %v323
  %v444 = vpack.c.b16 %v332, %v324
  %v445 = vpack.c.b16 %v333, %v325
  %v446 = vpack.c.b16 %v334, %v326
  %v447 = vpack.c.b16 %v335, %v327
  %v448 = vpack.c.b16 %v336, %v328
  %v449 = vpack.c.b16 %v337, %v329
  %v450 = vpack.c.b16 %v338, %v330
  %v451 = vpack.c.b16 %v347, %v339
  %v452 = vpack.c.b16 %v348, %v340
  %v453 = vpack.c.b16 %v349, %v341
  %v454 = vpack.c.b16 %v350, %v342
  %v455 = vpack.c.b16 %v351, %v343
  %v456 = vpack.c.b16 %v352, %v344
  %v457 = vpack.c.b16 %v353, %v345
  %v458 = vpack.c.b16 %v354, %v346
  %v459 = vpack.c.b16 %v363, %v355
  %v460 = vpack.c.b16 %v364, %v356
  %v461 = vpack.c.b16 %v365, %v357
  %v462 = vpack.c.b16 %v366, %v358
  %v463 = vpack.c.b16 %v367, %v359
  %v464 = vpack.c.b16 %v368, %v360
  %v465 = vpack.c.b16 %v369, %v361
  %v466 = vpack.c.b16 %v370, %v362
  %v467 = vpack.c.b16 %v379, %v371
  %v468 = vpack.c.b16 %v380, %v372
  %v469 = vpack.c.b16 %v381, %v373
  %v470 = vpack.c.b16 %v382, %v374
  %v471 = vpack.c.b16 %v383, %v375
  %v472 = vpack.c.b16 %v384, %v376
  %v473 = vpack.c.b16 %v385, %v377
  %v474 = vpack.c.b16 %v386, %v378
  %v475 = vpack.c.b16 %v395, %v387
  %v476 = vpack.c.b16 %v396, %v388
  %v477 = vpack.c.b16 %v397, %v389
  %v478 = vpack.c.b16 %v398, %v390
  %v479 = vpack.c.b16 %v399, %v391
  %v480 = vpack.c.b16 %v400, %v392
  %v481 = vpack.c.b16 %v401, %v393
  %v482 = vpack.c.b16 %v402, %v394
  %v483 = vpack.c.b16 %v411, %v403
  %v484 = vpack.c.b16 %v412, %v404
  %v485 = vpack.c.b16 %v413, %v405
  %v486 = vpack.c.b16 %v414, %v406
  %v487 = vpack.c.b16 %v415, %v407
  %v488 = vpack.c.b16 %v416, %v408
  %v489 = vpack.c.b16 %v417, %v409
  %v490 = vpack.c.b16 %v418, %v410
  %v491 = vpack.c.b16 %v427, %v419
  %v492 = vpack.c.b16 %v428, %v420
  %v493 = vpack.c.b16 %v429, %v421
  %v494 = vpack.c.b16 %v430, %v422
  %v495 = vpack.c.b16 %v431, %v423
  %v496 = vpack.c.b16 %v432, %v424
  %v497 = vpack.c.b16 %v433, %v425
  %v498 = vpack.c.b16 %v434, %v426
  %563 = vmatprep.subr.bf16.mxu0 %v436
  %564 = vmatpush1.bf16.msra.mxu0 %v435
  %565 = vmatprep.subr.bf16.mxu0 %v444
  %566 = vmatpush1.bf16.msra.mxu0 %v443
  %567 = vmatprep.subr.bf16.mxu0 %v452
  %568 = vmatpush1.bf16.msra.mxu0 %v451
  %569 = vmatprep.subr.bf16.mxu0 %v460
  %570 = vmatpush1.bf16.msra.mxu0 %v459
  %571 = vmatprep.subr.bf16.mxu0 %v468
  %572 = vmatpush1.bf16.msra.mxu0 %v467
  %573 = vmatprep.subr.bf16.mxu0 %v476
  %574 = vmatpush1.bf16.msra.mxu0 %v475
  %575 = vmatprep.subr.bf16.mxu0 %v484
  %576 = vmatpush1.bf16.msra.mxu0 %v483
  %577 = vmatprep.subr.bf16.mxu0 %v492
  %578 = vmatpush1.bf16.msra.mxu0 %v491
  %579 = vmatprep.subr.bf16.mxu0 0
  %580 = vmatpush1.bf16.msra.mxu0 0
  %581 = vmatprep.subr.bf16.mxu0 0
  %582 = vmatpush1.bf16.msra.mxu0 0
  %583 = vmatprep.subr.bf16.mxu0 0
  %584 = vmatpush1.bf16.msra.mxu0 0
  %585 = vmatprep.subr.bf16.mxu0 0
  %586 = vmatpush1.bf16.msra.mxu0 0
  %587 = vmatprep.subr.bf16.mxu0 0
  %588 = vmatpush1.bf16.msra.mxu0 0
  %589 = vmatprep.subr.bf16.mxu0 0
  %590 = vmatpush1.bf16.msra.mxu0 0
  %591 = vmatprep.subr.bf16.mxu0 0
  %592 = vmatpush1.bf16.msra.mxu0 0
  %593 = vmatprep.subr.bf16.mxu0 0
  %594 = vmatpush1.bf16.msra.mxu0 0
  %595 = vmatprep.mubr.bf16.mxu0 0
  %596 = vmatmul.mubr.bf16.gmra.mrb[0].mxu0 %v235
  %v597 = vpop.f32.mrb[0].mxu0
  %v598 = vadd.f32 0.0, %v597
  %v599 = vpop.f32.mrb[0].mxu0
  %v600 = vadd.f32 0.0, %v599
  %v601 = vpop.f32.mrb[0].mxu0
  %v602 = vadd.f32 0.0, %v601
  %v603 = vpop.f32.mrb[0].mxu0
  %v604 = vadd.f32 0.0, %v603
  %605 = vmatprep.mubr.bf16.mxu0 0
  %606 = vmatmul.mubr.bf16.gmra.mrb[0].mxu0 %v236
  %v607 = vpop.f32.mrb[0].mxu0
  %v608 = vadd.f32 0.0, %v607
  %v609 = vpop.f32.mrb[0].mxu0
  %v610 = vadd.f32 0.0, %v609
  %v611 = vpop.f32.mrb[0].mxu0
  %v612 = vadd.f32 0.0, %v611
  %v613 = vpop.f32.mrb[0].mxu0
  %v614 = vadd.f32 0.0, %v613
  %615 = vmatprep.mubr.bf16.mxu0 0
  %616 = vmatmul.mubr.bf16.gmra.mrb[0].mxu0 %v237
  %v617 = vpop.f32.mrb[0].mxu0
  %v618 = vadd.f32 0.0, %v617
  %v619 = vpop.f32.mrb[0].mxu0
  %v620 = vadd.f32 0.0, %v619
  %v621 = vpop.f32.mrb[0].mxu0
  %v622 = vadd.f32 0.0, %v621
  %v623 = vpop.f32.mrb[0].mxu0
  %v624 = vadd.f32 0.0, %v623
  %625 = vmatprep.mubr.bf16.mxu0 0
  %626 = vmatmul.mubr.bf16.gmra.mrb[0].mxu0 %v238
  %v627 = vpop.f32.mrb[0].mxu0
  %v628 = vadd.f32 0.0, %v627
  %v629 = vpop.f32.mrb[0].mxu0
  %v630 = vadd.f32 0.0, %v629
  %v631 = vpop.f32.mrb[0].mxu0
  %v632 = vadd.f32 0.0, %v631
  %v633 = vpop.f32.mrb[0].mxu0
  %v634 = vadd.f32 0.0, %v633
  %635 = vdwg.mxu0
  %636 = vmatprep.subr.bf16.mxu0 %v438
  %637 = vmatpush1.bf16.msra.mxu0 %v437
  %638 = vmatprep.subr.bf16.mxu0 %v446
  %639 = vmatpush1.bf16.msra.mxu0 %v445
  %640 = vmatprep.subr.bf16.mxu0 %v454
  %641 = vmatpush1.bf16.msra.mxu0 %v453
  %642 = vmatprep.subr.bf16.mxu0 %v462
  %643 = vmatpush1.bf16.msra.mxu0 %v461
  %644 = vmatprep.subr.bf16.mxu0 %v470
  %645 = vmatpush1.bf16.msra.mxu0 %v469
  %646 = vmatprep.subr.bf16.mxu0 %v478
  %647 = vmatpush1.bf16.msra.mxu0 %v477
  %648 = vmatprep.subr.bf16.mxu0 %v486
  %649 = vmatpush1.bf16.msra.mxu0 %v485
  %650 = vmatprep.subr.bf16.mxu0 %v494
  %651 = vmatpush1.bf16.msra.mxu0 %v493
  %652 = vmatprep.subr.bf16.mxu0 0
  %653 = vmatpush1.bf16.msra.mxu0 0
  %654 = vmatprep.subr.bf16.mxu0 0
  %655 = vmatpush1.bf16.msra.mxu0 0
  %656 = vmatprep.subr.bf16.mxu0 0
  %657 = vmatpush1.bf16.msra.mxu0 0
  %658 = vmatprep.subr.bf16.mxu0 0
  %659 = vmatpush1.bf16.msra.mxu0 0
  %660 = vmatprep.subr.bf16.mxu0 0
  %661 = vmatpush1.bf16.msra.mxu0 0
  %662 = vmatprep.subr.bf16.mxu0 0
  %663 = vmatpush1.bf16.msra.mxu0 0
  %664 = vmatprep.subr.bf16.mxu0 0
  %665 = vmatpush1.bf16.msra.mxu0 0
  %666 = vmatprep.subr.bf16.mxu0 0
  %667 = vmatpush1.bf16.msra.mxu0 0
  %668 = vmatprep.mubr.bf16.mxu0 0
  %669 = vmatmul.mubr.bf16.gmra.mrb[0].mxu0 %v235
  %v670 = vpop.f32.mrb[0].mxu0
  %v671 = vadd.f32 0.0, %v670
  %v672 = vpop.f32.mrb[0].mxu0
  %v673 = vadd.f32 0.0, %v672
  %v674 = vpop.f32.mrb[0].mxu0
  %v675 = vadd.f32 0.0, %v674
  %v676 = vpop.f32.mrb[0].mxu0
  %v677 = vadd.f32 0.0, %v676
  %678 = vmatprep.mubr.bf16.mxu0 0
  %679 = vmatmul.mubr.bf16.gmra.mrb[0].mxu0 %v236
  %v680 = vpop.f32.mrb[0].mxu0
  %v681 = vadd.f32 0.0, %v680
  %v682 = vpop.f32.mrb[0].mxu0
  %v683 = vadd.f32 0.0, %v682
  %v684 = vpop.f32.mrb[0].mxu0
  %v685 = vadd.f32 0.0, %v684
  %v686 = vpop.f32.mrb[0].mxu0
  %v687 = vadd.f32 0.0, %v686
  %688 = vmatprep.mubr.bf16.mxu0 0
  %689 = vmatmul.mubr.bf16.gmra.mrb[0].mxu0 %v237
  %v690 = vpop.f32.mrb[0].mxu0
  %v691 = vadd.f32 0.0, %v690
  %v692 = vpop.f32.mrb[0].mxu0
  %v693 = vadd.f32 0.0, %v692
  %v694 = vpop.f32.mrb[0].mxu0
  %v695 = vadd.f32 0.0, %v694
  %v696 = vpop.f32.mrb[0].mxu0
  %v697 = vadd.f32 0.0, %v696
  %698 = vmatprep.mubr.bf16.mxu0 0
  %699 = vmatmul.mubr.bf16.gmra.mrb[0].mxu0 %v238
  %v700 = vpop.f32.mrb[0].mxu0
  %v701 = vadd.f32 0.0, %v700
  %v702 = vpop.f32.mrb[0].mxu0
  %v703 = vadd.f32 0.0, %v702
  %v704 = vpop.f32.mrb[0].mxu0
  %v705 = vadd.f32 0.0, %v704
  %v706 = vpop.f32.mrb[0].mxu0
  %v707 = vadd.f32 0.0, %v706
  %708 = vdwg.mxu0
  %709 = vmatprep.subr.bf16.mxu0 %v440
  %710 = vmatpush1.bf16.msra.mxu0 %v439
  %711 = vmatprep.subr.bf16.mxu0 %v448
  %712 = vmatpush1.bf16.msra.mxu0 %v447
  %713 = vmatprep.subr.bf16.mxu0 %v456
  %714 = vmatpush1.bf16.msra.mxu0 %v455
  %715 = vmatprep.subr.bf16.mxu0 %v464
  %716 = vmatpush1.bf16.msra.mxu0 %v463
  %717 = vmatprep.subr.bf16.mxu0 %v472
  %718 = vmatpush1.bf16.msra.mxu0 %v471
  %719 = vmatprep.subr.bf16.mxu0 %v480
  %720 = vmatpush1.bf16.msra.mxu0 %v479
  %721 = vmatprep.subr.bf16.mxu0 %v488
  %722 = vmatpush1.bf16.msra.mxu0 %v487
  %723 = vmatprep.subr.bf16.mxu0 %v496
  %724 = vmatpush1.bf16.msra.mxu0 %v495
  %725 = vmatprep.subr.bf16.mxu0 0
  %726 = vmatpush1.bf16.msra.mxu0 0
  %727 = vmatprep.subr.bf16.mxu0 0
  %728 = vmatpush1.bf16.msra.mxu0 0
  %729 = vmatprep.subr.bf16.mxu0 0
  %730 = vmatpush1.bf16.msra.mxu0 0
  %731 = vmatprep.subr.bf16.mxu0 0
  %732 = vmatpush1.bf16.msra.mxu0 0
  %733 = vmatprep.subr.bf16.mxu0 0
  %734 = vmatpush1.bf16.msra.mxu0 0
  %735 = vmatprep.subr.bf16.mxu0 0
  %736 = vmatpush1.bf16.msra.mxu0 0
  %737 = vmatprep.subr.bf16.mxu0 0
  %738 = vmatpush1.bf16.msra.mxu0 0
  %739 = vmatprep.subr.bf16.mxu0 0
  %740 = vmatpush1.bf16.msra.mxu0 0
  %741 = vmatprep.mubr.bf16.mxu0 0
  %742 = vmatmul.mubr.bf16.gmra.mrb[0].mxu0 %v235
  %v743 = vpop.f32.mrb[0].mxu0
  %v744 = vadd.f32 0.0, %v743
  %v745 = vpop.f32.mrb[0].mxu0
  %v746 = vadd.f32 0.0, %v745
  %v747 = vpop.f32.mrb[0].mxu0
  %v748 = vadd.f32 0.0, %v747
  %v749 = vpop.f32.mrb[0].mxu0
  %v750 = vadd.f32 0.0, %v749
  %751 = vmatprep.mubr.bf16.mxu0 0
  %752 = vmatmul.mubr.bf16.gmra.mrb[0].mxu0 %v236
  %v753 = vpop.f32.mrb[0].mxu0
  %v754 = vadd.f32 0.0, %v753
  %v755 = vpop.f32.mrb[0].mxu0
  %v756 = vadd.f32 0.0, %v755
  %v757 = vpop.f32.mrb[0].mxu0
  %v758 = vadd.f32 0.0, %v757
  %v759 = vpop.f32.mrb[0].mxu0
  %v760 = vadd.f32 0.0, %v759
  %761 = vmatprep.mubr.bf16.mxu0 0
  %762 = vmatmul.mubr.bf16.gmra.mrb[0].mxu0 %v237
  %v763 = vpop.f32.mrb[0].mxu0
  %v764 = vadd.f32 0.0, %v763
  %v765 = vpop.f32.mrb[0].mxu0
  %v766 = vadd.f32 0.0, %v765
  %v767 = vpop.f32.mrb[0].mxu0
  %v768 = vadd.f32 0.0, %v767
  %v769 = vpop.f32.mrb[0].mxu0
  %v770 = vadd.f32 0.0, %v769
  %771 = vmatprep.mubr.bf16.mxu0 0
  %772 = vmatmul.mubr.bf16.gmra.mrb[0].mxu0 %v238
  %v773 = vpop.f32.mrb[0].mxu0
  %v774 = vadd.f32 0.0, %v773
  %v775 = vpop.f32.mrb[0].mxu0
  %v776 = vadd.f32 0.0, %v775
  %v777 = vpop.f32.mrb[0].mxu0
  %v778 = vadd.f32 0.0, %v777
  %v779 = vpop.f32.mrb[0].mxu0
  %v780 = vadd.f32 0.0, %v779
  %781 = vdwg.mxu0
  %782 = vmatprep.subr.bf16.mxu0 %v442
  %783 = vmatpush1.bf16.msra.mxu0 %v441
  %784 = vmatprep.subr.bf16.mxu0 %v450
  %785 = vmatpush1.bf16.msra.mxu0 %v449
  %786 = vmatprep.subr.bf16.mxu0 %v458
  %787 = vmatpush1.bf16.msra.mxu0 %v457
  %788 = vmatprep.subr.bf16.mxu0 %v466
  %789 = vmatpush1.bf16.msra.mxu0 %v465
  %790 = vmatprep.subr.bf16.mxu0 %v474
  %791 = vmatpush1.bf16.msra.mxu0 %v473
  %792 = vmatprep.subr.bf16.mxu0 %v482
  %793 = vmatpush1.bf16.msra.mxu0 %v481
  %794 = vmatprep.subr.bf16.mxu0 %v490
  %795 = vmatpush1.bf16.msra.mxu0 %v489
  %796 = vmatprep.subr.bf16.mxu0 %v498
  %797 = vmatpush1.bf16.msra.mxu0 %v497
  %798 = vmatprep.subr.bf16.mxu0 0
  %799 = vmatpush1.bf16.msra.mxu0 0
  %800 = vmatprep.subr.bf16.mxu0 0
  %801 = vmatpush1.bf16.msra.mxu0 0
  %802 = vmatprep.subr.bf16.mxu0 0
  %803 = vmatpush1.bf16.msra.mxu0 0
  %804 = vmatprep.subr.bf16.mxu0 0
  %805 = vmatpush1.bf16.msra.mxu0 0
  %806 = vmatprep.subr.bf16.mxu0 0
  %807 = vmatpush1.bf16.msra.mxu0 0
  %808 = vmatprep.subr.bf16.mxu0 0
  %809 = vmatpush1.bf16.msra.mxu0 0
  %810 = vmatprep.subr.bf16.mxu0 0
  %811 = vmatpush1.bf16.msra.mxu0 0
  %812 = vmatprep.subr.bf16.mxu0 0
  %813 = vmatpush1.bf16.msra.mxu0 0
  %814 = vmatprep.mubr.bf16.mxu0 0
  %815 = vmatmul.mubr.bf16.gmra.mrb[0].mxu0 %v235
  %v816 = vpop.f32.mrb[0].mxu0
  %v817 = vadd.f32 0.0, %v816
  %v818 = vpop.f32.mrb[0].mxu0
  %v819 = vadd.f32 0.0, %v818
  %v820 = vpop.f32.mrb[0].mxu0
  %v821 = vadd.f32 0.0, %v820
  %v822 = vpop.f32.mrb[0].mxu0
  %v823 = vadd.f32 0.0, %v822
  %824 = vmatprep.mubr.bf16.mxu0 0
  %825 = vmatmul.mubr.bf16.gmra.mrb[0].mxu0 %v236
  %v826 = vpop.f32.mrb[0].mxu0
  %v827 = vadd.f32 0.0, %v826
  %v828 = vpop.f32.mrb[0].mxu0
  %v829 = vadd.f32 0.0, %v828
  %v830 = vpop.f32.mrb[0].mxu0
  %v831 = vadd.f32 0.0, %v830
  %v832 = vpop.f32.mrb[0].mxu0
  %v833 = vadd.f32 0.0, %v832
  %834 = vmatprep.mubr.bf16.mxu0 0
  %835 = vmatmul.mubr.bf16.gmra.mrb[0].mxu0 %v237
  %v836 = vpop.f32.mrb[0].mxu0
  %v837 = vadd.f32 0.0, %v836
  %v838 = vpop.f32.mrb[0].mxu0
  %v839 = vadd.f32 0.0, %v838
  %v840 = vpop.f32.mrb[0].mxu0
  %v841 = vadd.f32 0.0, %v840
  %v842 = vpop.f32.mrb[0].mxu0
  %v843 = vadd.f32 0.0, %v842
  %844 = vmatprep.mubr.bf16.mxu0 0
  %845 = vmatmul.mubr.bf16.gmra.mrb[0].mxu0 %v238
  %v846 = vpop.f32.mrb[0].mxu0
  %v847 = vadd.f32 0.0, %v846
  %v848 = vpop.f32.mrb[0].mxu0
  %v849 = vadd.f32 0.0, %v848
  %v850 = vpop.f32.mrb[0].mxu0
  %v851 = vadd.f32 0.0, %v850
  %v852 = vpop.f32.mrb[0].mxu0
  %v853 = vadd.f32 0.0, %v852
  %854 = vdwg.mxu0
  %v855 = vadd.f32 %v83, %v598
  %v856 = vadd.f32 %v84, %v600
  %v857 = vadd.f32 %v85, %v671
  %v858 = vadd.f32 %v86, %v673
  %v859 = vadd.f32 %v87, %v744
  %v860 = vadd.f32 %v88, %v746
  %v861 = vadd.f32 %v89, %v817
  %v862 = vadd.f32 %v90, %v819
  %v863 = vadd.f32 %v91, %v602
  %v864 = vadd.f32 %v92, %v604
  %v865 = vadd.f32 %v93, %v675
  %v866 = vadd.f32 %v94, %v677
  %v867 = vadd.f32 %v95, %v748
  %v868 = vadd.f32 %v96, %v750
  %v869 = vadd.f32 %v97, %v821
  %v870 = vadd.f32 %v98, %v823
  %v871 = vadd.f32 %v99, %v608
  %v872 = vadd.f32 %v100, %v610
  %v873 = vadd.f32 %v101, %v681
  %v874 = vadd.f32 %v102, %v683
  %v875 = vadd.f32 %v103, %v754
  %v876 = vadd.f32 %v104, %v756
  %v877 = vadd.f32 %v105, %v827
  %v878 = vadd.f32 %v106, %v829
  %v879 = vadd.f32 %v107, %v612
  %v880 = vadd.f32 %v108, %v614
  %v881 = vadd.f32 %v109, %v685
  %v882 = vadd.f32 %v110, %v687
  %v883 = vadd.f32 %v111, %v758
  %v884 = vadd.f32 %v112, %v760
  %v885 = vadd.f32 %v113, %v831
  %v886 = vadd.f32 %v114, %v833
  %v887 = vadd.f32 %v115, %v618
  %v888 = vadd.f32 %v116, %v620
  %v889 = vadd.f32 %v117, %v691
  %v890 = vadd.f32 %v118, %v693
  %v891 = vadd.f32 %v119, %v764
  %v892 = vadd.f32 %v120, %v766
  %v893 = vadd.f32 %v121, %v837
  %v894 = vadd.f32 %v122, %v839
  %v895 = vadd.f32 %v123, %v622
  %v896 = vadd.f32 %v124, %v624
  %v897 = vadd.f32 %v125, %v695
  %v898 = vadd.f32 %v126, %v697
  %v899 = vadd.f32 %v127, %v768
  %v900 = vadd.f32 %v128, %v770
  %v901 = vadd.f32 %v129, %v841
  %v902 = vadd.f32 %v130, %v843
  %v903 = vadd.f32 %v131, %v628
  %v904 = vadd.f32 %v132, %v630
  %v905 = vadd.f32 %v133, %v701
  %v906 = vadd.f32 %v134, %v703
  %v907 = vadd.f32 %v135, %v774
  %v908 = vadd.f32 %v136, %v776
  %v909 = vadd.f32 %v137, %v847
  %v910 = vadd.f32 %v138, %v849
  %v911 = vadd.f32 %v139, %v632
  %v912 = vadd.f32 %v140, %v634
  %v913 = vadd.f32 %v141, %v705
  %v914 = vadd.f32 %v142, %v707
  %v915 = vadd.f32 %v143, %v778
  %v916 = vadd.f32 %v144, %v780
  %v917 = vadd.f32 %v145, %v851
  %v918 = vadd.f32 %v146, %v853
  %919 = vst [vmem:[#allocation2] sm:$0xff] %v855
  %920 = vst [vmem:[#allocation2 + $0x8] sm:$0xff] %v856
  %921 = vst [vmem:[#allocation2 + $0x10] sm:$0xff] %v857
  %922 = vst [vmem:[#allocation2 + $0x18] sm:$0xff] %v858
  %923 = vst [vmem:[#allocation2 + $0x20] sm:$0xff] %v859
  %924 = vst [vmem:[#allocation2 + $0x28] sm:$0xff] %v860
  %925 = vst [vmem:[#allocation2 + $0x30] sm:$0xff] %v861
  %926 = vst [vmem:[#allocation2 + $0x38] sm:$0xff] %v862
  %927 = vst [vmem:[#allocation2 + $0x40] sm:$0xff] %v863
  %928 = vst [vmem:[#allocation2 + $0x48] sm:$0xff] %v864
  %929 = vst [vmem:[#allocation2 + $0x50] sm:$0xff] %v865
  %930 = vst [vmem:[#allocation2 + $0x58] sm:$0xff] %v866
  %931 = vst [vmem:[#allocation2 + $0x60] sm:$0xff] %v867
  %932 = vst [vmem:[#allocation2 + $0x68] sm:$0xff] %v868
  %933 = vst [vmem:[#allocation2 + $0x70] sm:$0xff] %v869
  %934 = vst [vmem:[#allocation2 + $0x78] sm:$0xff] %v870
  %935 = vst [vmem:[#allocation2 + $0x80] sm:$0xff] %v871
  %936 = vst [vmem:[#allocation2 + $0x88] sm:$0xff] %v872
  %937 = vst [vmem:[#allocation2 + $0x90] sm:$0xff] %v873
  %938 = vst [vmem:[#allocation2 + $0x98] sm:$0xff] %v874
  %939 = vst [vmem:[#allocation2 + $0xa0] sm:$0xff] %v875
  %940 = vst [vmem:[#allocation2 + $0xa8] sm:$0xff] %v876
  %941 = vst [vmem:[#allocation2 + $0xb0] sm:$0xff] %v877
  %942 = vst [vmem:[#allocation2 + $0xb8] sm:$0xff] %v878
  %943 = vst [vmem:[#allocation2 + $0xc0] sm:$0xff] %v879
  %944 = vst [vmem:[#allocation2 + $0xc8] sm:$0xff] %v880
  %945 = vst [vmem:[#allocation2 + $0xd0] sm:$0xff] %v881
  %946 = vst [vmem:[#allocation2 + $0xd8] sm:$0xff] %v882
  %947 = vst [vmem:[#allocation2 + $0xe0] sm:$0xff] %v883
  %948 = vst [vmem:[#allocation2 + $0xe8] sm:$0xff] %v884
  %949 = vst [vmem:[#allocation2 + $0xf0] sm:$0xff] %v885
  %950 = vst [vmem:[#allocation2 + $0xf8] sm:$0xff] %v886
  %951 = vst [vmem:[#allocation2 + $0x100] sm:$0xff] %v887
  %952 = vst [vmem:[#allocation2 + $0x108] sm:$0xff] %v888
  %953 = vst [vmem:[#allocation2 + $0x110] sm:$0xff] %v889
  %954 = vst [vmem:[#allocation2 + $0x118] sm:$0xff] %v890
  %955 = vst [vmem:[#allocation2 + $0x120] sm:$0xff] %v891
  %956 = vst [vmem:[#allocation2 + $0x128] sm:$0xff] %v892
  %957 = vst [vmem:[#allocation2 + $0x130] sm:$0xff] %v893
  %958 = vst [vmem:[#allocation2 + $0x138] sm:$0xff] %v894
  %959 = vst [vmem:[#allocation2 + $0x140] sm:$0xff] %v895
  %960 = vst [vmem:[#allocation2 + $0x148] sm:$0xff] %v896
  %961 = vst [vmem:[#allocation2 + $0x150] sm:$0xff] %v897
  %962 = vst [vmem:[#allocation2 + $0x158] sm:$0xff] %v898
  %963 = vst [vmem:[#allocation2 + $0x160] sm:$0xff] %v899
  %964 = vst [vmem:[#allocation2 + $0x168] sm:$0xff] %v900
  %965 = vst [vmem:[#allocation2 + $0x170] sm:$0xff] %v901
  %966 = vst [vmem:[#allocation2 + $0x178] sm:$0xff] %v902
  %967 = vst [vmem:[#allocation2 + $0x180] sm:$0xff] %v903
  %968 = vst [vmem:[#allocation2 + $0x188] sm:$0xff] %v904
  %969 = vst [vmem:[#allocation2 + $0x190] sm:$0xff] %v905
  %970 = vst [vmem:[#allocation2 + $0x198] sm:$0xff] %v906
  %971 = vst [vmem:[#allocation2 + $0x1a0] sm:$0xff] %v907
  %972 = vst [vmem:[#allocation2 + $0x1a8] sm:$0xff] %v908
  %973 = vst [vmem:[#allocation2 + $0x1b0] sm:$0xff] %v909
  %974 = vst [vmem:[#allocation2 + $0x1b8] sm:$0xff] %v910
  %975 = vst [vmem:[#allocation2 + $0x1c0] sm:$0xff] %v911
  %976 = vst [vmem:[#allocation2 + $0x1c8] sm:$0xff] %v912
  %977 = vst [vmem:[#allocation2 + $0x1d0] sm:$0xff] %v913
  %978 = vst [vmem:[#allocation2 + $0x1d8] sm:$0xff] %v914
  %979 = vst [vmem:[#allocation2 + $0x1e0] sm:$0xff] %v915
  %980 = vst [vmem:[#allocation2 + $0x1e8] sm:$0xff] %v916
  %981 = vst [vmem:[#allocation2 + $0x1f0] sm:$0xff] %v917
  %982 = vst [vmem:[#allocation2 + $0x1f8] sm:$0xff] %v918
  // Predicated region
  $region18: #{_forward_impl.9} parent=0 // pred_check
    %p983 = pneg %p15
  $region19: #{_forward_impl.9} parent=0 // pred_check_branch
    %985 = sbr.rel (%p983) target = $region21
  $region20: #{_forward_impl.9} parent=0 // pred_region
    %v986 = vld [vmem:[#allocation2] sm:$0xff]
    %v987 = vld [vmem:[#allocation2 + $0x8] sm:$0xff]
    %v988 = vld [vmem:[#allocation2 + $0x10] sm:$0xff]
    %v989 = vld [vmem:[#allocation2 + $0x18] sm:$0xff]
    %v990 = vld [vmem:[#allocation2 + $0x20] sm:$0xff]
    %v991 = vld [vmem:[#allocation2 + $0x28] sm:$0xff]
    %v992 = vld [vmem:[#allocation2 + $0x30] sm:$0xff]
    %v993 = vld [vmem:[#allocation2 + $0x38] sm:$0xff]
    %v994 = vld [vmem:[#allocation2 + $0x40] sm:$0xff]
    %v995 = vld [vmem:[#allocation2 + $0x48] sm:$0xff]
    %v996 = vld [vmem:[#allocation2 + $0x50] sm:$0xff]
    %v997 = vld [vmem:[#allocation2 + $0x58] sm:$0xff]
    %v998 = vld [vmem:[#allocation2 + $0x60] sm:$0xff]
    %v999 = vld [vmem:[#allocation2 + $0x68] sm:$0xff]
    %v1000 = vld [vmem:[#allocation2 + $0x70] sm:$0xff]
    %v1001 = vld [vmem:[#allocation2 + $0x78] sm:$0xff]
    %v1002 = vld [vmem:[#allocation2 + $0x80] sm:$0xff]
    %v1003 = vld [vmem:[#allocation2 + $0x88] sm:$0xff]
    %v1004 = vld [vmem:[#allocation2 + $0x90] sm:$0xff]
    %v1005 = vld [vmem:[#allocation2 + $0x98] sm:$0xff]
    %v1006 = vld [vmem:[#allocation2 + $0xa0] sm:$0xff]
    %v1007 = vld [vmem:[#allocation2 + $0xa8] sm:$0xff]
    %v1008 = vld [vmem:[#allocation2 + $0xb0] sm:$0xff]
    %v1009 = vld [vmem:[#allocation2 + $0xb8] sm:$0xff]
    %v1010 = vld [vmem:[#allocation2 + $0xc0] sm:$0xff]
    %v1011 = vld [vmem:[#allocation2 + $0xc8] sm:$0xff]
    %v1012 = vld [vmem:[#allocation2 + $0xd0] sm:$0xff]
    %v1013 = vld [vmem:[#allocation2 + $0xd8] sm:$0xff]
    %v1014 = vld [vmem:[#allocation2 + $0xe0] sm:$0xff]
    %v1015 = vld [vmem:[#allocation2 + $0xe8] sm:$0xff]
    %v1016 = vld [vmem:[#allocation2 + $0xf0] sm:$0xff]
    %v1017 = vld [vmem:[#allocation2 + $0xf8] sm:$0xff]
    %v1018 = vld [vmem:[#allocation2 + $0x100] sm:$0xff]
    %v1019 = vld [vmem:[#allocation2 + $0x108] sm:$0xff]
    %v1020 = vld [vmem:[#allocation2 + $0x110] sm:$0xff]
    %v1021 = vld [vmem:[#allocation2 + $0x118] sm:$0xff]
    %v1022 = vld [vmem:[#allocation2 + $0x120] sm:$0xff]
    %v1023 = vld [vmem:[#allocation2 + $0x128] sm:$0xff]
    %v1024 = vld [vmem:[#allocation2 + $0x130] sm:$0xff]
    %v1025 = vld [vmem:[#allocation2 + $0x138] sm:$0xff]
    %v1026 = vld [vmem:[#allocation2 + $0x140] sm:$0xff]
    %v1027 = vld [vmem:[#allocation2 + $0x148] sm:$0xff]
    %v1028 = vld [vmem:[#allocation2 + $0x150] sm:$0xff]
    %v1029 = vld [vmem:[#allocation2 + $0x158] sm:$0xff]
    %v1030 = vld [vmem:[#allocation2 + $0x160] sm:$0xff]
    %v1031 = vld [vmem:[#allocation2 + $0x168] sm:$0xff]
    %v1032 = vld [vmem:[#allocation2 + $0x170] sm:$0xff]
    %v1033 = vld [vmem:[#allocation2 + $0x178] sm:$0xff]
    %v1034 = vld [vmem:[#allocation2 + $0x180] sm:$0xff]
    %v1035 = vld [vmem:[#allocation2 + $0x188] sm:$0xff]
    %v1036 = vld [vmem:[#allocation2 + $0x190] sm:$0xff]
    %v1037 = vld [vmem:[#allocation2 + $0x198] sm:$0xff]
    %v1038 = vld [vmem:[#allocation2 + $0x1a0] sm:$0xff]
    %v1039 = vld [vmem:[#allocation2 + $0x1a8] sm:$0xff]
    %v1040 = vld [vmem:[#allocation2 + $0x1b0] sm:$0xff]
    %v1041 = vld [vmem:[#allocation2 + $0x1b8] sm:$0xff]
    %v1042 = vld [vmem:[#allocation2 + $0x1c0] sm:$0xff]
    %v1043 = vld [vmem:[#allocation2 + $0x1c8] sm:$0xff]
    %v1044 = vld [vmem:[#allocation2 + $0x1d0] sm:$0xff]
    %v1045 = vld [vmem:[#allocation2 + $0x1d8] sm:$0xff]
    %v1046 = vld [vmem:[#allocation2 + $0x1e0] sm:$0xff]
    %v1047 = vld [vmem:[#allocation2 + $0x1e8] sm:$0xff]
    %v1048 = vld [vmem:[#allocation2 + $0x1f0] sm:$0xff]
    %v1049 = vld [vmem:[#allocation2 + $0x1f8] sm:$0xff]
    %v1050 = vld [vmem:[%s2] sm:$0xff]
    %v1052 = vlaneseq
    %v1053 = vshrl.u32 %v1052, 7
    %v1054 = vsub.s32 0, %v1053
    %v1055 = vrot.slane %v1050, %v1054
    %v1056 = vlaneseq
    %v1057 = vshrl.u32 %v1056, 7
    %v1058 = vsub.s32 1, %v1057
    %v1059 = vrot.slane %v1050, %v1058
    %v1060 = vlaneseq
    %v1061 = vshrl.u32 %v1060, 7
    %v1062 = vsub.s32 2, %v1061
    %v1063 = vrot.slane %v1050, %v1062
    %v1064 = vlaneseq
    %v1065 = vshrl.u32 %v1064, 7
    %v1066 = vsub.s32 3, %v1065
    %v1067 = vrot.slane %v1050, %v1066
    %v1068 = vlaneseq
    %v1069 = vshrl.u32 %v1068, 7
    %v1070 = vsub.s32 4, %v1069
    %v1071 = vrot.slane %v1050, %v1070
    %v1072 = vlaneseq
    %v1073 = vshrl.u32 %v1072, 7
    %v1074 = vsub.s32 5, %v1073
    %v1075 = vrot.slane %v1050, %v1074
    %v1076 = vlaneseq
    %v1077 = vshrl.u32 %v1076, 7
    %v1078 = vsub.s32 6, %v1077
    %v1079 = vrot.slane %v1050, %v1078
    %v1080 = vlaneseq
    %v1081 = vshrl.u32 %v1080, 7
    %v1082 = vsub.s32 7, %v1081
    %v1083 = vrot.slane %v1050, %v1082
    %v1092 = vadd.f32 %v986, %v1055
    %v1093 = vadd.f32 %v987, %v1059
    %v1094 = vadd.f32 %v988, %v1063
    %v1095 = vadd.f32 %v989, %v1067
    %v1096 = vadd.f32 %v990, %v1071
    %v1097 = vadd.f32 %v991, %v1075
    %v1098 = vadd.f32 %v992, %v1079
    %v1099 = vadd.f32 %v993, %v1083
    %v1100 = vadd.f32 %v994, %v1055
    %v1101 = vadd.f32 %v995, %v1059
    %v1102 = vadd.f32 %v996, %v1063
    %v1103 = vadd.f32 %v997, %v1067
    %v1104 = vadd.f32 %v998, %v1071
    %v1105 = vadd.f32 %v999, %v1075
    %v1106 = vadd.f32 %v1000, %v1079
    %v1107 = vadd.f32 %v1001, %v1083
    %v1108 = vadd.f32 %v1002, %v1055
    %v1109 = vadd.f32 %v1003, %v1059
    %v1110 = vadd.f32 %v1004, %v1063
    %v1111 = vadd.f32 %v1005, %v1067
    %v1112 = vadd.f32 %v1006, %v1071
    %v1113 = vadd.f32 %v1007, %v1075
    %v1114 = vadd.f32 %v1008, %v1079
    %v1115 = vadd.f32 %v1009, %v1083
    %v1116 = vadd.f32 %v1010, %v1055
    %v1117 = vadd.f32 %v1011, %v1059
    %v1118 = vadd.f32 %v1012, %v1063
    %v1119 = vadd.f32 %v1013, %v1067
    %v1120 = vadd.f32 %v1014, %v1071
    %v1121 = vadd.f32 %v1015, %v1075
    %v1122 = vadd.f32 %v1016, %v1079
    %v1123 = vadd.f32 %v1017, %v1083
    %v1124 = vadd.f32 %v1018, %v1055
    %v1125 = vadd.f32 %v1019, %v1059
    %v1126 = vadd.f32 %v1020, %v1063
    %v1127 = vadd.f32 %v1021, %v1067
    %v1128 = vadd.f32 %v1022, %v1071
    %v1129 = vadd.f32 %v1023, %v1075
    %v1130 = vadd.f32 %v1024, %v1079
    %v1131 = vadd.f32 %v1025, %v1083
    %v1132 = vadd.f32 %v1026, %v1055
    %v1133 = vadd.f32 %v1027, %v1059
    %v1134 = vadd.f32 %v1028, %v1063
    %v1135 = vadd.f32 %v1029, %v1067
    %v1136 = vadd.f32 %v1030, %v1071
    %v1137 = vadd.f32 %v1031, %v1075
    %v1138 = vadd.f32 %v1032, %v1079
    %v1139 = vadd.f32 %v1033, %v1083
    %v1140 = vadd.f32 %v1034, %v1055
    %v1141 = vadd.f32 %v1035, %v1059
    %v1142 = vadd.f32 %v1036, %v1063
    %v1143 = vadd.f32 %v1037, %v1067
    %v1144 = vadd.f32 %v1038, %v1071
    %v1145 = vadd.f32 %v1039, %v1075
    %v1146 = vadd.f32 %v1040, %v1079
    %v1147 = vadd.f32 %v1041, %v1083
    %v1148 = vadd.f32 %v1042, %v1055
    %v1149 = vadd.f32 %v1043, %v1059
    %v1150 = vadd.f32 %v1044, %v1063
    %v1151 = vadd.f32 %v1045, %v1067
    %v1152 = vadd.f32 %v1046, %v1071
    %v1153 = vadd.f32 %v1047, %v1075
    %v1154 = vadd.f32 %v1048, %v1079
    %v1155 = vadd.f32 %v1049, %v1083
    %1156 = vst [vmem:[%s3] sm:$0xff] %v1092
    %1157 = vst [vmem:[%s3 + $0x8] sm:$0xff] %v1093
    %1158 = vst [vmem:[%s3 + $0x10] sm:$0xff] %v1094
    %1159 = vst [vmem:[%s3 + $0x18] sm:$0xff] %v1095
    %1160 = vst [vmem:[%s3 + $0x20] sm:$0xff] %v1096
    %1161 = vst [vmem:[%s3 + $0x28] sm:$0xff] %v1097
    %1162 = vst [vmem:[%s3 + $0x30] sm:$0xff] %v1098
    %1163 = vst [vmem:[%s3 + $0x38] sm:$0xff] %v1099
    %1164 = vst [vmem:[%s3 + $0x40] sm:$0xff] %v1100
    %1165 = vst [vmem:[%s3 + $0x48] sm:$0xff] %v1101
    %1166 = vst [vmem:[%s3 + $0x50] sm:$0xff] %v1102
    %1167 = vst [vmem:[%s3 + $0x58] sm:$0xff] %v1103
    %1168 = vst [vmem:[%s3 + $0x60] sm:$0xff] %v1104
    %1169 = vst [vmem:[%s3 + $0x68] sm:$0xff] %v1105
    %1170 = vst [vmem:[%s3 + $0x70] sm:$0xff] %v1106
    %1171 = vst [vmem:[%s3 + $0x78] sm:$0xff] %v1107
    %1172 = vst [vmem:[%s3 + $0x80] sm:$0xff] %v1108
    %1173 = vst [vmem:[%s3 + $0x88] sm:$0xff] %v1109
    %1174 = vst [vmem:[%s3 + $0x90] sm:$0xff] %v1110
    %1175 = vst [vmem:[%s3 + $0x98] sm:$0xff] %v1111
    %1176 = vst [vmem:[%s3 + $0xa0] sm:$0xff] %v1112
    %1177 = vst [vmem:[%s3 + $0xa8] sm:$0xff] %v1113
    %1178 = vst [vmem:[%s3 + $0xb0] sm:$0xff] %v1114
    %1179 = vst [vmem:[%s3 + $0xb8] sm:$0xff] %v1115
    %1180 = vst [vmem:[%s3 + $0xc0] sm:$0xff] %v1116
    %1181 = vst [vmem:[%s3 + $0xc8] sm:$0xff] %v1117
    %1182 = vst [vmem:[%s3 + $0xd0] sm:$0xff] %v1118
    %1183 = vst [vmem:[%s3 + $0xd8] sm:$0xff] %v1119
    %1184 = vst [vmem:[%s3 + $0xe0] sm:$0xff] %v1120
    %1185 = vst [vmem:[%s3 + $0xe8] sm:$0xff] %v1121
    %1186 = vst [vmem:[%s3 + $0xf0] sm:$0xff] %v1122
    %1187 = vst [vmem:[%s3 + $0xf8] sm:$0xff] %v1123
    %1188 = vst [vmem:[%s3 + $0x100] sm:$0xff] %v1124
    %1189 = vst [vmem:[%s3 + $0x108] sm:$0xff] %v1125
    %1190 = vst [vmem:[%s3 + $0x110] sm:$0xff] %v1126
    %1191 = vst [vmem:[%s3 + $0x118] sm:$0xff] %v1127
    %1192 = vst [vmem:[%s3 + $0x120] sm:$0xff] %v1128
    %1193 = vst [vmem:[%s3 + $0x128] sm:$0xff] %v1129
    %1194 = vst [vmem:[%s3 + $0x130] sm:$0xff] %v1130
    %1195 = vst [vmem:[%s3 + $0x138] sm:$0xff] %v1131
    %1196 = vst [vmem:[%s3 + $0x140] sm:$0xff] %v1132
    %1197 = vst [vmem:[%s3 + $0x148] sm:$0xff] %v1133
    %1198 = vst [vmem:[%s3 + $0x150] sm:$0xff] %v1134
    %1199 = vst [vmem:[%s3 + $0x158] sm:$0xff] %v1135
    %1200 = vst [vmem:[%s3 + $0x160] sm:$0xff] %v1136
    %1201 = vst [vmem:[%s3 + $0x168] sm:$0xff] %v1137
    %1202 = vst [vmem:[%s3 + $0x170] sm:$0xff] %v1138
    %1203 = vst [vmem:[%s3 + $0x178] sm:$0xff] %v1139
    %1204 = vst [vmem:[%s3 + $0x180] sm:$0xff] %v1140
    %1205 = vst [vmem:[%s3 + $0x188] sm:$0xff] %v1141
    %1206 = vst [vmem:[%s3 + $0x190] sm:$0xff] %v1142
    %1207 = vst [vmem:[%s3 + $0x198] sm:$0xff] %v1143
    %1208 = vst [vmem:[%s3 + $0x1a0] sm:$0xff] %v1144
    %1209 = vst [vmem:[%s3 + $0x1a8] sm:$0xff] %v1145
    %1210 = vst [vmem:[%s3 + $0x1b0] sm:$0xff] %v1146
    %1211 = vst [vmem:[%s3 + $0x1b8] sm:$0xff] %v1147
    %1212 = vst [vmem:[%s3 + $0x1c0] sm:$0xff] %v1148
    %1213 = vst [vmem:[%s3 + $0x1c8] sm:$0xff] %v1149
    %1214 = vst [vmem:[%s3 + $0x1d0] sm:$0xff] %v1150
    %1215 = vst [vmem:[%s3 + $0x1d8] sm:$0xff] %v1151
    %1216 = vst [vmem:[%s3 + $0x1e0] sm:$0xff] %v1152
    %1217 = vst [vmem:[%s3 + $0x1e8] sm:$0xff] %v1153
    %1218 = vst [vmem:[%s3 + $0x1f0] sm:$0xff] %v1154
    %1219 = vst [vmem:[%s3 + $0x1f8] sm:$0xff] %v1155
  $region21: #{_forward_impl.9} parent=0 // pred_fallthru
    _
  // Predicated region
  $region22: #{_forward_impl.9} parent=0 // pred_check
    _
  $region23: #{_forward_impl.9} parent=0 // pred_check_branch
    %1221 = sbr.rel (0) target = $region25
  $region24: #{_forward_impl.9} parent=0 // pred_region
    _
  $region25: #{_forward_impl.9} parent=0 // pred_fallthru
    _
  // Predicated region
  $region26: #{_forward_impl.9} parent=0 // pred_check
    _
  $region27: #{_forward_impl.9} parent=0 // pred_check_branch
    %1223 = sbr.rel (0) target = $region29
  $region28: #{_forward_impl.9} parent=0 // pred_region
    _
  $region29: #{_forward_impl.9} parent=0 // pred_fallthru
    _

// kernel: _forward_impl.6
$region0: #{_forward_impl.6}
  #allocation0 [shape = 'u32[]', space=smem, size = 0x4, offset = 0x4, fixed_abs, tag = 'smem constant byte address 0x4 - core index']
  #allocation1 [shape = 'u32[144,128]{1,0:T(1,128)}', space=vmem, size = 0x12000, scoped, tag = 'internal scratch']
  #allocation2 [shape = 'bf16[128,512]{1,0:T(16,128)(2,1)}', space=vmem, size = 0x20000, scoped, tag = 'scratch operand']
  #allocation3 [shape = 'f32[8,128]{1,0:T(8,128)}', space=vmem, size = 0x1000, scoped, tag = 'scratch operand']
  #allocation4 [shape = 'f32[8,128]{1,0:T(8,128)}', space=vmem, size = 0x1000, scoped, tag = 'scratch operand']
  #allocation5 [shape = 's32[1]{0}', space=sflag, size = 0x4, scoped, tag = 'scratch operand']
  #allocation6 [shape = 's32[]', space=sflag, size = 0x4, offset = 0, fixed_abs, tag = 'sflag constant byte address 0x0 - dummy sync flag']
  %s0 = inlined_call_operand.vmem [shape: bf16[8,8,512], index: 0, kind: input, shape index: {}]
  %s1 = inlined_call_operand.vmem [shape: bf16[128,512], index: 1, kind: input, shape index: {}]
  %s2 = inlined_call_operand.vmem [shape: f32[8,128], index: 2, kind: input, shape index: {}]
  %s3 = inlined_call_operand.vmem [shape: f32[8,128], index: 3, kind: input, shape index: {}]
  %s4 = inlined_call_operand.vmem [shape: bf16[8,8,128], index: 4, kind: output, shape index: {0}]
  %s5 = inlined_call_operand.vmem [shape: f32[8,128], index: 5, kind: output, shape index: {1}]
  %s6 = inlined_call_operand.vmem [shape: f32[8,128], index: 6, kind: output, shape index: {2}]
  %7 = xla_tuple %s4, %s5, %s6
  %s8 = sld [smem:[#allocation0]]
  $region83: #{_forward_impl.6} parent=0
    _
  %s10 = ssub.s32 1, %s8
  %s11 = scalar_select 0, %s10, %s8
  // Predicated region
  $region2: #{_forward_impl.6} parent=0 // pred_check
    _
  $region3: #{_forward_impl.6} parent=0 // pred_check_branch
    %13 = sbr.rel (0) target = $region5
  $region4: #{_forward_impl.6} parent=0 // pred_region
    _
  $region5: #{_forward_impl.6} parent=0 // pred_fallthru
    _
  // Predicated region
  $region6: #{_forward_impl.6} parent=0 // pred_check
    _
  $region7: #{_forward_impl.6} parent=0 // pred_check_branch
    %15 = sbr.rel (0) target = $region9
  $region8: #{_forward_impl.6} parent=0 // pred_region
    _
  $region9: #{_forward_impl.6} parent=0 // pred_fallthru
    _
  // Predicated region
  $region10: #{_forward_impl.6} parent=0 // pred_check
    _
  $region11: #{_forward_impl.6} parent=0 // pred_check_branch
    %17 = sbr.rel (0) target = $region13
  $region12: #{_forward_impl.6} parent=0 // pred_region
    _
  $region13: #{_forward_impl.6} parent=0 // pred_fallthru
    _
  %p19 = scmp.eq.s32.totalorder 0, 0
  // Predicated region
  $region14: #{_forward_impl.6} parent=0 // pred_check
    %p20 = pneg %p19
  $region15: #{_forward_impl.6} parent=0 // pred_check_branch
    %22 = sbr.rel (%p20) target = $region17
  $region16: #{_forward_impl.6} parent=0 // pred_region
    %p24 = scmp.lt.u32.totalorder 4, 8
    %p25 = pneg %p24
    // Predicated region
    $region18: #{_forward_impl.6} parent=16 // pred_check
      _
    $region19: #{_forward_impl.6} parent=16 // pred_check_branch
      %27 = sbr.rel (%p24) target = $region21
    $region20: #{_forward_impl.6} parent=16 // pred_region
      %s168 = sand.u32 4, 7
      %p169 = scmp.eq.s32.totalorder %s168, 0
      %p170 = pneg %p169
      // Predicated region
      $region33: #{_forward_impl.6} parent=20 // pred_check
        _
      $region34: #{_forward_impl.6} parent=20 // pred_check_branch
        %172 = sbr.rel (%p169) target = $region36
      $region35: #{_forward_impl.6} parent=20 // pred_region
        %s173 = sand.u32 4, 7
        %s174 = ssub.s32 4, %s173
        %s175 = scalar_lea.vmem %s1, %s174
        %s176 = ssub.s32 4, %s173
        %s177 = scalar_lea.vmem [#allocation2], %s176
        loop: start=0, step=1, limit=1
        $region37: #{_forward_impl.6} parent=35 // loop_pre_header
          _
        $region38: #{_forward_impl.6} parent=35 // loop_header
          %s179 = sphi 0, %s183
          %p180 = scmp.ge.s32.totalorder %s179, 1
          %s184 = sphi %s1, %s1
          %s185 = sphi [#allocation2], [#allocation2]
        $region39: #{_forward_impl.6} parent=35 // loop_header_branch
          %182 = sbr.rel (%p180) target = $region43
        $region40: #{_forward_impl.6} parent=35 // loop_body
          _
        $region41: #{_forward_impl.6} parent=35 // loop_footer
          %s183 = sadd.s32 1, %s179
        $region42: #{_forward_impl.6} parent=35 // loop_footer_branch
          %178 = sbr.rel target = $region38
        $region43: #{_forward_impl.6} parent=35 // loop_exit
          _
        %s186 = sshllo.u32 0, %s173
        loop: start=0, step=1, limit=1
        $region44: #{_forward_impl.6} parent=35 // loop_pre_header
          _
        $region45: #{_forward_impl.6} parent=35 // loop_header
          %s188 = sphi 0, %s192
          %p189 = scmp.ge.s32.totalorder %s188, 1
          %s193 = sphi %s175, %s175
          %s194 = sphi %s177, %s177
        $region46: #{_forward_impl.6} parent=35 // loop_header_branch
          %191 = sbr.rel (%p189) target = $region50
        $region47: #{_forward_impl.6} parent=35 // loop_body
          %v195 = vld [vmem:[%s193] sm:%s186]
          %196 = vst [vmem:[%s194] sm:%s186] %v195
          %v197 = vld [vmem:[%s193 + $0x10] sm:%s186]
          %198 = vst [vmem:[%s194 + $0x4] sm:%s186] %v197
          %v199 = vld [vmem:[%s193 + $0x4] sm:%s186]
          %200 = vst [vmem:[%s194 + $0x8] sm:%s186] %v199
          %v201 = vld [vmem:[%s193 + $0x14] sm:%s186]
          %202 = vst [vmem:[%s194 + $0xc] sm:%s186] %v201
          %v203 = vld [vmem:[%s193 + $0x8] sm:%s186]
          %204 = vst [vmem:[%s194 + $0x10] sm:%s186] %v203
          %v205 = vld [vmem:[%s193 + $0x18] sm:%s186]
          %206 = vst [vmem:[%s194 + $0x14] sm:%s186] %v205
          %v207 = vld [vmem:[%s193 + $0xc] sm:%s186]
          %208 = vst [vmem:[%s194 + $0x18] sm:%s186] %v207
          %v209 = vld [vmem:[%s193 + $0x1c] sm:%s186]
          %210 = vst [vmem:[%s194 + $0x1c] sm:%s186] %v209
          %v211 = vld [vmem:[%s193 + $0x20] sm:%s186]
          %212 = vst [vmem:[%s194 + $0x20] sm:%s186] %v211
          %v213 = vld [vmem:[%s193 + $0x30] sm:%s186]
          %214 = vst [vmem:[%s194 + $0x24] sm:%s186] %v213
          %v215 = vld [vmem:[%s193 + $0x24] sm:%s186]
          %216 = vst [vmem:[%s194 + $0x28] sm:%s186] %v215
          %v217 = vld [vmem:[%s193 + $0x34] sm:%s186]
          %218 = vst [vmem:[%s194 + $0x2c] sm:%s186] %v217
          %v219 = vld [vmem:[%s193 + $0x28] sm:%s186]
          %220 = vst [vmem:[%s194 + $0x30] sm:%s186] %v219
          %v221 = vld [vmem:[%s193 + $0x38] sm:%s186]
          %222 = vst [vmem:[%s194 + $0x34] sm:%s186] %v221
          %v223 = vld [vmem:[%s193 + $0x2c] sm:%s186]
          %224 = vst [vmem:[%s194 + $0x38] sm:%s186] %v223
          %v225 = vld [vmem:[%s193 + $0x3c] sm:%s186]
          %226 = vst [vmem:[%s194 + $0x3c] sm:%s186] %v225
          %v227 = vld [vmem:[%s193 + $0x40] sm:%s186]
          %228 = vst [vmem:[%s194 + $0x40] sm:%s186] %v227
          %v229 = vld [vmem:[%s193 + $0x50] sm:%s186]
          %230 = vst [vmem:[%s194 + $0x44] sm:%s186] %v229
          %v231 = vld [vmem:[%s193 + $0x44] sm:%s186]
          %232 = vst [vmem:[%s194 + $0x48] sm:%s186] %v231
          %v233 = vld [vmem:[%s193 + $0x54] sm:%s186]
          %234 = vst [vmem:[%s194 + $0x4c] sm:%s186] %v233
          %v235 = vld [vmem:[%s193 + $0x48] sm:%s186]
          %236 = vst [vmem:[%s194 + $0x50] sm:%s186] %v235
          %v237 = vld [vmem:[%s193 + $0x58] sm:%s186]
          %238 = vst [vmem:[%s194 + $0x54] sm:%s186] %v237
          %v239 = vld [vmem:[%s193 + $0x4c] sm:%s186]
          %240 = vst [vmem:[%s194 + $0x58] sm:%s186] %v239
          %v241 = vld [vmem:[%s193 + $0x5c] sm:%s186]
          %242 = vst [vmem:[%s194 + $0x5c] sm:%s186] %v241
          %v243 = vld [vmem:[%s193 + $0x60] sm:%s186]
          %244 = vst [vmem:[%s194 + $0x60] sm:%s186] %v243
          %v245 = vld [vmem:[%s193 + $0x70] sm:%s186]
          %246 = vst [vmem:[%s194 + $0x64] sm:%s186] %v245
          %v247 = vld [vmem:[%s193 + $0x64] sm:%s186]
          %248 = vst [vmem:[%s194 + $0x68] sm:%s186] %v247
          %v249 = vld [vmem:[%s193 + $0x74] sm:%s186]
          %250 = vst [vmem:[%s194 + $0x6c] sm:%s186] %v249
          %v251 = vld [vmem:[%s193 + $0x68] sm:%s186]
          %252 = vst [vmem:[%s194 + $0x70] sm:%s186] %v251
          %v253 = vld [vmem:[%s193 + $0x78] sm:%s186]
          %254 = vst [vmem:[%s194 + $0x74] sm:%s186] %v253
          %v255 = vld [vmem:[%s193 + $0x6c] sm:%s186]
          %256 = vst [vmem:[%s194 + $0x78] sm:%s186] %v255
          %v257 = vld [vmem:[%s193 + $0x7c] sm:%s186]
          %258 = vst [vmem:[%s194 + $0x7c] sm:%s186] %v257
          %v259 = vld [vmem:[%s193 + $0x80] sm:%s186]
          %260 = vst [vmem:[%s194 + $0x80] sm:%s186] %v259
          %v261 = vld [vmem:[%s193 + $0x90] sm:%s186]
          %262 = vst [vmem:[%s194 + $0x84] sm:%s186] %v261
          %v263 = vld [vmem:[%s193 + $0x84] sm:%s186]
          %264 = vst [vmem:[%s194 + $0x88] sm:%s186] %v263
          %v265 = vld [vmem:[%s193 + $0x94] sm:%s186]
          %266 = vst [vmem:[%s194 + $0x8c] sm:%s186] %v265
          %v267 = vld [vmem:[%s193 + $0x88] sm:%s186]
          %268 = vst [vmem:[%s194 + $0x90] sm:%s186] %v267
          %v269 = vld [vmem:[%s193 + $0x98] sm:%s186]
          %270 = vst [vmem:[%s194 + $0x94] sm:%s186] %v269
          %v271 = vld [vmem:[%s193 + $0x8c] sm:%s186]
          %272 = vst [vmem:[%s194 + $0x98] sm:%s186] %v271
          %v273 = vld [vmem:[%s193 + $0x9c] sm:%s186]
          %274 = vst [vmem:[%s194 + $0x9c] sm:%s186] %v273
          %v275 = vld [vmem:[%s193 + $0xa0] sm:%s186]
          %276 = vst [vmem:[%s194 + $0xa0] sm:%s186] %v275
          %v277 = vld [vmem:[%s193 + $0xb0] sm:%s186]
          %278 = vst [vmem:[%s194 + $0xa4] sm:%s186] %v277
          %v279 = vld [vmem:[%s193 + $0xa4] sm:%s186]
          %280 = vst [vmem:[%s194 + $0xa8] sm:%s186] %v279
          %v281 = vld [vmem:[%s193 + $0xb4] sm:%s186]
          %282 = vst [vmem:[%s194 + $0xac] sm:%s186] %v281
          %v283 = vld [vmem:[%s193 + $0xa8] sm:%s186]
          %284 = vst [vmem:[%s194 + $0xb0] sm:%s186] %v283
          %v285 = vld [vmem:[%s193 + $0xb8] sm:%s186]
          %286 = vst [vmem:[%s194 + $0xb4] sm:%s186] %v285
          %v287 = vld [vmem:[%s193 + $0xac] sm:%s186]
          %288 = vst [vmem:[%s194 + $0xb8] sm:%s186] %v287
          %v289 = vld [vmem:[%s193 + $0xbc] sm:%s186]
          %290 = vst [vmem:[%s194 + $0xbc] sm:%s186] %v289
          %v291 = vld [vmem:[%s193 + $0xc0] sm:%s186]
          %292 = vst [vmem:[%s194 + $0xc0] sm:%s186] %v291
          %v293 = vld [vmem:[%s193 + $0xd0] sm:%s186]
          %294 = vst [vmem:[%s194 + $0xc4] sm:%s186] %v293
          %v295 = vld [vmem:[%s193 + $0xc4] sm:%s186]
          %296 = vst [vmem:[%s194 + $0xc8] sm:%s186] %v295
          %v297 = vld [vmem:[%s193 + $0xd4] sm:%s186]
          %298 = vst [vmem:[%s194 + $0xcc] sm:%s186] %v297
          %v299 = vld [vmem:[%s193 + $0xc8] sm:%s186]
          %300 = vst [vmem:[%s194 + $0xd0] sm:%s186] %v299
          %v301 = vld [vmem:[%s193 + $0xd8] sm:%s186]
          %302 = vst [vmem:[%s194 + $0xd4] sm:%s186] %v301
          %v303 = vld [vmem:[%s193 + $0xcc] sm:%s186]
          %304 = vst [vmem:[%s194 + $0xd8] sm:%s186] %v303
          %v305 = vld [vmem:[%s193 + $0xdc] sm:%s186]
          %306 = vst [vmem:[%s194 + $0xdc] sm:%s186] %v305
          %v307 = vld [vmem:[%s193 + $0xe0] sm:%s186]
          %308 = vst [vmem:[%s194 + $0xe0] sm:%s186] %v307
          %v309 = vld [vmem:[%s193 + $0xf0] sm:%s186]
          %310 = vst [vmem:[%s194 + $0xe4] sm:%s186] %v309
          %v311 = vld [vmem:[%s193 + $0xe4] sm:%s186]
          %312 = vst [vmem:[%s194 + $0xe8] sm:%s186] %v311
          %v313 = vld [vmem:[%s193 + $0xf4] sm:%s186]
          %314 = vst [vmem:[%s194 + $0xec] sm:%s186] %v313
          %v315 = vld [vmem:[%s193 + $0xe8] sm:%s186]
          %316 = vst [vmem:[%s194 + $0xf0] sm:%s186] %v315
          %v317 = vld [vmem:[%s193 + $0xf8] sm:%s186]
          %318 = vst [vmem:[%s194 + $0xf4] sm:%s186] %v317
          %v319 = vld [vmem:[%s193 + $0xec] sm:%s186]
          %320 = vst [vmem:[%s194 + $0xf8] sm:%s186] %v319
          %v321 = vld [vmem:[%s193 + $0xfc] sm:%s186]
          %322 = vst [vmem:[%s194 + $0xfc] sm:%s186] %v321
        $region48: #{_forward_impl.6} parent=35 // loop_footer
          %s192 = sadd.s32 1, %s188
        $region49: #{_forward_impl.6} parent=35 // loop_footer_branch
          %187 = sbr.rel target = $region45
        $region50: #{_forward_impl.6} parent=35 // loop_exit
          _
      $region36: #{_forward_impl.6} parent=20 // pred_fallthru
        _
    $region21: #{_forward_impl.6} parent=16 // pred_fallthru
      _
    // Predicated region
    $region22: #{_forward_impl.6} parent=16 // pred_check
      %p28 = pneg %p24
    $region23: #{_forward_impl.6} parent=16 // pred_check_branch
      %30 = sbr.rel (%p28) target = $region25
    $region24: #{_forward_impl.6} parent=16 // pred_region
      %s31 = sshllo.u32 0, 4
      loop: start=0, step=1, limit=1
      $region26: #{_forward_impl.6} parent=24 // loop_pre_header
        _
      $region27: #{_forward_impl.6} parent=24 // loop_header
        %s33 = sphi 0, %s37
        %p34 = scmp.ge.s32.totalorder %s33, 1
        %s38 = sphi %s1, %s1
        %s39 = sphi [#allocation2], [#allocation2]
      $region28: #{_forward_impl.6} parent=24 // loop_header_branch
        %36 = sbr.rel (%p34) target = $region32
      $region29: #{_forward_impl.6} parent=24 // loop_body
        %v40 = vld [vmem:[%s38] sm:%s31]
        %41 = vst [vmem:[%s39] sm:%s31] %v40
        %v42 = vld [vmem:[%s38 + $0x10] sm:%s31]
        %43 = vst [vmem:[%s39 + $0x4] sm:%s31] %v42
        %v44 = vld [vmem:[%s38 + $0x4] sm:%s31]
        %45 = vst [vmem:[%s39 + $0x8] sm:%s31] %v44
        %v46 = vld [vmem:[%s38 + $0x14] sm:%s31]
        %47 = vst [vmem:[%s39 + $0xc] sm:%s31] %v46
        %v48 = vld [vmem:[%s38 + $0x8] sm:%s31]
        %49 = vst [vmem:[%s39 + $0x10] sm:%s31] %v48
        %v50 = vld [vmem:[%s38 + $0x18] sm:%s31]
        %51 = vst [vmem:[%s39 + $0x14] sm:%s31] %v50
        %v52 = vld [vmem:[%s38 + $0xc] sm:%s31]
        %53 = vst [vmem:[%s39 + $0x18] sm:%s31] %v52
        %v54 = vld [vmem:[%s38 + $0x1c] sm:%s31]
        %55 = vst [vmem:[%s39 + $0x1c] sm:%s31] %v54
        %v56 = vld [vmem:[%s38 + $0x20] sm:%s31]
        %57 = vst [vmem:[%s39 + $0x20] sm:%s31] %v56
        %v58 = vld [vmem:[%s38 + $0x30] sm:%s31]
        %59 = vst [vmem:[%s39 + $0x24] sm:%s31] %v58
        %v60 = vld [vmem:[%s38 + $0x24] sm:%s31]
        %61 = vst [vmem:[%s39 + $0x28] sm:%s31] %v60
        %v62 = vld [vmem:[%s38 + $0x34] sm:%s31]
        %63 = vst [vmem:[%s39 + $0x2c] sm:%s31] %v62
        %v64 = vld [vmem:[%s38 + $0x28] sm:%s31]
        %65 = vst [vmem:[%s39 + $0x30] sm:%s31] %v64
        %v66 = vld [vmem:[%s38 + $0x38] sm:%s31]
        %67 = vst [vmem:[%s39 + $0x34] sm:%s31] %v66
        %v68 = vld [vmem:[%s38 + $0x2c] sm:%s31]
        %69 = vst [vmem:[%s39 + $0x38] sm:%s31] %v68
        %v70 = vld [vmem:[%s38 + $0x3c] sm:%s31]
        %71 = vst [vmem:[%s39 + $0x3c] sm:%s31] %v70
        %v72 = vld [vmem:[%s38 + $0x40] sm:%s31]
        %73 = vst [vmem:[%s39 + $0x40] sm:%s31] %v72
        %v74 = vld [vmem:[%s38 + $0x50] sm:%s31]
        %75 = vst [vmem:[%s39 + $0x44] sm:%s31] %v74
        %v76 = vld [vmem:[%s38 + $0x44] sm:%s31]
        %77 = vst [vmem:[%s39 + $0x48] sm:%s31] %v76
        %v78 = vld [vmem:[%s38 + $0x54] sm:%s31]
        %79 = vst [vmem:[%s39 + $0x4c] sm:%s31] %v78
        %v80 = vld [vmem:[%s38 + $0x48] sm:%s31]
        %81 = vst [vmem:[%s39 + $0x50] sm:%s31] %v80
        %v82 = vld [vmem:[%s38 + $0x58] sm:%s31]
        %83 = vst [vmem:[%s39 + $0x54] sm:%s31] %v82
        %v84 = vld [vmem:[%s38 + $0x4c] sm:%s31]
        %85 = vst [vmem:[%s39 + $0x58] sm:%s31] %v84
        %v86 = vld [vmem:[%s38 + $0x5c] sm:%s31]
        %87 = vst [vmem:[%s39 + $0x5c] sm:%s31] %v86
        %v88 = vld [vmem:[%s38 + $0x60] sm:%s31]
        %89 = vst [vmem:[%s39 + $0x60] sm:%s31] %v88
        %v90 = vld [vmem:[%s38 + $0x70] sm:%s31]
        %91 = vst [vmem:[%s39 + $0x64] sm:%s31] %v90
        %v92 = vld [vmem:[%s38 + $0x64] sm:%s31]
        %93 = vst [vmem:[%s39 + $0x68] sm:%s31] %v92
        %v94 = vld [vmem:[%s38 + $0x74] sm:%s31]
        %95 = vst [vmem:[%s39 + $0x6c] sm:%s31] %v94
        %v96 = vld [vmem:[%s38 + $0x68] sm:%s31]
        %97 = vst [vmem:[%s39 + $0x70] sm:%s31] %v96
        %v98 = vld [vmem:[%s38 + $0x78] sm:%s31]
        %99 = vst [vmem:[%s39 + $0x74] sm:%s31] %v98
        %v100 = vld [vmem:[%s38 + $0x6c] sm:%s31]
        %101 = vst [vmem:[%s39 + $0x78] sm:%s31] %v100
        %v102 = vld [vmem:[%s38 + $0x7c] sm:%s31]
        %103 = vst [vmem:[%s39 + $0x7c] sm:%s31] %v102
        %v104 = vld [vmem:[%s38 + $0x80] sm:%s31]
        %105 = vst [vmem:[%s39 + $0x80] sm:%s31] %v104
        %v106 = vld [vmem:[%s38 + $0x90] sm:%s31]
        %107 = vst [vmem:[%s39 + $0x84] sm:%s31] %v106
        %v108 = vld [vmem:[%s38 + $0x84] sm:%s31]
        %109 = vst [vmem:[%s39 + $0x88] sm:%s31] %v108
        %v110 = vld [vmem:[%s38 + $0x94] sm:%s31]
        %111 = vst [vmem:[%s39 + $0x8c] sm:%s31] %v110
        %v112 = vld [vmem:[%s38 + $0x88] sm:%s31]
        %113 = vst [vmem:[%s39 + $0x90] sm:%s31] %v112
        %v114 = vld [vmem:[%s38 + $0x98] sm:%s31]
        %115 = vst [vmem:[%s39 + $0x94] sm:%s31] %v114
        %v116 = vld [vmem:[%s38 + $0x8c] sm:%s31]
        %117 = vst [vmem:[%s39 + $0x98] sm:%s31] %v116
        %v118 = vld [vmem:[%s38 + $0x9c] sm:%s31]
        %119 = vst [vmem:[%s39 + $0x9c] sm:%s31] %v118
        %v120 = vld [vmem:[%s38 + $0xa0] sm:%s31]
        %121 = vst [vmem:[%s39 + $0xa0] sm:%s31] %v120
        %v122 = vld [vmem:[%s38 + $0xb0] sm:%s31]
        %123 = vst [vmem:[%s39 + $0xa4] sm:%s31] %v122
        %v124 = vld [vmem:[%s38 + $0xa4] sm:%s31]
        %125 = vst [vmem:[%s39 + $0xa8] sm:%s31] %v124
        %v126 = vld [vmem:[%s38 + $0xb4] sm:%s31]
        %127 = vst [vmem:[%s39 + $0xac] sm:%s31] %v126
        %v128 = vld [vmem:[%s38 + $0xa8] sm:%s31]
        %129 = vst [vmem:[%s39 + $0xb0] sm:%s31] %v128
        %v130 = vld [vmem:[%s38 + $0xb8] sm:%s31]
        %131 = vst [vmem:[%s39 + $0xb4] sm:%s31] %v130
        %v132 = vld [vmem:[%s38 + $0xac] sm:%s31]
        %133 = vst [vmem:[%s39 + $0xb8] sm:%s31] %v132
        %v134 = vld [vmem:[%s38 + $0xbc] sm:%s31]
        %135 = vst [vmem:[%s39 + $0xbc] sm:%s31] %v134
        %v136 = vld [vmem:[%s38 + $0xc0] sm:%s31]
        %137 = vst [vmem:[%s39 + $0xc0] sm:%s31] %v136
        %v138 = vld [vmem:[%s38 + $0xd0] sm:%s31]
        %139 = vst [vmem:[%s39 + $0xc4] sm:%s31] %v138
        %v140 = vld [vmem:[%s38 + $0xc4] sm:%s31]
        %141 = vst [vmem:[%s39 + $0xc8] sm:%s31] %v140
        %v142 = vld [vmem:[%s38 + $0xd4] sm:%s31]
        %143 = vst [vmem:[%s39 + $0xcc] sm:%s31] %v142
        %v144 = vld [vmem:[%s38 + $0xc8] sm:%s31]
        %145 = vst [vmem:[%s39 + $0xd0] sm:%s31] %v144
        %v146 = vld [vmem:[%s38 + $0xd8] sm:%s31]
        %147 = vst [vmem:[%s39 + $0xd4] sm:%s31] %v146
        %v148 = vld [vmem:[%s38 + $0xcc] sm:%s31]
        %149 = vst [vmem:[%s39 + $0xd8] sm:%s31] %v148
        %v150 = vld [vmem:[%s38 + $0xdc] sm:%s31]
        %151 = vst [vmem:[%s39 + $0xdc] sm:%s31] %v150
        %v152 = vld [vmem:[%s38 + $0xe0] sm:%s31]
        %153 = vst [vmem:[%s39 + $0xe0] sm:%s31] %v152
        %v154 = vld [vmem:[%s38 + $0xf0] sm:%s31]
        %155 = vst [vmem:[%s39 + $0xe4] sm:%s31] %v154
        %v156 = vld [vmem:[%s38 + $0xe4] sm:%s31]
        %157 = vst [vmem:[%s39 + $0xe8] sm:%s31] %v156
        %v158 = vld [vmem:[%s38 + $0xf4] sm:%s31]
        %159 = vst [vmem:[%s39 + $0xec] sm:%s31] %v158
        %v160 = vld [vmem:[%s38 + $0xe8] sm:%s31]
        %161 = vst [vmem:[%s39 + $0xf0] sm:%s31] %v160
        %v162 = vld [vmem:[%s38 + $0xf8] sm:%s31]
        %163 = vst [vmem:[%s39 + $0xf4] sm:%s31] %v162
        %v164 = vld [vmem:[%s38 + $0xec] sm:%s31]
        %165 = vst [vmem:[%s39 + $0xf8] sm:%s31] %v164
        %v166 = vld [vmem:[%s38 + $0xfc] sm:%s31]
        %167 = vst [vmem:[%s39 + $0xfc] sm:%s31] %v166
      $region30: #{_forward_impl.6} parent=24 // loop_footer
        %s37 = sadd.s32 1, %s33
      $region31: #{_forward_impl.6} parent=24 // loop_footer_branch
        %32 = sbr.rel target = $region27
      $region32: #{_forward_impl.6} parent=24 // loop_exit
        _
    $region25: #{_forward_impl.6} parent=16 // pred_fallthru
      _
    // Predicated region
    $region51: #{_forward_impl.6} parent=16 // pred_check
      _
    $region52: #{_forward_impl.6} parent=16 // pred_check_branch
      %325 = sbr.rel (0) target = $region54
    $region53: #{_forward_impl.6} parent=16 // pred_region
      %326 = vsyncadd [#allocation5], 4096
    $region54: #{_forward_impl.6} parent=16 // pred_fallthru
      _
    %v327 = vld [vmem:[%s2] sm:$0xff]
    %328 = vst [vmem:[#allocation3] sm:$0xff] %v327
    %v329 = vld [vmem:[%s3] sm:$0xff]
    %330 = vst [vmem:[#allocation4] sm:$0xff] %v329
    %s331 = smul.u32 4, 16
    %s332 = smul.u32 %s331, 4
    %s333 = sshll.u32 %s332, 4
    %334 = dma.done [#allocation5], %s333
  $region17: #{_forward_impl.6} parent=0 // pred_fallthru
    _
  %v335 = vld [vmem:[#allocation3] sm:$0xff]
  %v336 = vld [vmem:[#allocation4] sm:$0xff]
  %v337 = vpack.c.bf16 %v335, %v335
  %v338 = vld [vmem:[#allocation2] sm:$0xff]
  %v339 = vld [vmem:[#allocation2 + $0x8] sm:$0xff]
  %v340 = vld [vmem:[#allocation2 + $0x10] sm:$0xff]
  %v341 = vld [vmem:[#allocation2 + $0x18] sm:$0xff]
  %v342 = vld [vmem:[#allocation2 + $0x20] sm:$0xff]
  %v343 = vld [vmem:[#allocation2 + $0x28] sm:$0xff]
  %v344 = vld [vmem:[#allocation2 + $0x30] sm:$0xff]
  %v345 = vld [vmem:[#allocation2 + $0x38] sm:$0xff]
  %v346 = vld [vmem:[#allocation2 + $0x40] sm:$0xff]
  %v347 = vld [vmem:[#allocation2 + $0x48] sm:$0xff]
  %v348 = vld [vmem:[#allocation2 + $0x50] sm:$0xff]
  %v349 = vld [vmem:[#allocation2 + $0x58] sm:$0xff]
  %v350 = vld [vmem:[#allocation2 + $0x60] sm:$0xff]
  %v351 = vld [vmem:[#allocation2 + $0x68] sm:$0xff]
  %v352 = vld [vmem:[#allocation2 + $0x70] sm:$0xff]
  %v353 = vld [vmem:[#allocation2 + $0x78] sm:$0xff]
  %v354 = vld [vmem:[#allocation2 + $0x80] sm:$0xff]
  %v355 = vld [vmem:[#allocation2 + $0x88] sm:$0xff]
  %v356 = vld [vmem:[#allocation2 + $0x90] sm:$0xff]
  %v357 = vld [vmem:[#allocation2 + $0x98] sm:$0xff]
  %v358 = vld [vmem:[#allocation2 + $0xa0] sm:$0xff]
  %v359 = vld [vmem:[#allocation2 + $0xa8] sm:$0xff]
  %v360 = vld [vmem:[#allocation2 + $0xb0] sm:$0xff]
  %v361 = vld [vmem:[#allocation2 + $0xb8] sm:$0xff]
  %v362 = vld [vmem:[#allocation2 + $0xc0] sm:$0xff]
  %v363 = vld [vmem:[#allocation2 + $0xc8] sm:$0xff]
  %v364 = vld [vmem:[#allocation2 + $0xd0] sm:$0xff]
  %v365 = vld [vmem:[#allocation2 + $0xd8] sm:$0xff]
  %v366 = vld [vmem:[#allocation2 + $0xe0] sm:$0xff]
  %v367 = vld [vmem:[#allocation2 + $0xe8] sm:$0xff]
  %v368 = vld [vmem:[#allocation2 + $0xf0] sm:$0xff]
  %v369 = vld [vmem:[#allocation2 + $0xf8] sm:$0xff]
  %370 = vmatprep.subr.bf16.mxu0 %v339
  %371 = vmatpush1.bf16.msra.mxu0 %v338
  %372 = vmatprep.subr.bf16.mxu0 %v343
  %373 = vmatpush1.bf16.msra.mxu0 %v342
  %374 = vmatprep.subr.bf16.mxu0 %v347
  %375 = vmatpush1.bf16.msra.mxu0 %v346
  %376 = vmatprep.subr.bf16.mxu0 %v351
  %377 = vmatpush1.bf16.msra.mxu0 %v350
  %378 = vmatprep.subr.bf16.mxu0 %v355
  %379 = vmatpush1.bf16.msra.mxu0 %v354
  %380 = vmatprep.subr.bf16.mxu0 %v359
  %381 = vmatpush1.bf16.msra.mxu0 %v358
  %382 = vmatprep.subr.bf16.mxu0 %v363
  %383 = vmatpush1.bf16.msra.mxu0 %v362
  %384 = vmatprep.subr.bf16.mxu0 %v367
  %385 = vmatpush1.bf16.msra.mxu0 %v366
  %386 = vmatprep.subr.bf16.mxu0 0
  %387 = vmatpush1.bf16.msra.mxu0 0
  %388 = vmatprep.subr.bf16.mxu0 0
  %389 = vmatpush1.bf16.msra.mxu0 0
  %390 = vmatprep.subr.bf16.mxu0 0
  %391 = vmatpush1.bf16.msra.mxu0 0
  %392 = vmatprep.subr.bf16.mxu0 0
  %393 = vmatpush1.bf16.msra.mxu0 0
  %394 = vmatprep.subr.bf16.mxu0 0
  %395 = vmatpush1.bf16.msra.mxu0 0
  %396 = vmatprep.subr.bf16.mxu0 0
  %397 = vmatpush1.bf16.msra.mxu0 0
  %398 = vmatprep.subr.bf16.mxu0 0
  %399 = vmatpush1.bf16.msra.mxu0 0
  %400 = vmatprep.subr.bf16.mxu0 0
  %401 = vmatpush1.bf16.msra.mxu0 0
  %402 = vmatprep.mubr.bf16.mxu0 0
  %403 = vmatmul.mubr.bf16.gmra.mrb[0].mxu0 %v337
  %v404 = vpop.f32.mrb[0].mxu0
  %v405 = vadd.f32 0.0, %v404
  %v406 = vpop.f32.mrb[0].mxu0
  %v407 = vadd.f32 0.0, %v406
  %v408 = vpop.f32.mrb[0].mxu0
  %v409 = vpop.f32.mrb[0].mxu0
  %410 = vdwg.mxu0
  %411 = vmatprep.subr.bf16.mxu0 %v341
  %412 = vmatpush1.bf16.msra.mxu0 %v340
  %413 = vmatprep.subr.bf16.mxu0 %v345
  %414 = vmatpush1.bf16.msra.mxu0 %v344
  %415 = vmatprep.subr.bf16.mxu0 %v349
  %416 = vmatpush1.bf16.msra.mxu0 %v348
  %417 = vmatprep.subr.bf16.mxu0 %v353
  %418 = vmatpush1.bf16.msra.mxu0 %v352
  %419 = vmatprep.subr.bf16.mxu0 %v357
  %420 = vmatpush1.bf16.msra.mxu0 %v356
  %421 = vmatprep.subr.bf16.mxu0 %v361
  %422 = vmatpush1.bf16.msra.mxu0 %v360
  %423 = vmatprep.subr.bf16.mxu0 %v365
  %424 = vmatpush1.bf16.msra.mxu0 %v364
  %425 = vmatprep.subr.bf16.mxu0 %v369
  %426 = vmatpush1.bf16.msra.mxu0 %v368
  %427 = vmatprep.subr.bf16.mxu0 0
  %428 = vmatpush1.bf16.msra.mxu0 0
  %429 = vmatprep.subr.bf16.mxu0 0
  %430 = vmatpush1.bf16.msra.mxu0 0
  %431 = vmatprep.subr.bf16.mxu0 0
  %432 = vmatpush1.bf16.msra.mxu0 0
  %433 = vmatprep.subr.bf16.mxu0 0
  %434 = vmatpush1.bf16.msra.mxu0 0
  %435 = vmatprep.subr.bf16.mxu0 0
  %436 = vmatpush1.bf16.msra.mxu0 0
  %437 = vmatprep.subr.bf16.mxu0 0
  %438 = vmatpush1.bf16.msra.mxu0 0
  %439 = vmatprep.subr.bf16.mxu0 0
  %440 = vmatpush1.bf16.msra.mxu0 0
  %441 = vmatprep.subr.bf16.mxu0 0
  %442 = vmatpush1.bf16.msra.mxu0 0
  %443 = vmatprep.mubr.bf16.mxu0 0
  %444 = vmatmul.mubr.bf16.gmra.mrb[0].mxu0 %v337
  %v445 = vpop.f32.mrb[0].mxu0
  %v446 = vadd.f32 0.0, %v445
  %v447 = vpop.f32.mrb[0].mxu0
  %v448 = vadd.f32 0.0, %v447
  %v449 = vpop.f32.mrb[0].mxu0
  %v450 = vpop.f32.mrb[0].mxu0
  %451 = vdwg.mxu0
  %v452 = vld [vmem:[%s0] sm:$0xff]
  %v453 = vld [vmem:[%s0 + $0x8] sm:$0xff]
  %v454 = vunpack.c.l.bf16 %v452
  %v455 = vunpack.c.h.bf16 %v452
  %v456 = vunpack.c.l.bf16 %v453
  %v457 = vunpack.c.h.bf16 %v453
  %v458 = vadd.f32 %v454, %v405
  %v459 = vadd.f32 %v455, %v407
  %v460 = vadd.f32 %v456, %v446
  %v461 = vadd.f32 %v457, %v448
  %v462 = vxor.u32 %v458, 2147483648
  %v463 = vmul.f32 %v462, 1.442695
  %v464 = vpow.pop %v463
  %v465 = vadd.f32 %v464, 1.0
  %v466 = vrcp.pop %v465
  %v467 = vmul.f32 1.0, %v466
  %v468 = vxor.u32 %v459, 2147483648
  %v469 = vmul.f32 %v468, 1.442695
  %v470 = vpow.pop %v469
  %v471 = vadd.f32 %v470, 1.0
  %v472 = vrcp.pop %v471
  %v473 = vmul.f32 1.0, %v472
  %v474 = vtanh.pop %v460
  %v475 = vxor.u32 %v461, 2147483648
  %v476 = vmul.f32 %v475, 1.442695
  %v477 = vpow.pop %v476
  %v478 = vadd.f32 %v477, 1.0
  %v479 = vrcp.pop %v478
  %v480 = vmul.f32 1.0, %v479
  %v481 = vmul.f32 %v473, %v336
  %v482 = vmul.f32 %v467, %v474
  %v483 = vadd.f32 %v481, %v482
  %v484 = vtanh.pop %v483
  %v485 = vmul.f32 %v480, %v484
  %v486 = vpack.c.bf16 %v485, %v485
  %487 = vst [vmem:[%s4] sm:$0xf] %v486
  %v488 = vld [vmem:[#allocation2] sm:$0xff]
  %v489 = vld [vmem:[#allocation2 + $0x8] sm:$0xff]
  %v490 = vld [vmem:[#allocation2 + $0x10] sm:$0xff]
  %v491 = vld [vmem:[#allocation2 + $0x18] sm:$0xff]
  %v492 = vld [vmem:[#allocation2 + $0x20] sm:$0xff]
  %v493 = vld [vmem:[#allocation2 + $0x28] sm:$0xff]
  %v494 = vld [vmem:[#allocation2 + $0x30] sm:$0xff]
  %v495 = vld [vmem:[#allocation2 + $0x38] sm:$0xff]
  %v496 = vld [vmem:[#allocation2 + $0x40] sm:$0xff]
  %v497 = vld [vmem:[#allocation2 + $0x48] sm:$0xff]
  %v498 = vld [vmem:[#allocation2 + $0x50] sm:$0xff]
  %v499 = vld [vmem:[#allocation2 + $0x58] sm:$0xff]
  %v500 = vld [vmem:[#allocation2 + $0x60] sm:$0xff]
  %v501 = vld [vmem:[#allocation2 + $0x68] sm:$0xff]
  %v502 = vld [vmem:[#allocation2 + $0x70] sm:$0xff]
  %v503 = vld [vmem:[#allocation2 + $0x78] sm:$0xff]
  %v504 = vld [vmem:[#allocation2 + $0x80] sm:$0xff]
  %v505 = vld [vmem:[#allocation2 + $0x88] sm:$0xff]
  %v506 = vld [vmem:[#allocation2 + $0x90] sm:$0xff]
  %v507 = vld [vmem:[#allocation2 + $0x98] sm:$0xff]
  %v508 = vld [vmem:[#allocation2 + $0xa0] sm:$0xff]
  %v509 = vld [vmem:[#allocation2 + $0xa8] sm:$0xff]
  %v510 = vld [vmem:[#allocation2 + $0xb0] sm:$0xff]
  %v511 = vld [vmem:[#allocation2 + $0xb8] sm:$0xff]
  %v512 = vld [vmem:[#allocation2 + $0xc0] sm:$0xff]
  %v513 = vld [vmem:[#allocation2 + $0xc8] sm:$0xff]
  %v514 = vld [vmem:[#allocation2 + $0xd0] sm:$0xff]
  %v515 = vld [vmem:[#allocation2 + $0xd8] sm:$0xff]
  %v516 = vld [vmem:[#allocation2 + $0xe0] sm:$0xff]
  %v517 = vld [vmem:[#allocation2 + $0xe8] sm:$0xff]
  %v518 = vld [vmem:[#allocation2 + $0xf0] sm:$0xff]
  %v519 = vld [vmem:[#allocation2 + $0xf8] sm:$0xff]
  %520 = vmatprep.subr.bf16.mxu0 %v489
  %521 = vmatpush1.bf16.msra.mxu0 %v488
  %522 = vmatprep.subr.bf16.mxu0 %v493
  %523 = vmatpush1.bf16.msra.mxu0 %v492
  %524 = vmatprep.subr.bf16.mxu0 %v497
  %525 = vmatpush1.bf16.msra.mxu0 %v496
  %526 = vmatprep.subr.bf16.mxu0 %v501
  %527 = vmatpush1.bf16.msra.mxu0 %v500
  %528 = vmatprep.subr.bf16.mxu0 %v505
  %529 = vmatpush1.bf16.msra.mxu0 %v504
  %530 = vmatprep.subr.bf16.mxu0 %v509
  %531 = vmatpush1.bf16.msra.mxu0 %v508
  %532 = vmatprep.subr.bf16.mxu0 %v513
  %533 = vmatpush1.bf16.msra.mxu0 %v512
  %534 = vmatprep.subr.bf16.mxu0 %v517
  %535 = vmatpush1.bf16.msra.mxu0 %v516
  %536 = vmatprep.subr.bf16.mxu0 0
  %537 = vmatpush1.bf16.msra.mxu0 0
  %538 = vmatprep.subr.bf16.mxu0 0
  %539 = vmatpush1.bf16.msra.mxu0 0
  %540 = vmatprep.subr.bf16.mxu0 0
  %541 = vmatpush1.bf16.msra.mxu0 0
  %542 = vmatprep.subr.bf16.mxu0 0
  %543 = vmatpush1.bf16.msra.mxu0 0
  %544 = vmatprep.subr.bf16.mxu0 0
  %545 = vmatpush1.bf16.msra.mxu0 0
  %546 = vmatprep.subr.bf16.mxu0 0
  %547 = vmatpush1.bf16.msra.mxu0 0
  %548 = vmatprep.subr.bf16.mxu0 0
  %549 = vmatpush1.bf16.msra.mxu0 0
  %550 = vmatprep.subr.bf16.mxu0 0
  %551 = vmatpush1.bf16.msra.mxu0 0
  %552 = vmatprep.mubr.bf16.mxu0 0
  %553 = vmatmul.mubr.bf16.gmra.mrb[0].mxu0 %v486
  %v554 = vpop.f32.mrb[0].mxu0
  %v555 = vadd.f32 0.0, %v554
  %v556 = vpop.f32.mrb[0].mxu0
  %v557 = vadd.f32 0.0, %v556
  %v558 = vpop.f32.mrb[0].mxu0
  %v559 = vpop.f32.mrb[0].mxu0
  %560 = vdwg.mxu0
  %561 = vmatprep.subr.bf16.mxu0 %v491
  %562 = vmatpush1.bf16.msra.mxu0 %v490
  %563 = vmatprep.subr.bf16.mxu0 %v495
  %564 = vmatpush1.bf16.msra.mxu0 %v494
  %565 = vmatprep.subr.bf16.mxu0 %v499
  %566 = vmatpush1.bf16.msra.mxu0 %v498
  %567 = vmatprep.subr.bf16.mxu0 %v503
  %568 = vmatpush1.bf16.msra.mxu0 %v502
  %569 = vmatprep.subr.bf16.mxu0 %v507
  %570 = vmatpush1.bf16.msra.mxu0 %v506
  %571 = vmatprep.subr.bf16.mxu0 %v511
  %572 = vmatpush1.bf16.msra.mxu0 %v510
  %573 = vmatprep.subr.bf16.mxu0 %v515
  %574 = vmatpush1.bf16.msra.mxu0 %v514
  %575 = vmatprep.subr.bf16.mxu0 %v519
  %576 = vmatpush1.bf16.msra.mxu0 %v518
  %577 = vmatprep.subr.bf16.mxu0 0
  %578 = vmatpush1.bf16.msra.mxu0 0
  %579 = vmatprep.subr.bf16.mxu0 0
  %580 = vmatpush1.bf16.msra.mxu0 0
  %581 = vmatprep.subr.bf16.mxu0 0
  %582 = vmatpush1.bf16.msra.mxu0 0
  %583 = vmatprep.subr.bf16.mxu0 0
  %584 = vmatpush1.bf16.msra.mxu0 0
  %585 = vmatprep.subr.bf16.mxu0 0
  %586 = vmatpush1.bf16.msra.mxu0 0
  %587 = vmatprep.subr.bf16.mxu0 0
  %588 = vmatpush1.bf16.msra.mxu0 0
  %589 = vmatprep.subr.bf16.mxu0 0
  %590 = vmatpush1.bf16.msra.mxu0 0
  %591 = vmatprep.subr.bf16.mxu0 0
  %592 = vmatpush1.bf16.msra.mxu0 0
  %593 = vmatprep.mubr.bf16.mxu0 0
  %594 = vmatmul.mubr.bf16.gmra.mrb[0].mxu0 %v486
  %v595 = vpop.f32.mrb[0].mxu0
  %v596 = vadd.f32 0.0, %v595
  %v597 = vpop.f32.mrb[0].mxu0
  %v598 = vadd.f32 0.0, %v597
  %v599 = vpop.f32.mrb[0].mxu0
  %v600 = vpop.f32.mrb[0].mxu0
  %601 = vdwg.mxu0
  %s602 = scalar_lea.vmem %s0, 16
  %v603 = vld [vmem:[%s602] sm:$0xff]
  %v604 = vld [vmem:[%s602 + $0x8] sm:$0xff]
  %v605 = vunpack.c.l.bf16 %v603
  %v606 = vunpack.c.h.bf16 %v603
  %v607 = vunpack.c.l.bf16 %v604
  %v608 = vunpack.c.h.bf16 %v604
  %v609 = vadd.f32 %v605, %v555
  %v610 = vadd.f32 %v606, %v557
  %v611 = vadd.f32 %v607, %v596
  %v612 = vadd.f32 %v608, %v598
  %v613 = vxor.u32 %v609, 2147483648
  %v614 = vmul.f32 %v613, 1.442695
  %v615 = vpow.pop %v614
  %v616 = vadd.f32 %v615, 1.0
  %v617 = vrcp.pop %v616
  %v618 = vmul.f32 1.0, %v617
  %v619 = vxor.u32 %v610, 2147483648
  %v620 = vmul.f32 %v619, 1.442695
  %v621 = vpow.pop %v620
  %v622 = vadd.f32 %v621, 1.0
  %v623 = vrcp.pop %v622
  %v624 = vmul.f32 1.0, %v623
  %v625 = vtanh.pop %v611
  %v626 = vxor.u32 %v612, 2147483648
  %v627 = vmul.f32 %v626, 1.442695
  %v628 = vpow.pop %v627
  %v629 = vadd.f32 %v628, 1.0
  %v630 = vrcp.pop %v629
  %v631 = vmul.f32 1.0, %v630
  %v632 = vmul.f32 %v624, %v483
  %v633 = vmul.f32 %v618, %v625
  %v634 = vadd.f32 %v632, %v633
  %v635 = vtanh.pop %v634
  %v636 = vmul.f32 %v631, %v635
  %v637 = vpack.c.bf16 %v636, %v636
  %s638 = scalar_lea.vmem %s4, 4
  %639 = vst [vmem:[%s638] sm:$0xf] %v637
  %v640 = vld [vmem:[#allocation2] sm:$0xff]
  %v641 = vld [vmem:[#allocation2 + $0x8] sm:$0xff]
  %v642 = vld [vmem:[#allocation2 + $0x10] sm:$0xff]
  %v643 = vld [vmem:[#allocation2 + $0x18] sm:$0xff]
  %v644 = vld [vmem:[#allocation2 + $0x20] sm:$0xff]
  %v645 = vld [vmem:[#allocation2 + $0x28] sm:$0xff]
  %v646 = vld [vmem:[#allocation2 + $0x30] sm:$0xff]
  %v647 = vld [vmem:[#allocation2 + $0x38] sm:$0xff]
  %v648 = vld [vmem:[#allocation2 + $0x40] sm:$0xff]
  %v649 = vld [vmem:[#allocation2 + $0x48] sm:$0xff]
  %v650 = vld [vmem:[#allocation2 + $0x50] sm:$0xff]
  %v651 = vld [vmem:[#allocation2 + $0x58] sm:$0xff]
  %v652 = vld [vmem:[#allocation2 + $0x60] sm:$0xff]
  %v653 = vld [vmem:[#allocation2 + $0x68] sm:$0xff]
  %v654 = vld [vmem:[#allocation2 + $0x70] sm:$0xff]
  %v655 = vld [vmem:[#allocation2 + $0x78] sm:$0xff]
  %v656 = vld [vmem:[#allocation2 + $0x80] sm:$0xff]
  %v657 = vld [vmem:[#allocation2 + $0x88] sm:$0xff]
  %v658 = vld [vmem:[#allocation2 + $0x90] sm:$0xff]
  %v659 = vld [vmem:[#allocation2 + $0x98] sm:$0xff]
  %v660 = vld [vmem:[#allocation2 + $0xa0] sm:$0xff]
  %v661 = vld [vmem:[#allocation2 + $0xa8] sm:$0xff]
  %v662 = vld [vmem:[#allocation2 + $0xb0] sm:$0xff]
  %v663 = vld [vmem:[#allocation2 + $0xb8] sm:$0xff]
  %v664 = vld [vmem:[#allocation2 + $0xc0] sm:$0xff]
  %v665 = vld [vmem:[#allocation2 + $0xc8] sm:$0xff]
  %v666 = vld [vmem:[#allocation2 + $0xd0] sm:$0xff]
  %v667 = vld [vmem:[#allocation2 + $0xd8] sm:$0xff]
  %v668 = vld [vmem:[#allocation2 + $0xe0] sm:$0xff]
  %v669 = vld [vmem:[#allocation2 + $0xe8] sm:$0xff]
  %v670 = vld [vmem:[#allocation2 + $0xf0] sm:$0xff]
  %v671 = vld [vmem:[#allocation2 + $0xf8] sm:$0xff]
  %672 = vmatprep.subr.bf16.mxu0 %v641
  %673 = vmatpush1.bf16.msra.mxu0 %v640
  %674 = vmatprep.subr.bf16.mxu0 %v645
  %675 = vmatpush1.bf16.msra.mxu0 %v644
  %676 = vmatprep.subr.bf16.mxu0 %v649
  %677 = vmatpush1.bf16.msra.mxu0 %v648
  %678 = vmatprep.subr.bf16.mxu0 %v653
  %679 = vmatpush1.bf16.msra.mxu0 %v652
  %680 = vmatprep.subr.bf16.mxu0 %v657
  %681 = vmatpush1.bf16.msra.mxu0 %v656
  %682 = vmatprep.subr.bf16.mxu0 %v661
  %683 = vmatpush1.bf16.msra.mxu0 %v660
  %684 = vmatprep.subr.bf16.mxu0 %v665
  %685 = vmatpush1.bf16.msra.mxu0 %v664
  %686 = vmatprep.subr.bf16.mxu0 %v669
  %687 = vmatpush1.bf16.msra.mxu0 %v668
  %688 = vmatprep.subr.bf16.mxu0 0
  %689 = vmatpush1.bf16.msra.mxu0 0
  %690 = vmatprep.subr.bf16.mxu0 0
  %691 = vmatpush1.bf16.msra.mxu0 0
  %692 = vmatprep.subr.bf16.mxu0 0
  %693 = vmatpush1.bf16.msra.mxu0 0
  %694 = vmatprep.subr.bf16.mxu0 0
  %695 = vmatpush1.bf16.msra.mxu0 0
  %696 = vmatprep.subr.bf16.mxu0 0
  %697 = vmatpush1.bf16.msra.mxu0 0
  %698 = vmatprep.subr.bf16.mxu0 0
  %699 = vmatpush1.bf16.msra.mxu0 0
  %700 = vmatprep.subr.bf16.mxu0 0
  %701 = vmatpush1.bf16.msra.mxu0 0
  %702 = vmatprep.subr.bf16.mxu0 0
  %703 = vmatpush1.bf16.msra.mxu0 0
  %704 = vmatprep.mubr.bf16.mxu0 0
  %705 = vmatmul.mubr.bf16.gmra.mrb[0].mxu0 %v637
  %v706 = vpop.f32.mrb[0].mxu0
  %v707 = vadd.f32 0.0, %v706
  %v708 = vpop.f32.mrb[0].mxu0
  %v709 = vadd.f32 0.0, %v708
  %v710 = vpop.f32.mrb[0].mxu0
  %v711 = vpop.f32.mrb[0].mxu0
  %712 = vdwg.mxu0
  %713 = vmatprep.subr.bf16.mxu0 %v643
  %714 = vmatpush1.bf16.msra.mxu0 %v642
  %715 = vmatprep.subr.bf16.mxu0 %v647
  %716 = vmatpush1.bf16.msra.mxu0 %v646
  %717 = vmatprep.subr.bf16.mxu0 %v651
  %718 = vmatpush1.bf16.msra.mxu0 %v650
  %719 = vmatprep.subr.bf16.mxu0 %v655
  %720 = vmatpush1.bf16.msra.mxu0 %v654
  %721 = vmatprep.subr.bf16.mxu0 %v659
  %722 = vmatpush1.bf16.msra.mxu0 %v658
  %723 = vmatprep.subr.bf16.mxu0 %v663
  %724 = vmatpush1.bf16.msra.mxu0 %v662
  %725 = vmatprep.subr.bf16.mxu0 %v667
  %726 = vmatpush1.bf16.msra.mxu0 %v666
  %727 = vmatprep.subr.bf16.mxu0 %v671
  %728 = vmatpush1.bf16.msra.mxu0 %v670
  %729 = vmatprep.subr.bf16.mxu0 0
  %730 = vmatpush1.bf16.msra.mxu0 0
  %731 = vmatprep.subr.bf16.mxu0 0
  %732 = vmatpush1.bf16.msra.mxu0 0
  %733 = vmatprep.subr.bf16.mxu0 0
  %734 = vmatpush1.bf16.msra.mxu0 0
  %735 = vmatprep.subr.bf16.mxu0 0
  %736 = vmatpush1.bf16.msra.mxu0 0
  %737 = vmatprep.subr.bf16.mxu0 0
  %738 = vmatpush1.bf16.msra.mxu0 0
  %739 = vmatprep.subr.bf16.mxu0 0
  %740 = vmatpush1.bf16.msra.mxu0 0
  %741 = vmatprep.subr.bf16.mxu0 0
  %742 = vmatpush1.bf16.msra.mxu0 0
  %743 = vmatprep.subr.bf16.mxu0 0
  %744 = vmatpush1.bf16.msra.mxu0 0
  %745 = vmatprep.mubr.bf16.mxu0 0
  %746 = vmatmul.mubr.bf16.gmra.mrb[0].mxu0 %v637
  %v747 = vpop.f32.mrb[0].mxu0
  %v748 = vadd.f32 0.0, %v747
  %v749 = vpop.f32.mrb[0].mxu0
  %v750 = vadd.f32 0.0, %v749
  %v751 = vpop.f32.mrb[0].mxu0
  %v752 = vpop.f32.mrb[0].mxu0
  %753 = vdwg.mxu0
  %s754 = scalar_lea.vmem %s0, 32
  %v755 = vld [vmem:[%s754] sm:$0xff]
  %v756 = vld [vmem:[%s754 + $0x8] sm:$0xff]
  %v757 = vunpack.c.l.bf16 %v755
  %v758 = vunpack.c.h.bf16 %v755
  %v759 = vunpack.c.l.bf16 %v756
  %v760 = vunpack.c.h.bf16 %v756
  %v761 = vadd.f32 %v757, %v707
  %v762 = vadd.f32 %v758, %v709
  %v763 = vadd.f32 %v759, %v748
  %v764 = vadd.f32 %v760, %v750
  %v765 = vxor.u32 %v761, 2147483648
  %v766 = vmul.f32 %v765, 1.442695
  %v767 = vpow.pop %v766
  %v768 = vadd.f32 %v767, 1.0
  %v769 = vrcp.pop %v768
  %v770 = vmul.f32 1.0, %v769
  %v771 = vxor.u32 %v762, 2147483648
  %v772 = vmul.f32 %v771, 1.442695
  %v773 = vpow.pop %v772
  %v774 = vadd.f32 %v773, 1.0
  %v775 = vrcp.pop %v774
  %v776 = vmul.f32 1.0, %v775
  %v777 = vtanh.pop %v763
  %v778 = vxor.u32 %v764, 2147483648
  %v779 = vmul.f32 %v778, 1.442695
  %v780 = vpow.pop %v779
  %v781 = vadd.f32 %v780, 1.0
  %v782 = vrcp.pop %v781
  %v783 = vmul.f32 1.0, %v782
  %v784 = vmul.f32 %v776, %v634
  %v785 = vmul.f32 %v770, %v777
  %v786 = vadd.f32 %v784, %v785
  %v787 = vtanh.pop %v786
  %v788 = vmul.f32 %v783, %v787
  %v789 = vpack.c.bf16 %v788, %v788
  %s790 = scalar_lea.vmem %s4, 8
  %791 = vst [vmem:[%s790] sm:$0xf] %v789
  %v792 = vld [vmem:[#allocation2] sm:$0xff]
  %v793 = vld [vmem:[#allocation2 + $0x8] sm:$0xff]
  %v794 = vld [vmem:[#allocation2 + $0x10] sm:$0xff]
  %v795 = vld [vmem:[#allocation2 + $0x18] sm:$0xff]
  %v796 = vld [vmem:[#allocation2 + $0x20] sm:$0xff]
  %v797 = vld [vmem:[#allocation2 + $0x28] sm:$0xff]
  %v798 = vld [vmem:[#allocation2 + $0x30] sm:$0xff]
  %v799 = vld [vmem:[#allocation2 + $0x38] sm:$0xff]
  %v800 = vld [vmem:[#allocation2 + $0x40] sm:$0xff]
  %v801 = vld [vmem:[#allocation2 + $0x48] sm:$0xff]
  %v802 = vld [vmem:[#allocation2 + $0x50] sm:$0xff]
  %v803 = vld [vmem:[#allocation2 + $0x58] sm:$0xff]
  %v804 = vld [vmem:[#allocation2 + $0x60] sm:$0xff]
  %v805 = vld [vmem:[#allocation2 + $0x68] sm:$0xff]
  %v806 = vld [vmem:[#allocation2 + $0x70] sm:$0xff]
  %v807 = vld [vmem:[#allocation2 + $0x78] sm:$0xff]
  %v808 = vld [vmem:[#allocation2 + $0x80] sm:$0xff]
  %v809 = vld [vmem:[#allocation2 + $0x88] sm:$0xff]
  %v810 = vld [vmem:[#allocation2 + $0x90] sm:$0xff]
  %v811 = vld [vmem:[#allocation2 + $0x98] sm:$0xff]
  %v812 = vld [vmem:[#allocation2 + $0xa0] sm:$0xff]
  %v813 = vld [vmem:[#allocation2 + $0xa8] sm:$0xff]
  %v814 = vld [vmem:[#allocation2 + $0xb0] sm:$0xff]
  %v815 = vld [vmem:[#allocation2 + $0xb8] sm:$0xff]
  %v816 = vld [vmem:[#allocation2 + $0xc0] sm:$0xff]
  %v817 = vld [vmem:[#allocation2 + $0xc8] sm:$0xff]
  %v818 = vld [vmem:[#allocation2 + $0xd0] sm:$0xff]
  %v819 = vld [vmem:[#allocation2 + $0xd8] sm:$0xff]
  %v820 = vld [vmem:[#allocation2 + $0xe0] sm:$0xff]
  %v821 = vld [vmem:[#allocation2 + $0xe8] sm:$0xff]
  %v822 = vld [vmem:[#allocation2 + $0xf0] sm:$0xff]
  %v823 = vld [vmem:[#allocation2 + $0xf8] sm:$0xff]
  %824 = vmatprep.subr.bf16.mxu0 %v793
  %825 = vmatpush1.bf16.msra.mxu0 %v792
  %826 = vmatprep.subr.bf16.mxu0 %v797
  %827 = vmatpush1.bf16.msra.mxu0 %v796
  %828 = vmatprep.subr.bf16.mxu0 %v801
  %829 = vmatpush1.bf16.msra.mxu0 %v800
  %830 = vmatprep.subr.bf16.mxu0 %v805
  %831 = vmatpush1.bf16.msra.mxu0 %v804
  %832 = vmatprep.subr.bf16.mxu0 %v809
  %833 = vmatpush1.bf16.msra.mxu0 %v808
  %834 = vmatprep.subr.bf16.mxu0 %v813
  %835 = vmatpush1.bf16.msra.mxu0 %v812
  %836 = vmatprep.subr.bf16.mxu0 %v817
  %837 = vmatpush1.bf16.msra.mxu0 %v816
  %838 = vmatprep.subr.bf16.mxu0 %v821
  %839 = vmatpush1.bf16.msra.mxu0 %v820
  %840 = vmatprep.subr.bf16.mxu0 0
  %841 = vmatpush1.bf16.msra.mxu0 0
  %842 = vmatprep.subr.bf16.mxu0 0
  %843 = vmatpush1.bf16.msra.mxu0 0
  %844 = vmatprep.subr.bf16.mxu0 0
  %845 = vmatpush1.bf16.msra.mxu0 0
  %846 = vmatprep.subr.bf16.mxu0 0
  %847 = vmatpush1.bf16.msra.mxu0 0
  %848 = vmatprep.subr.bf16.mxu0 0
  %849 = vmatpush1.bf16.msra.mxu0 0
  %850 = vmatprep.subr.bf16.mxu0 0
  %851 = vmatpush1.bf16.msra.mxu0 0
  %852 = vmatprep.subr.bf16.mxu0 0
  %853 = vmatpush1.bf16.msra.mxu0 0
  %854 = vmatprep.subr.bf16.mxu0 0
  %855 = vmatpush1.bf16.msra.mxu0 0
  %856 = vmatprep.mubr.bf16.mxu0 0
  %857 = vmatmul.mubr.bf16.gmra.mrb[0].mxu0 %v789
  %v858 = vpop.f32.mrb[0].mxu0
  %v859 = vadd.f32 0.0, %v858
  %v860 = vpop.f32.mrb[0].mxu0
  %v861 = vadd.f32 0.0, %v860
  %v862 = vpop.f32.mrb[0].mxu0
  %v863 = vpop.f32.mrb[0].mxu0
  %864 = vdwg.mxu0
  %865 = vmatprep.subr.bf16.mxu0 %v795
  %866 = vmatpush1.bf16.msra.mxu0 %v794
  %867 = vmatprep.subr.bf16.mxu0 %v799
  %868 = vmatpush1.bf16.msra.mxu0 %v798
  %869 = vmatprep.subr.bf16.mxu0 %v803
  %870 = vmatpush1.bf16.msra.mxu0 %v802
  %871 = vmatprep.subr.bf16.mxu0 %v807
  %872 = vmatpush1.bf16.msra.mxu0 %v806
  %873 = vmatprep.subr.bf16.mxu0 %v811
  %874 = vmatpush1.bf16.msra.mxu0 %v810
  %875 = vmatprep.subr.bf16.mxu0 %v815
  %876 = vmatpush1.bf16.msra.mxu0 %v814
  %877 = vmatprep.subr.bf16.mxu0 %v819
  %878 = vmatpush1.bf16.msra.mxu0 %v818
  %879 = vmatprep.subr.bf16.mxu0 %v823
  %880 = vmatpush1.bf16.msra.mxu0 %v822
  %881 = vmatprep.subr.bf16.mxu0 0
  %882 = vmatpush1.bf16.msra.mxu0 0
  %883 = vmatprep.subr.bf16.mxu0 0
  %884 = vmatpush1.bf16.msra.mxu0 0
  %885 = vmatprep.subr.bf16.mxu0 0
  %886 = vmatpush1.bf16.msra.mxu0 0
  %887 = vmatprep.subr.bf16.mxu0 0
  %888 = vmatpush1.bf16.msra.mxu0 0
  %889 = vmatprep.subr.bf16.mxu0 0
  %890 = vmatpush1.bf16.msra.mxu0 0
  %891 = vmatprep.subr.bf16.mxu0 0
  %892 = vmatpush1.bf16.msra.mxu0 0
  %893 = vmatprep.subr.bf16.mxu0 0
  %894 = vmatpush1.bf16.msra.mxu0 0
  %895 = vmatprep.subr.bf16.mxu0 0
  %896 = vmatpush1.bf16.msra.mxu0 0
  %897 = vmatprep.mubr.bf16.mxu0 0
  %898 = vmatmul.mubr.bf16.gmra.mrb[0].mxu0 %v789
  %v899 = vpop.f32.mrb[0].mxu0
  %v900 = vadd.f32 0.0, %v899
  %v901 = vpop.f32.mrb[0].mxu0
  %v902 = vadd.f32 0.0, %v901
  %v903 = vpop.f32.mrb[0].mxu0
  %v904 = vpop.f32.mrb[0].mxu0
  %905 = vdwg.mxu0
  %s906 = scalar_lea.vmem %s0, 48
  %v907 = vld [vmem:[%s906] sm:$0xff]
  %v908 = vld [vmem:[%s906 + $0x8] sm:$0xff]
  %v909 = vunpack.c.l.bf16 %v907
  %v910 = vunpack.c.h.bf16 %v907
  %v911 = vunpack.c.l.bf16 %v908
  %v912 = vunpack.c.h.bf16 %v908
  %v913 = vadd.f32 %v909, %v859
  %v914 = vadd.f32 %v910, %v861
  %v915 = vadd.f32 %v911, %v900
  %v916 = vadd.f32 %v912, %v902
  %v917 = vxor.u32 %v913, 2147483648
  %v918 = vmul.f32 %v917, 1.442695
  %v919 = vpow.pop %v918
  %v920 = vadd.f32 %v919, 1.0
  %v921 = vrcp.pop %v920
  %v922 = vmul.f32 1.0, %v921
  %v923 = vxor.u32 %v914, 2147483648
  %v924 = vmul.f32 %v923, 1.442695
  %v925 = vpow.pop %v924
  %v926 = vadd.f32 %v925, 1.0
  %v927 = vrcp.pop %v926
  %v928 = vmul.f32 1.0, %v927
  %v929 = vtanh.pop %v915
  %v930 = vxor.u32 %v916, 2147483648
  %v931 = vmul.f32 %v930, 1.442695
  %v932 = vpow.pop %v931
  %v933 = vadd.f32 %v932, 1.0
  %v934 = vrcp.pop %v933
  %v935 = vmul.f32 1.0, %v934
  %v936 = vmul.f32 %v928, %v786
  %v937 = vmul.f32 %v922, %v929
  %v938 = vadd.f32 %v936, %v937
  %v939 = vtanh.pop %v938
  %v940 = vmul.f32 %v935, %v939
  %v941 = vpack.c.bf16 %v940, %v940
  %s942 = scalar_lea.vmem %s4, 12
  %943 = vst [vmem:[%s942] sm:$0xf] %v941
  %v944 = vld [vmem:[#allocation2] sm:$0xff]
  %v945 = vld [vmem:[#allocation2 + $0x8] sm:$0xff]
  %v946 = vld [vmem:[#allocation2 + $0x10] sm:$0xff]
  %v947 = vld [vmem:[#allocation2 + $0x18] sm:$0xff]
  %v948 = vld [vmem:[#allocation2 + $0x20] sm:$0xff]
  %v949 = vld [vmem:[#allocation2 + $0x28] sm:$0xff]
  %v950 = vld [vmem:[#allocation2 + $0x30] sm:$0xff]
  %v951 = vld [vmem:[#allocation2 + $0x38] sm:$0xff]
  %v952 = vld [vmem:[#allocation2 + $0x40] sm:$0xff]
  %v953 = vld [vmem:[#allocation2 + $0x48] sm:$0xff]
  %v954 = vld [vmem:[#allocation2 + $0x50] sm:$0xff]
  %v955 = vld [vmem:[#allocation2 + $0x58] sm:$0xff]
  %v956 = vld [vmem:[#allocation2 + $0x60] sm:$0xff]
  %v957 = vld [vmem:[#allocation2 + $0x68] sm:$0xff]
  %v958 = vld [vmem:[#allocation2 + $0x70] sm:$0xff]
  %v959 = vld [vmem:[#allocation2 + $0x78] sm:$0xff]
  %v960 = vld [vmem:[#allocation2 + $0x80] sm:$0xff]
  %v961 = vld [vmem:[#allocation2 + $0x88] sm:$0xff]
  %v962 = vld [vmem:[#allocation2 + $0x90] sm:$0xff]
  %v963 = vld [vmem:[#allocation2 + $0x98] sm:$0xff]
  %v964 = vld [vmem:[#allocation2 + $0xa0] sm:$0xff]
  %v965 = vld [vmem:[#allocation2 + $0xa8] sm:$0xff]
  %v966 = vld [vmem:[#allocation2 + $0xb0] sm:$0xff]
  %v967 = vld [vmem:[#allocation2 + $0xb8] sm:$0xff]
  %v968 = vld [vmem:[#allocation2 + $0xc0] sm:$0xff]
  %v969 = vld [vmem:[#allocation2 + $0xc8] sm:$0xff]
  %v970 = vld [vmem:[#allocation2 + $0xd0] sm:$0xff]
  %v971 = vld [vmem:[#allocation2 + $0xd8] sm:$0xff]
  %v972 = vld [vmem:[#allocation2 + $0xe0] sm:$0xff]
  %v973 = vld [vmem:[#allocation2 + $0xe8] sm:$0xff]
  %v974 = vld [vmem:[#allocation2 + $0xf0] sm:$0xff]
  %v975 = vld [vmem:[#allocation2 + $0xf8] sm:$0xff]
  %976 = vmatprep.subr.bf16.mxu0 %v945
  %977 = vmatpush1.bf16.msra.mxu0 %v944
  %978 = vmatprep.subr.bf16.mxu0 %v949
  %979 = vmatpush1.bf16.msra.mxu0 %v948
  %980 = vmatprep.subr.bf16.mxu0 %v953
  %981 = vmatpush1.bf16.msra.mxu0 %v952
  %982 = vmatprep.subr.bf16.mxu0 %v957
  %983 = vmatpush1.bf16.msra.mxu0 %v956
  %984 = vmatprep.subr.bf16.mxu0 %v961
  %985 = vmatpush1.bf16.msra.mxu0 %v960
  %986 = vmatprep.subr.bf16.mxu0 %v965
  %987 = vmatpush1.bf16.msra.mxu0 %v964
  %988 = vmatprep.subr.bf16.mxu0 %v969
  %989 = vmatpush1.bf16.msra.mxu0 %v968
  %990 = vmatprep.subr.bf16.mxu0 %v973
  %991 = vmatpush1.bf16.msra.mxu0 %v972
  %992 = vmatprep.subr.bf16.mxu0 0
  %993 = vmatpush1.bf16.msra.mxu0 0
  %994 = vmatprep.subr.bf16.mxu0 0
  %995 = vmatpush1.bf16.msra.mxu0 0
  %996 = vmatprep.subr.bf16.mxu0 0
  %997 = vmatpush1.bf16.msra.mxu0 0
  %998 = vmatprep.subr.bf16.mxu0 0
  %999 = vmatpush1.bf16.msra.mxu0 0
  %1000 = vmatprep.subr.bf16.mxu0 0
  %1001 = vmatpush1.bf16.msra.mxu0 0
  %1002 = vmatprep.subr.bf16.mxu0 0
  %1003 = vmatpush1.bf16.msra.mxu0 0
  %1004 = vmatprep.subr.bf16.mxu0 0
  %1005 = vmatpush1.bf16.msra.mxu0 0
  %1006 = vmatprep.subr.bf16.mxu0 0
  %1007 = vmatpush1.bf16.msra.mxu0 0
  %1008 = vmatprep.mubr.bf16.mxu0 0
  %1009 = vmatmul.mubr.bf16.gmra.mrb[0].mxu0 %v941
  %v1010 = vpop.f32.mrb[0].mxu0
  %v1011 = vadd.f32 0.0, %v1010
  %v1012 = vpop.f32.mrb[0].mxu0
  %v1013 = vadd.f32 0.0, %v1012
  %v1014 = vpop.f32.mrb[0].mxu0
  %v1015 = vpop.f32.mrb[0].mxu0
  %1016 = vdwg.mxu0
  %1017 = vmatprep.subr.bf16.mxu0 %v947
  %1018 = vmatpush1.bf16.msra.mxu0 %v946
  %1019 = vmatprep.subr.bf16.mxu0 %v951
  %1020 = vmatpush1.bf16.msra.mxu0 %v950
  %1021 = vmatprep.subr.bf16.mxu0 %v955
  %1022 = vmatpush1.bf16.msra.mxu0 %v954
  %1023 = vmatprep.subr.bf16.mxu0 %v959
  %1024 = vmatpush1.bf16.msra.mxu0 %v958
  %1025 = vmatprep.subr.bf16.mxu0 %v963
  %1026 = vmatpush1.bf16.msra.mxu0 %v962
  %1027 = vmatprep.subr.bf16.mxu0 %v967
  %1028 = vmatpush1.bf16.msra.mxu0 %v966
  %1029 = vmatprep.subr.bf16.mxu0 %v971
  %1030 = vmatpush1.bf16.msra.mxu0 %v970
  %1031 = vmatprep.subr.bf16.mxu0 %v975
  %1032 = vmatpush1.bf16.msra.mxu0 %v974
  %1033 = vmatprep.subr.bf16.mxu0 0
  %1034 = vmatpush1.bf16.msra.mxu0 0
  %1035 = vmatprep.subr.bf16.mxu0 0
  %1036 = vmatpush1.bf16.msra.mxu0 0
  %1037 = vmatprep.subr.bf16.mxu0 0
  %1038 = vmatpush1.bf16.msra.mxu0 0
  %1039 = vmatprep.subr.bf16.mxu0 0
  %1040 = vmatpush1.bf16.msra.mxu0 0
  %1041 = vmatprep.subr.bf16.mxu0 0
  %1042 = vmatpush1.bf16.msra.mxu0 0
  %1043 = vmatprep.subr.bf16.mxu0 0
  %1044 = vmatpush1.bf16.msra.mxu0 0
  %1045 = vmatprep.subr.bf16.mxu0 0
  %1046 = vmatpush1.bf16.msra.mxu0 0
  %1047 = vmatprep.subr.bf16.mxu0 0
  %1048 = vmatpush1.bf16.msra.mxu0 0
  %1049 = vmatprep.mubr.bf16.mxu0 0
  %1050 = vmatmul.mubr.bf16.gmra.mrb[0].mxu0 %v941
  %v1051 = vpop.f32.mrb[0].mxu0
  %v1052 = vadd.f32 0.0, %v1051
  %v1053 = vpop.f32.mrb[0].mxu0
  %v1054 = vadd.f32 0.0, %v1053
  %v1055 = vpop.f32.mrb[0].mxu0
  %v1056 = vpop.f32.mrb[0].mxu0
  %1057 = vdwg.mxu0
  %s1058 = scalar_lea.vmem %s0, 64
  %v1059 = vld [vmem:[%s1058] sm:$0xff]
  %v1060 = vld [vmem:[%s1058 + $0x8] sm:$0xff]
  %v1061 = vunpack.c.l.bf16 %v1059
  %v1062 = vunpack.c.h.bf16 %v1059
  %v1063 = vunpack.c.l.bf16 %v1060
  %v1064 = vunpack.c.h.bf16 %v1060
  %v1065 = vadd.f32 %v1061, %v1011
  %v1066 = vadd.f32 %v1062, %v1013
  %v1067 = vadd.f32 %v1063, %v1052
  %v1068 = vadd.f32 %v1064, %v1054
  %v1069 = vxor.u32 %v1065, 2147483648
  %v1070 = vmul.f32 %v1069, 1.442695
  %v1071 = vpow.pop %v1070
  %v1072 = vadd.f32 %v1071, 1.0
  %v1073 = vrcp.pop %v1072
  %v1074 = vmul.f32 1.0, %v1073
  %v1075 = vxor.u32 %v1066, 2147483648
  %v1076 = vmul.f32 %v1075, 1.442695
  %v1077 = vpow.pop %v1076
  %v1078 = vadd.f32 %v1077, 1.0
  %v1079 = vrcp.pop %v1078
  %v1080 = vmul.f32 1.0, %v1079
  %v1081 = vtanh.pop %v1067
  %v1082 = vxor.u32 %v1068, 2147483648
  %v1083 = vmul.f32 %v1082, 1.442695
  %v1084 = vpow.pop %v1083
  %v1085 = vadd.f32 %v1084, 1.0
  %v1086 = vrcp.pop %v1085
  %v1087 = vmul.f32 1.0, %v1086
  %v1088 = vmul.f32 %v1080, %v938
  %v1089 = vmul.f32 %v1074, %v1081
  %v1090 = vadd.f32 %v1088, %v1089
  %v1091 = vtanh.pop %v1090
  %v1092 = vmul.f32 %v1087, %v1091
  %v1093 = vpack.c.bf16 %v1092, %v1092
  %s1094 = scalar_lea.vmem %s4, 16
  %1095 = vst [vmem:[%s1094] sm:$0xf] %v1093
  %v1096 = vld [vmem:[#allocation2] sm:$0xff]
  %v1097 = vld [vmem:[#allocation2 + $0x8] sm:$0xff]
  %v1098 = vld [vmem:[#allocation2 + $0x10] sm:$0xff]
  %v1099 = vld [vmem:[#allocation2 + $0x18] sm:$0xff]
  %v1100 = vld [vmem:[#allocation2 + $0x20] sm:$0xff]
  %v1101 = vld [vmem:[#allocation2 + $0x28] sm:$0xff]
  %v1102 = vld [vmem:[#allocation2 + $0x30] sm:$0xff]
  %v1103 = vld [vmem:[#allocation2 + $0x38] sm:$0xff]
  %v1104 = vld [vmem:[#allocation2 + $0x40] sm:$0xff]
  %v1105 = vld [vmem:[#allocation2 + $0x48] sm:$0xff]
  %v1106 = vld [vmem:[#allocation2 + $0x50] sm:$0xff]
  %v1107 = vld [vmem:[#allocation2 + $0x58] sm:$0xff]
  %v1108 = vld [vmem:[#allocation2 + $0x60] sm:$0xff]
  %v1109 = vld [vmem:[#allocation2 + $0x68] sm:$0xff]
  %v1110 = vld [vmem:[#allocation2 + $0x70] sm:$0xff]
  %v1111 = vld [vmem:[#allocation2 + $0x78] sm:$0xff]
  %v1112 = vld [vmem:[#allocation2 + $0x80] sm:$0xff]
  %v1113 = vld [vmem:[#allocation2 + $0x88] sm:$0xff]
  %v1114 = vld [vmem:[#allocation2 + $0x90] sm:$0xff]
  %v1115 = vld [vmem:[#allocation2 + $0x98] sm:$0xff]
  %v1116 = vld [vmem:[#allocation2 + $0xa0] sm:$0xff]
  %v1117 = vld [vmem:[#allocation2 + $0xa8] sm:$0xff]
  %v1118 = vld [vmem:[#allocation2 + $0xb0] sm:$0xff]
  %v1119 = vld [vmem:[#allocation2 + $0xb8] sm:$0xff]
  %v1120 = vld [vmem:[#allocation2 + $0xc0] sm:$0xff]
  %v1121 = vld [vmem:[#allocation2 + $0xc8] sm:$0xff]
  %v1122 = vld [vmem:[#allocation2 + $0xd0] sm:$0xff]
  %v1123 = vld [vmem:[#allocation2 + $0xd8] sm:$0xff]
  %v1124 = vld [vmem:[#allocation2 + $0xe0] sm:$0xff]
  %v1125 = vld [vmem:[#allocation2 + $0xe8] sm:$0xff]
  %v1126 = vld [vmem:[#allocation2 + $0xf0] sm:$0xff]
  %v1127 = vld [vmem:[#allocation2 + $0xf8] sm:$0xff]
  %1128 = vmatprep.subr.bf16.mxu0 %v1097
  %1129 = vmatpush1.bf16.msra.mxu0 %v1096
  %1130 = vmatprep.subr.bf16.mxu0 %v1101
  %1131 = vmatpush1.bf16.msra.mxu0 %v1100
  %1132 = vmatprep.subr.bf16.mxu0 %v1105
  %1133 = vmatpush1.bf16.msra.mxu0 %v1104
  %1134 = vmatprep.subr.bf16.mxu0 %v1109
  %1135 = vmatpush1.bf16.msra.mxu0 %v1108
  %1136 = vmatprep.subr.bf16.mxu0 %v1113
  %1137 = vmatpush1.bf16.msra.mxu0 %v1112
  %1138 = vmatprep.subr.bf16.mxu0 %v1117
  %1139 = vmatpush1.bf16.msra.mxu0 %v1116
  %1140 = vmatprep.subr.bf16.mxu0 %v1121
  %1141 = vmatpush1.bf16.msra.mxu0 %v1120
  %1142 = vmatprep.subr.bf16.mxu0 %v1125
  %1143 = vmatpush1.bf16.msra.mxu0 %v1124
  %1144 = vmatprep.subr.bf16.mxu0 0
  %1145 = vmatpush1.bf16.msra.mxu0 0
  %1146 = vmatprep.subr.bf16.mxu0 0
  %1147 = vmatpush1.bf16.msra.mxu0 0
  %1148 = vmatprep.subr.bf16.mxu0 0
  %1149 = vmatpush1.bf16.msra.mxu0 0
  %1150 = vmatprep.subr.bf16.mxu0 0
  %1151 = vmatpush1.bf16.msra.mxu0 0
  %1152 = vmatprep.subr.bf16.mxu0 0
  %1153 = vmatpush1.bf16.msra.mxu0 0
  %1154 = vmatprep.subr.bf16.mxu0 0
  %1155 = vmatpush1.bf16.msra.mxu0 0
  %1156 = vmatprep.subr.bf16.mxu0 0
  %1157 = vmatpush1.bf16.msra.mxu0 0
  %1158 = vmatprep.subr.bf16.mxu0 0
  %1159 = vmatpush1.bf16.msra.mxu0 0
  %1160 = vmatprep.mubr.bf16.mxu0 0
  %1161 = vmatmul.mubr.bf16.gmra.mrb[0].mxu0 %v1093
  %v1162 = vpop.f32.mrb[0].mxu0
  %v1163 = vadd.f32 0.0, %v1162
  %v1164 = vpop.f32.mrb[0].mxu0
  %v1165 = vadd.f32 0.0, %v1164
  %v1166 = vpop.f32.mrb[0].mxu0
  %v1167 = vpop.f32.mrb[0].mxu0
  %1168 = vdwg.mxu0
  %1169 = vmatprep.subr.bf16.mxu0 %v1099
  %1170 = vmatpush1.bf16.msra.mxu0 %v1098
  %1171 = vmatprep.subr.bf16.mxu0 %v1103
  %1172 = vmatpush1.bf16.msra.mxu0 %v1102
  %1173 = vmatprep.subr.bf16.mxu0 %v1107
  %1174 = vmatpush1.bf16.msra.mxu0 %v1106
  %1175 = vmatprep.subr.bf16.mxu0 %v1111
  %1176 = vmatpush1.bf16.msra.mxu0 %v1110
  %1177 = vmatprep.subr.bf16.mxu0 %v1115
  %1178 = vmatpush1.bf16.msra.mxu0 %v1114
  %1179 = vmatprep.subr.bf16.mxu0 %v1119
  %1180 = vmatpush1.bf16.msra.mxu0 %v1118
  %1181 = vmatprep.subr.bf16.mxu0 %v1123
  %1182 = vmatpush1.bf16.msra.mxu0 %v1122
  %1183 = vmatprep.subr.bf16.mxu0 %v1127
  %1184 = vmatpush1.bf16.msra.mxu0 %v1126
  %1185 = vmatprep.subr.bf16.mxu0 0
  %1186 = vmatpush1.bf16.msra.mxu0 0
  %1187 = vmatprep.subr.bf16.mxu0 0
  %1188 = vmatpush1.bf16.msra.mxu0 0
  %1189 = vmatprep.subr.bf16.mxu0 0
  %1190 = vmatpush1.bf16.msra.mxu0 0
  %1191 = vmatprep.subr.bf16.mxu0 0
  %1192 = vmatpush1.bf16.msra.mxu0 0
  %1193 = vmatprep.subr.bf16.mxu0 0
  %1194 = vmatpush1.bf16.msra.mxu0 0
  %1195 = vmatprep.subr.bf16.mxu0 0
  %1196 = vmatpush1.bf16.msra.mxu0 0
  %1197 = vmatprep.subr.bf16.mxu0 0
  %1198 = vmatpush1.bf16.msra.mxu0 0
  %1199 = vmatprep.subr.bf16.mxu0 0
  %1200 = vmatpush1.bf16.msra.mxu0 0
  %1201 = vmatprep.mubr.bf16.mxu0 0
  %1202 = vmatmul.mubr.bf16.gmra.mrb[0].mxu0 %v1093
  %v1203 = vpop.f32.mrb[0].mxu0
  %v1204 = vadd.f32 0.0, %v1203
  %v1205 = vpop.f32.mrb[0].mxu0
  %v1206 = vadd.f32 0.0, %v1205
  %v1207 = vpop.f32.mrb[0].mxu0
  %v1208 = vpop.f32.mrb[0].mxu0
  %1209 = vdwg.mxu0
  %s1210 = scalar_lea.vmem %s0, 80
  %v1211 = vld [vmem:[%s1210] sm:$0xff]
  %v1212 = vld [vmem:[%s1210 + $0x8] sm:$0xff]
  %v1213 = vunpack.c.l.bf16 %v1211
  %v1214 = vunpack.c.h.bf16 %v1211
  %v1215 = vunpack.c.l.bf16 %v1212
  %v1216 = vunpack.c.h.bf16 %v1212
  %v1217 = vadd.f32 %v1213, %v1163
  %v1218 = vadd.f32 %v1214, %v1165
  %v1219 = vadd.f32 %v1215, %v1204
  %v1220 = vadd.f32 %v1216, %v1206
  %v1221 = vxor.u32 %v1217, 2147483648
  %v1222 = vmul.f32 %v1221, 1.442695
  %v1223 = vpow.pop %v1222
  %v1224 = vadd.f32 %v1223, 1.0
  %v1225 = vrcp.pop %v1224
  %v1226 = vmul.f32 1.0, %v1225
  %v1227 = vxor.u32 %v1218, 2147483648
  %v1228 = vmul.f32 %v1227, 1.442695
  %v1229 = vpow.pop %v1228
  %v1230 = vadd.f32 %v1229, 1.0
  %v1231 = vrcp.pop %v1230
  %v1232 = vmul.f32 1.0, %v1231
  %v1233 = vtanh.pop %v1219
  %v1234 = vxor.u32 %v1220, 2147483648
  %v1235 = vmul.f32 %v1234, 1.442695
  %v1236 = vpow.pop %v1235
  %v1237 = vadd.f32 %v1236, 1.0
  %v1238 = vrcp.pop %v1237
  %v1239 = vmul.f32 1.0, %v1238
  %v1240 = vmul.f32 %v1232, %v1090
  %v1241 = vmul.f32 %v1226, %v1233
  %v1242 = vadd.f32 %v1240, %v1241
  %v1243 = vtanh.pop %v1242
  %v1244 = vmul.f32 %v1239, %v1243
  %v1245 = vpack.c.bf16 %v1244, %v1244
  %s1246 = scalar_lea.vmem %s4, 20
  %1247 = vst [vmem:[%s1246] sm:$0xf] %v1245
  %v1248 = vld [vmem:[#allocation2] sm:$0xff]
  %v1249 = vld [vmem:[#allocation2 + $0x8] sm:$0xff]
  %v1250 = vld [vmem:[#allocation2 + $0x10] sm:$0xff]
  %v1251 = vld [vmem:[#allocation2 + $0x18] sm:$0xff]
  %v1252 = vld [vmem:[#allocation2 + $0x20] sm:$0xff]
  %v1253 = vld [vmem:[#allocation2 + $0x28] sm:$0xff]
  %v1254 = vld [vmem:[#allocation2 + $0x30] sm:$0xff]
  %v1255 = vld [vmem:[#allocation2 + $0x38] sm:$0xff]
  %v1256 = vld [vmem:[#allocation2 + $0x40] sm:$0xff]
  %v1257 = vld [vmem:[#allocation2 + $0x48] sm:$0xff]
  %v1258 = vld [vmem:[#allocation2 + $0x50] sm:$0xff]
  %v1259 = vld [vmem:[#allocation2 + $0x58] sm:$0xff]
  %v1260 = vld [vmem:[#allocation2 + $0x60] sm:$0xff]
  %v1261 = vld [vmem:[#allocation2 + $0x68] sm:$0xff]
  %v1262 = vld [vmem:[#allocation2 + $0x70] sm:$0xff]
  %v1263 = vld [vmem:[#allocation2 + $0x78] sm:$0xff]
  %v1264 = vld [vmem:[#allocation2 + $0x80] sm:$0xff]
  %v1265 = vld [vmem:[#allocation2 + $0x88] sm:$0xff]
  %v1266 = vld [vmem:[#allocation2 + $0x90] sm:$0xff]
  %v1267 = vld [vmem:[#allocation2 + $0x98] sm:$0xff]
  %v1268 = vld [vmem:[#allocation2 + $0xa0] sm:$0xff]
  %v1269 = vld [vmem:[#allocation2 + $0xa8] sm:$0xff]
  %v1270 = vld [vmem:[#allocation2 + $0xb0] sm:$0xff]
  %v1271 = vld [vmem:[#allocation2 + $0xb8] sm:$0xff]
  %v1272 = vld [vmem:[#allocation2 + $0xc0] sm:$0xff]
  %v1273 = vld [vmem:[#allocation2 + $0xc8] sm:$0xff]
  %v1274 = vld [vmem:[#allocation2 + $0xd0] sm:$0xff]
  %v1275 = vld [vmem:[#allocation2 + $0xd8] sm:$0xff]
  %v1276 = vld [vmem:[#allocation2 + $0xe0] sm:$0xff]
  %v1277 = vld [vmem:[#allocation2 + $0xe8] sm:$0xff]
  %v1278 = vld [vmem:[#allocation2 + $0xf0] sm:$0xff]
  %v1279 = vld [vmem:[#allocation2 + $0xf8] sm:$0xff]
  %1280 = vmatprep.subr.bf16.mxu0 %v1249
  %1281 = vmatpush1.bf16.msra.mxu0 %v1248
  %1282 = vmatprep.subr.bf16.mxu0 %v1253
  %1283 = vmatpush1.bf16.msra.mxu0 %v1252
  %1284 = vmatprep.subr.bf16.mxu0 %v1257
  %1285 = vmatpush1.bf16.msra.mxu0 %v1256
  %1286 = vmatprep.subr.bf16.mxu0 %v1261
  %1287 = vmatpush1.bf16.msra.mxu0 %v1260
  %1288 = vmatprep.subr.bf16.mxu0 %v1265
  %1289 = vmatpush1.bf16.msra.mxu0 %v1264
  %1290 = vmatprep.subr.bf16.mxu0 %v1269
  %1291 = vmatpush1.bf16.msra.mxu0 %v1268
  %1292 = vmatprep.subr.bf16.mxu0 %v1273
  %1293 = vmatpush1.bf16.msra.mxu0 %v1272
  %1294 = vmatprep.subr.bf16.mxu0 %v1277
  %1295 = vmatpush1.bf16.msra.mxu0 %v1276
  %1296 = vmatprep.subr.bf16.mxu0 0
  %1297 = vmatpush1.bf16.msra.mxu0 0
  %1298 = vmatprep.subr.bf16.mxu0 0
  %1299 = vmatpush1.bf16.msra.mxu0 0
  %1300 = vmatprep.subr.bf16.mxu0 0
  %1301 = vmatpush1.bf16.msra.mxu0 0
  %1302 = vmatprep.subr.bf16.mxu0 0
  %1303 = vmatpush1.bf16.msra.mxu0 0
  %1304 = vmatprep.subr.bf16.mxu0 0
  %1305 = vmatpush1.bf16.msra.mxu0 0
  %1306 = vmatprep.subr.bf16.mxu0 0
  %1307 = vmatpush1.bf16.msra.mxu0 0
  %1308 = vmatprep.subr.bf16.mxu0 0
  %1309 = vmatpush1.bf16.msra.mxu0 0
  %1310 = vmatprep.subr.bf16.mxu0 0
  %1311 = vmatpush1.bf16.msra.mxu0 0
  %1312 = vmatprep.mubr.bf16.mxu0 0
  %1313 = vmatmul.mubr.bf16.gmra.mrb[0].mxu0 %v1245
  %v1314 = vpop.f32.mrb[0].mxu0
  %v1315 = vadd.f32 0.0, %v1314
  %v1316 = vpop.f32.mrb[0].mxu0
  %v1317 = vadd.f32 0.0, %v1316
  %v1318 = vpop.f32.mrb[0].mxu0
  %v1319 = vpop.f32.mrb[0].mxu0
  %1320 = vdwg.mxu0
  %1321 = vmatprep.subr.bf16.mxu0 %v1251
  %1322 = vmatpush1.bf16.msra.mxu0 %v1250
  %1323 = vmatprep.subr.bf16.mxu0 %v1255
  %1324 = vmatpush1.bf16.msra.mxu0 %v1254
  %1325 = vmatprep.subr.bf16.mxu0 %v1259
  %1326 = vmatpush1.bf16.msra.mxu0 %v1258
  %1327 = vmatprep.subr.bf16.mxu0 %v1263
  %1328 = vmatpush1.bf16.msra.mxu0 %v1262
  %1329 = vmatprep.subr.bf16.mxu0 %v1267
  %1330 = vmatpush1.bf16.msra.mxu0 %v1266
  %1331 = vmatprep.subr.bf16.mxu0 %v1271
  %1332 = vmatpush1.bf16.msra.mxu0 %v1270
  %1333 = vmatprep.subr.bf16.mxu0 %v1275
  %1334 = vmatpush1.bf16.msra.mxu0 %v1274
  %1335 = vmatprep.subr.bf16.mxu0 %v1279
  %1336 = vmatpush1.bf16.msra.mxu0 %v1278
  %1337 = vmatprep.subr.bf16.mxu0 0
  %1338 = vmatpush1.bf16.msra.mxu0 0
  %1339 = vmatprep.subr.bf16.mxu0 0
  %1340 = vmatpush1.bf16.msra.mxu0 0
  %1341 = vmatprep.subr.bf16.mxu0 0
  %1342 = vmatpush1.bf16.msra.mxu0 0
  %1343 = vmatprep.subr.bf16.mxu0 0
  %1344 = vmatpush1.bf16.msra.mxu0 0
  %1345 = vmatprep.subr.bf16.mxu0 0
  %1346 = vmatpush1.bf16.msra.mxu0 0
  %1347 = vmatprep.subr.bf16.mxu0 0
  %1348 = vmatpush1.bf16.msra.mxu0 0
  %1349 = vmatprep.subr.bf16.mxu0 0
  %1350 = vmatpush1.bf16.msra.mxu0 0
  %1351 = vmatprep.subr.bf16.mxu0 0
  %1352 = vmatpush1.bf16.msra.mxu0 0
  %1353 = vmatprep.mubr.bf16.mxu0 0
  %1354 = vmatmul.mubr.bf16.gmra.mrb[0].mxu0 %v1245
  %v1355 = vpop.f32.mrb[0].mxu0
  %v1356 = vadd.f32 0.0, %v1355
  %v1357 = vpop.f32.mrb[0].mxu0
  %v1358 = vadd.f32 0.0, %v1357
  %v1359 = vpop.f32.mrb[0].mxu0
  %v1360 = vpop.f32.mrb[0].mxu0
  %1361 = vdwg.mxu0
  %s1362 = scalar_lea.vmem %s0, 96
  %v1363 = vld [vmem:[%s1362] sm:$0xff]
  %v1364 = vld [vmem:[%s1362 + $0x8] sm:$0xff]
  %v1365 = vunpack.c.l.bf16 %v1363
  %v1366 = vunpack.c.h.bf16 %v1363
  %v1367 = vunpack.c.l.bf16 %v1364
  %v1368 = vunpack.c.h.bf16 %v1364
  %v1369 = vadd.f32 %v1365, %v1315
  %v1370 = vadd.f32 %v1366, %v1317
  %v1371 = vadd.f32 %v1367, %v1356
  %v1372 = vadd.f32 %v1368, %v1358
  %v1373 = vxor.u32 %v1369, 2147483648
  %v1374 = vmul.f32 %v1373, 1.442695
  %v1375 = vpow.pop %v1374
  %v1376 = vadd.f32 %v1375, 1.0
  %v1377 = vrcp.pop %v1376
  %v1378 = vmul.f32 1.0, %v1377
  %v1379 = vxor.u32 %v1370, 2147483648
  %v1380 = vmul.f32 %v1379, 1.442695
  %v1381 = vpow.pop %v1380
  %v1382 = vadd.f32 %v1381, 1.0
  %v1383 = vrcp.pop %v1382
  %v1384 = vmul.f32 1.0, %v1383
  %v1385 = vtanh.pop %v1371
  %v1386 = vxor.u32 %v1372, 2147483648
  %v1387 = vmul.f32 %v1386, 1.442695
  %v1388 = vpow.pop %v1387
  %v1389 = vadd.f32 %v1388, 1.0
  %v1390 = vrcp.pop %v1389
  %v1391 = vmul.f32 1.0, %v1390
  %v1392 = vmul.f32 %v1384, %v1242
  %v1393 = vmul.f32 %v1378, %v1385
  %v1394 = vadd.f32 %v1392, %v1393
  %v1395 = vtanh.pop %v1394
  %v1396 = vmul.f32 %v1391, %v1395
  %v1397 = vpack.c.bf16 %v1396, %v1396
  %s1398 = scalar_lea.vmem %s4, 24
  %1399 = vst [vmem:[%s1398] sm:$0xf] %v1397
  %v1400 = vld [vmem:[#allocation2] sm:$0xff]
  %v1401 = vld [vmem:[#allocation2 + $0x8] sm:$0xff]
  %v1402 = vld [vmem:[#allocation2 + $0x10] sm:$0xff]
  %v1403 = vld [vmem:[#allocation2 + $0x18] sm:$0xff]
  %v1404 = vld [vmem:[#allocation2 + $0x20] sm:$0xff]
  %v1405 = vld [vmem:[#allocation2 + $0x28] sm:$0xff]
  %v1406 = vld [vmem:[#allocation2 + $0x30] sm:$0xff]
  %v1407 = vld [vmem:[#allocation2 + $0x38] sm:$0xff]
  %v1408 = vld [vmem:[#allocation2 + $0x40] sm:$0xff]
  %v1409 = vld [vmem:[#allocation2 + $0x48] sm:$0xff]
  %v1410 = vld [vmem:[#allocation2 + $0x50] sm:$0xff]
  %v1411 = vld [vmem:[#allocation2 + $0x58] sm:$0xff]
  %v1412 = vld [vmem:[#allocation2 + $0x60] sm:$0xff]
  %v1413 = vld [vmem:[#allocation2 + $0x68] sm:$0xff]
  %v1414 = vld [vmem:[#allocation2 + $0x70] sm:$0xff]
  %v1415 = vld [vmem:[#allocation2 + $0x78] sm:$0xff]
  %v1416 = vld [vmem:[#allocation2 + $0x80] sm:$0xff]
  %v1417 = vld [vmem:[#allocation2 + $0x88] sm:$0xff]
  %v1418 = vld [vmem:[#allocation2 + $0x90] sm:$0xff]
  %v1419 = vld [vmem:[#allocation2 + $0x98] sm:$0xff]
  %v1420 = vld [vmem:[#allocation2 + $0xa0] sm:$0xff]
  %v1421 = vld [vmem:[#allocation2 + $0xa8] sm:$0xff]
  %v1422 = vld [vmem:[#allocation2 + $0xb0] sm:$0xff]
  %v1423 = vld [vmem:[#allocation2 + $0xb8] sm:$0xff]
  %v1424 = vld [vmem:[#allocation2 + $0xc0] sm:$0xff]
  %v1425 = vld [vmem:[#allocation2 + $0xc8] sm:$0xff]
  %v1426 = vld [vmem:[#allocation2 + $0xd0] sm:$0xff]
  %v1427 = vld [vmem:[#allocation2 + $0xd8] sm:$0xff]
  %v1428 = vld [vmem:[#allocation2 + $0xe0] sm:$0xff]
  %v1429 = vld [vmem:[#allocation2 + $0xe8] sm:$0xff]
  %v1430 = vld [vmem:[#allocation2 + $0xf0] sm:$0xff]
  %v1431 = vld [vmem:[#allocation2 + $0xf8] sm:$0xff]
  %1432 = vmatprep.subr.bf16.mxu0 %v1401
  %1433 = vmatpush1.bf16.msra.mxu0 %v1400
  %1434 = vmatprep.subr.bf16.mxu0 %v1405
  %1435 = vmatpush1.bf16.msra.mxu0 %v1404
  %1436 = vmatprep.subr.bf16.mxu0 %v1409
  %1437 = vmatpush1.bf16.msra.mxu0 %v1408
  %1438 = vmatprep.subr.bf16.mxu0 %v1413
  %1439 = vmatpush1.bf16.msra.mxu0 %v1412
  %1440 = vmatprep.subr.bf16.mxu0 %v1417
  %1441 = vmatpush1.bf16.msra.mxu0 %v1416
  %1442 = vmatprep.subr.bf16.mxu0 %v1421
  %1443 = vmatpush1.bf16.msra.mxu0 %v1420
  %1444 = vmatprep.subr.bf16.mxu0 %v1425
  %1445 = vmatpush1.bf16.msra.mxu0 %v1424
  %1446 = vmatprep.subr.bf16.mxu0 %v1429
  %1447 = vmatpush1.bf16.msra.mxu0 %v1428
  %1448 = vmatprep.subr.bf16.mxu0 0
  %1449 = vmatpush1.bf16.msra.mxu0 0
  %1450 = vmatprep.subr.bf16.mxu0 0
  %1451 = vmatpush1.bf16.msra.mxu0 0
  %1452 = vmatprep.subr.bf16.mxu0 0
  %1453 = vmatpush1.bf16.msra.mxu0 0
  %1454 = vmatprep.subr.bf16.mxu0 0
  %1455 = vmatpush1.bf16.msra.mxu0 0
  %1456 = vmatprep.subr.bf16.mxu0 0
  %1457 = vmatpush1.bf16.msra.mxu0 0
  %1458 = vmatprep.subr.bf16.mxu0 0
  %1459 = vmatpush1.bf16.msra.mxu0 0
  %1460 = vmatprep.subr.bf16.mxu0 0
  %1461 = vmatpush1.bf16.msra.mxu0 0
  %1462 = vmatprep.subr.bf16.mxu0 0
  %1463 = vmatpush1.bf16.msra.mxu0 0
  %1464 = vmatprep.mubr.bf16.mxu0 0
  %1465 = vmatmul.mubr.bf16.gmra.mrb[0].mxu0 %v1397
  %v1466 = vpop.f32.mrb[0].mxu0
  %v1467 = vadd.f32 0.0, %v1466
  %v1468 = vpop.f32.mrb[0].mxu0
  %v1469 = vadd.f32 0.0, %v1468
  %v1470 = vpop.f32.mrb[0].mxu0
  %v1471 = vpop.f32.mrb[0].mxu0
  %1472 = vdwg.mxu0
  %1473 = vmatprep.subr.bf16.mxu0 %v1403
  %1474 = vmatpush1.bf16.msra.mxu0 %v1402
  %1475 = vmatprep.subr.bf16.mxu0 %v1407
  %1476 = vmatpush1.bf16.msra.mxu0 %v1406
  %1477 = vmatprep.subr.bf16.mxu0 %v1411
  %1478 = vmatpush1.bf16.msra.mxu0 %v1410
  %1479 = vmatprep.subr.bf16.mxu0 %v1415
  %1480 = vmatpush1.bf16.msra.mxu0 %v1414
  %1481 = vmatprep.subr.bf16.mxu0 %v1419
  %1482 = vmatpush1.bf16.msra.mxu0 %v1418
  %1483 = vmatprep.subr.bf16.mxu0 %v1423
  %1484 = vmatpush1.bf16.msra.mxu0 %v1422
  %1485 = vmatprep.subr.bf16.mxu0 %v1427
  %1486 = vmatpush1.bf16.msra.mxu0 %v1426
  %1487 = vmatprep.subr.bf16.mxu0 %v1431
  %1488 = vmatpush1.bf16.msra.mxu0 %v1430
  %1489 = vmatprep.subr.bf16.mxu0 0
  %1490 = vmatpush1.bf16.msra.mxu0 0
  %1491 = vmatprep.subr.bf16.mxu0 0
  %1492 = vmatpush1.bf16.msra.mxu0 0
  %1493 = vmatprep.subr.bf16.mxu0 0
  %1494 = vmatpush1.bf16.msra.mxu0 0
  %1495 = vmatprep.subr.bf16.mxu0 0
  %1496 = vmatpush1.bf16.msra.mxu0 0
  %1497 = vmatprep.subr.bf16.mxu0 0
  %1498 = vmatpush1.bf16.msra.mxu0 0
  %1499 = vmatprep.subr.bf16.mxu0 0
  %1500 = vmatpush1.bf16.msra.mxu0 0
  %1501 = vmatprep.subr.bf16.mxu0 0
  %1502 = vmatpush1.bf16.msra.mxu0 0
  %1503 = vmatprep.subr.bf16.mxu0 0
  %1504 = vmatpush1.bf16.msra.mxu0 0
  %1505 = vmatprep.mubr.bf16.mxu0 0
  %1506 = vmatmul.mubr.bf16.gmra.mrb[0].mxu0 %v1397
  %v1507 = vpop.f32.mrb[0].mxu0
  %v1508 = vadd.f32 0.0, %v1507
  %v1509 = vpop.f32.mrb[0].mxu0
  %v1510 = vadd.f32 0.0, %v1509
  %v1511 = vpop.f32.mrb[0].mxu0
  %v1512 = vpop.f32.mrb[0].mxu0
  %1513 = vdwg.mxu0
  %s1514 = scalar_lea.vmem %s0, 112
  %v1515 = vld [vmem:[%s1514] sm:$0xff]
  %v1516 = vld [vmem:[%s1514 + $0x8] sm:$0xff]
  %v1517 = vunpack.c.l.bf16 %v1515
  %v1518 = vunpack.c.h.bf16 %v1515
  %v1519 = vunpack.c.l.bf16 %v1516
  %v1520 = vunpack.c.h.bf16 %v1516
  %v1521 = vadd.f32 %v1517, %v1467
  %v1522 = vadd.f32 %v1518, %v1469
  %v1523 = vadd.f32 %v1519, %v1508
  %v1524 = vadd.f32 %v1520, %v1510
  %v1525 = vxor.u32 %v1521, 2147483648
  %v1526 = vmul.f32 %v1525, 1.442695
  %v1527 = vpow.pop %v1526
  %v1528 = vadd.f32 %v1527, 1.0
  %v1529 = vrcp.pop %v1528
  %v1530 = vmul.f32 1.0, %v1529
  %v1531 = vxor.u32 %v1522, 2147483648
  %v1532 = vmul.f32 %v1531, 1.442695
  %v1533 = vpow.pop %v1532
  %v1534 = vadd.f32 %v1533, 1.0
  %v1535 = vrcp.pop %v1534
  %v1536 = vmul.f32 1.0, %v1535
  %v1537 = vtanh.pop %v1523
  %v1538 = vxor.u32 %v1524, 2147483648
  %v1539 = vmul.f32 %v1538, 1.442695
  %v1540 = vpow.pop %v1539
  %v1541 = vadd.f32 %v1540, 1.0
  %v1542 = vrcp.pop %v1541
  %v1543 = vmul.f32 1.0, %v1542
  %v1544 = vmul.f32 %v1536, %v1394
  %v1545 = vmul.f32 %v1530, %v1537
  %v1546 = vadd.f32 %v1544, %v1545
  %v1547 = vtanh.pop %v1546
  %v1548 = vmul.f32 %v1543, %v1547
  %v1549 = vpack.c.bf16 %v1548, %v1548
  %s1550 = scalar_lea.vmem %s4, 28
  %1551 = vst [vmem:[%s1550] sm:$0xf] %v1549
  %1552 = vst [vmem:[#allocation3] sm:$0xff] %v1548
  %1553 = vst [vmem:[#allocation4] sm:$0xff] %v1546
  // Predicated region
  $region55: #{_forward_impl.6} parent=0 // pred_check
    %p1554 = pneg %p19
  $region56: #{_forward_impl.6} parent=0 // pred_check_branch
    %1556 = sbr.rel (%p1554) target = $region58
  $region57: #{_forward_impl.6} parent=0 // pred_region
    %1557 = vst [vmem:[%s5] sm:$0xff] %v1548
    %1558 = vst [vmem:[%s6] sm:$0xff] %v1546
  $region58: #{_forward_impl.6} parent=0 // pred_fallthru
    _
  // Predicated region
  $region59: #{_forward_impl.6} parent=0 // pred_check
    _
  $region60: #{_forward_impl.6} parent=0 // pred_check_branch
    %1560 = sbr.rel (0) target = $region62
  $region61: #{_forward_impl.6} parent=0 // pred_region
    _
  $region62: #{_forward_impl.6} parent=0 // pred_fallthru
    _
  // Predicated region
  $region63: #{_forward_impl.6} parent=0 // pred_check
    _
  $region64: #{_forward_impl.6} parent=0 // pred_check_branch
    %1562 = sbr.rel (0) target = $region66
  $region65: #{_forward_impl.6} parent=0 // pred_region
    _
  $region66: #{_forward_impl.6} parent=0 // pred_fallthru
    _
  // Predicated region
  $region67: #{_forward_impl.6} parent=0 // pred_check
    _
  $region68: #{_forward_impl.6} parent=0 // pred_check_branch
    %1564 = sbr.rel (0) target = $region70
  $region69: #{_forward_impl.6} parent=0 // pred_region
    _
  $region70: #{_forward_impl.6} parent=0 // pred_fallthru
    _
  // Predicated region
  $region71: #{_forward_impl.6} parent=0 // pred_check
    _
  $region72: #{_forward_impl.6} parent=0 // pred_check_branch
    %1566 = sbr.rel (0) target = $region74
  $region73: #{_forward_impl.6} parent=0 // pred_region
    _
  $region74: #{_forward_impl.6} parent=0 // pred_fallthru
    _
  // Predicated region
  $region75: #{_forward_impl.6} parent=0 // pred_check
    _
  $region76: #{_forward_impl.6} parent=0 // pred_check_branch
    %1568 = sbr.rel (0) target = $region78
  $region77: #{_forward_impl.6} parent=0 // pred_region
    _
  $region78: #{_forward_impl.6} parent=0 // pred_fallthru
    _
  // Predicated region
  $region79: #{_forward_impl.6} parent=0 // pred_check
    _
  $region80: #{_forward_impl.6} parent=0 // pred_check_branch
    %1570 = sbr.rel (0) target = $region82
  $region81: #{_forward_impl.6} parent=0 // pred_region
    _
  $region82: #{_forward_impl.6} parent=0 // pred_fallthru
    _
  %1571 = vsyncmov [#allocation5]
  %s1572 = vpop.sfrf %1571
  %p1573 = scmp.eq.s32.totalorder %s1572, 0
  %p1574 = pneg %p1573
  %1576 = shalt.err (%p1574)

</llo_original>
